<compile_context>
chip_gen: v5e
topology: v5e:2x2
jax: 0.10.0
libtpu: 0.0.40
codegen_flags: <defaults>
</compile_context>

<pallas_src>
import functools

import jax
import jax.numpy as jnp
from jax import lax
from jax.experimental import pallas as pl
from jax.experimental.pallas import tpu as pltpu


# --------------------------- tiling / dtype knobs ---------------------------

_TM = 128              # token (batch*seq) row tile; 128 keeps both v7x TCs busy
_TI = 512              # FFN intermediate-dim (reduction) tile
_TV = 1024             # vocab tile for the lm_head
_TKEY = 512            # flash-attention key tile (in-kernel static unroll)
_VMEM_LIMIT = 48 * 1024 * 1024   # explicit scoped-VMEM budget (fits v7x 64 MiB)

_WEIGHT_DTYPE = jnp.bfloat16     # HBM storage dtype of matmul weights
_ACT_DTYPE = jnp.bfloat16        # QKV / attention-context intermediates
_MATMUL_DTYPE = jnp.bfloat16     # MXU operand dtype (f32 accumulation)


def _cparams(*semantics):
    return pltpu.CompilerParams(dimension_semantics=semantics,
                                vmem_limit_bytes=_VMEM_LIMIT)


def _single_buffered(shape, index_map):
    """BlockSpec for constant-index blocks: single buffer (saves VMEM)."""
    try:
        return pl.BlockSpec(shape, index_map, pipeline_mode=pl.Buffered(1))
    except (AttributeError, TypeError):      # older jax: fall back to default
        return pl.BlockSpec(shape, index_map)


def _row_tile(m):
    return m if m <= _TM else _TM


# ------------------------------ Pallas kernels ------------------------------

def _add_ln_kernel(x_ref, y_ref, g_ref, b_ref, o_ref, *, eps):
    # o = LayerNorm(x + y) * gamma + beta   (fused residual add + LN, f32)
    h = x_ref[...].astype(jnp.float32) + y_ref[...].astype(jnp.float32)
    mu = jnp.mean(h, axis=-1, keepdims=True)
    var = jnp.mean(jnp.square(h - mu), axis=-1, keepdims=True)
    n = (h - mu) * lax.rsqrt(var + eps)
    o_ref[...] = (n * g_ref[...] + b_ref[...]).astype(o_ref.dtype)


def _qkv_head_kernel(x_ref, w_ref, b_ref, o_ref, *, matmul_dtype):
    # Per-head QKV projection: (TM, H) @ (H, 3*hd) + (1, 3*hd) -> (TM, 3*hd)
    acc = jnp.dot(x_ref[...].astype(matmul_dtype),
                  w_ref[...].astype(matmul_dtype),
                  preferred_element_type=jnp.float32)
    o_ref[...] = (acc + b_ref[...]).astype(o_ref.dtype)


def _mha_kernel(qkv_ref, mask_ref, o_ref, *, head_dim, key_tile, scale,
                matmul_dtype):
    # One (batch, head) step: qkv_ref (S, 3*hd) packed [q|k|v] bf16,
    # mask_ref (1, S) additive key mask, o_ref (S, hd) context.
    hd = head_dim
    qkv = qkv_ref[...]
    seq = qkv.shape[0]
    q = qkv[:, :hd].astype(matmul_dtype)
    k = qkv[:, hd:2 * hd].astype(matmul_dtype)
    v = qkv[:, 2 * hd:3 * hd].astype(matmul_dtype)
    mask = mask_ref[...]                               # (1, S) f32

    # Flash-style online softmax over key tiles: never materializes (S, S).
    # key_tile divides S (enforced in the wrapper); static trip count ->
    # Python unroll keeps everything visible to the LLO scheduler.
    m_i = jnp.full((seq, 1), -jnp.inf, jnp.float32)
    l_i = jnp.zeros((seq, 1), jnp.float32)
    acc = jnp.zeros((seq, hd), jnp.float32)
    num_kt = seq // key_tile
    for t in range(num_kt):
        lo = t * key_tile
        kt = k[lo:lo + key_tile, :]
        vt = v[lo:lo + key_tile, :]
        s = lax.dot_general(q, kt, (((1,), (1,)), ((), ())),
                            preferred_element_type=jnp.float32)
        s = s * scale + mask[:, lo:lo + key_tile]      # f32 scores
        m_new = jnp.maximum(m_i, jnp.max(s, axis=-1, keepdims=True))
        alpha = jnp.exp(m_i - m_new)
        p = jnp.exp(s - m_new)
        l_i = alpha * l_i + jnp.sum(p, axis=-1, keepdims=True)
        acc = alpha * acc + jnp.dot(p.astype(matmul_dtype), vt,
                                    preferred_element_type=jnp.float32)
        m_i = m_new

    # Exact normalization (review correctness note on approx reciprocal).
    o_ref[...] = (acc / l_i).astype(o_ref.dtype)
    # TODO(synk): batch 2-4 heads per grid step so QK^T / PV fill the 256-wide
    # MXU on v6e/v7x (per-head hd<256 contraction underfills the array).


def _ctx_proj_res_ln_kernel(ctx_ref, res_ref, wo_ref, bo_ref, g_ref, bt_ref,
                            o_ref, acc_ref, *, eps, matmul_dtype):
    # Head-reduction output projection + residual + LayerNorm.
    # grid = (M_tiles, nH); axis 1 is the reduction over heads.
    h = pl.program_id(1)

    @pl.when(h == 0)
    def _():
        acc_ref[...] = jnp.zeros_like(acc_ref)

    acc_ref[...] += jnp.dot(ctx_ref[...].astype(matmul_dtype),
                            wo_ref[...].astype(matmul_dtype),
                            preferred_element_type=jnp.float32)

    @pl.when(h == pl.num_programs(1) - 1)
    def _():
        r = acc_ref[...] + bo_ref[...] + res_ref[...].astype(jnp.float32)
        mu = jnp.mean(r, axis=-1, keepdims=True)
        var = jnp.mean(jnp.square(r - mu), axis=-1, keepdims=True)
        n = (r - mu) * lax.rsqrt(var + eps)
        o_ref[...] = (n * g_ref[...] + bt_ref[...]).astype(o_ref.dtype)


def _ffn_res_ln_kernel(x_ref, w1_ref, b1_ref, w2_ref, b2_ref, g_ref, bt_ref,
                       o_ref, acc_ref, *, eps, matmul_dtype):
    # Intermediate-dim-tiled FFN + residual + LayerNorm.
    # grid = (M_tiles, I_tiles); axis 1 is the reduction over I tiles.
    j = pl.program_id(1)

    @pl.when(j == 0)
    def _():
        acc_ref[...] = jnp.zeros_like(acc_ref)

    x = x_ref[...]
    h = jnp.dot(x.astype(matmul_dtype), w1_ref[...].astype(matmul_dtype),
                preferred_element_type=jnp.float32) + b1_ref[...]
    # TODO(synk): PyTorch F.gelu default is exact erf GELU; tanh approx here.
    h = jax.nn.gelu(h, approximate=True)
    acc_ref[...] += jnp.dot(h.astype(matmul_dtype),
                            w2_ref[...].astype(matmul_dtype),
                            preferred_element_type=jnp.float32)

    @pl.when(j == pl.num_programs(1) - 1)
    def _():
        r = acc_ref[...] + b2_ref[...] + x.astype(jnp.float32)
        mu = jnp.mean(r, axis=-1, keepdims=True)
        var = jnp.mean(jnp.square(r - mu), axis=-1, keepdims=True)
        n = (r - mu) * lax.rsqrt(var + eps)
        o_ref[...] = (n * g_ref[...] + bt_ref[...]).astype(o_ref.dtype)


def _matmul_kernel(x_ref, w_ref, o_ref, *, matmul_dtype):
    # Plain lane-dense (TM, TV) matmul block (used by the lm_head).
    o_ref[...] = jnp.dot(x_ref[...].astype(matmul_dtype),
                         w_ref[...].astype(matmul_dtype),
                         preferred_element_type=jnp.float32).astype(o_ref.dtype)


# ------------------------------ kernel wrappers ------------------------------

def pallas_add_layernorm(x2d, y2d, gamma, beta, eps):
    M, H = x2d.shape
    TM = _row_tile(M)
    row = pl.BlockSpec((TM, H), lambda i: (i, 0))
    return pl.pallas_call(
        functools.partial(_add_ln_kernel, eps=eps),
        out_shape=jax.ShapeDtypeStruct((M, H), x2d.dtype),
        grid=(pl.cdiv(M, TM),),
        in_specs=[row, row,
                  _single_buffered((1, H), lambda i: (0, 0)),
                  _single_buffered((1, H), lambda i: (0, 0))],
        out_specs=row,
        compiler_params=_cparams("parallel"),
    )(x2d, y2d, gamma.reshape(1, H), beta.reshape(1, H))


def pallas_qkv_proj(x2d, wqkv, bqkv):
    """x (M,H) f32, wqkv (nH,H,3hd) bf16, bqkv (nH,1,3hd) f32 -> (nH,M,3hd) bf16."""
    M, H = x2d.shape
    nH, _, t3hd = wqkv.shape
    TM = _row_tile(M)
    # Heads innermost: the x row-tile keeps its block index across head steps
    # (no re-DMA); per-head weight blocks stream and pipeline.
    return pl.pallas_call(
        functools.partial(_qkv_head_kernel, matmul_dtype=_MATMUL_DTYPE),
        out_shape=jax.ShapeDtypeStruct((nH, M, t3hd), _ACT_DTYPE),
        grid=(pl.cdiv(M, TM), nH),
        in_specs=[pl.BlockSpec((TM, H), lambda i, h: (i, 0)),
                  pl.BlockSpec((None, H, t3hd), lambda i, h: (h, 0, 0)),
                  pl.BlockSpec((None, 1, t3hd), lambda i, h: (h, 0, 0))],
        out_specs=pl.BlockSpec((None, TM, t3hd), lambda i, h: (h, i, 0)),
        compiler_params=_cparams("parallel", "parallel"),
    )(x2d, wqkv, bqkv)
    # TODO(synk): longer term, fold this projection into the attention kernel
    # so the (nH, M, 3hd) intermediate never round-trips HBM.


def pallas_mha(qkv_heads, add_mask, batch, seq, head_dim, scale):
    """qkv_heads (nH, B*S, 3hd) bf16, add_mask (B,1,S) f32 -> (nH, B*S, hd) bf16."""
    nH, M, t3hd = qkv_heads.shape
    key_tile = _TKEY if (seq > _TKEY and seq % _TKEY == 0) else seq
    return pl.pallas_call(
        functools.partial(_mha_kernel, head_dim=head_dim, key_tile=key_tile,
                          scale=scale, matmul_dtype=_MATMUL_DTYPE),
        out_shape=jax.ShapeDtypeStruct((nH, M, head_dim), _ACT_DTYPE),
        grid=(batch, nH),
        in_specs=[pl.BlockSpec((None, seq, t3hd), lambda b, h: (h, b, 0)),
                  pl.BlockSpec((None, 1, seq), lambda b, h: (b, 0, 0))],
        out_specs=pl.BlockSpec((None, seq, head_dim), lambda b, h: (h, b, 0)),
        compiler_params=_cparams("parallel", "parallel"),
    )(qkv_heads, add_mask)


def pallas_ctx_proj_res_ln(ctx_heads, residual, wo, bo, gamma, beta, eps):
    """sum_h ctx[h] @ wo[h] + bo + residual -> LayerNorm, all in one kernel."""
    nH, M, hd = ctx_heads.shape
    H = wo.shape[-1]
    TM = _row_tile(M)
    return pl.pallas_call(
        functools.partial(_ctx_proj_res_ln_kernel, eps=eps,
                          matmul_dtype=_MATMUL_DTYPE),
        out_shape=jax.ShapeDtypeStruct((M, H), residual.dtype),
        grid=(pl.cdiv(M, TM), nH),
        in_specs=[pl.BlockSpec((None, TM, hd), lambda i, h: (h, i, 0)),
                  pl.BlockSpec((TM, H), lambda i, h: (i, 0)),
                  pl.BlockSpec((None, hd, H), lambda i, h: (h, 0, 0)),
                  _single_buffered((1, H), lambda i, h: (0, 0)),
                  _single_buffered((1, H), lambda i, h: (0, 0)),
                  _single_buffered((1, H), lambda i, h: (0, 0))],
        out_specs=pl.BlockSpec((TM, H), lambda i, h: (i, 0)),
        scratch_shapes=[pltpu.VMEM((TM, H), jnp.float32)],
        compiler_params=_cparams("parallel", "arbitrary"),
    )(ctx_heads, residual, wo, bo.reshape(1, H), gamma.reshape(1, H),
      beta.reshape(1, H))


def pallas_ffn_res_ln(x2d, w1, b1, w2, b2, gamma, beta, eps):
    M, H = x2d.shape
    I = w1.shape[1]
    TM = _row_tile(M)
    TI = _TI if (I > _TI and I % _TI == 0) else I   # reduction tile must divide I
    return pl.pallas_call(
        functools.partial(_ffn_res_ln_kernel, eps=eps,
                          matmul_dtype=_MATMUL_DTYPE),
        out_shape=jax.ShapeDtypeStruct((M, H), x2d.dtype),
        grid=(pl.cdiv(M, TM), I // TI),
        in_specs=[pl.BlockSpec((TM, H), lambda i, j: (i, 0)),
                  pl.BlockSpec((H, TI), lambda i, j: (0, j)),
                  pl.BlockSpec((1, TI), lambda i, j: (0, j)),
                  pl.BlockSpec((TI, H), lambda i, j: (j, 0)),
                  _single_buffered((1, H), lambda i, j: (0, 0)),
                  _single_buffered((1, H), lambda i, j: (0, 0)),
                  _single_buffered((1, H), lambda i, j: (0, 0))],
        out_specs=pl.BlockSpec((TM, H), lambda i, j: (i, 0)),
        scratch_shapes=[pltpu.VMEM((TM, H), jnp.float32)],
        compiler_params=_cparams("parallel", "arbitrary"),
    )(x2d, w1, b1.reshape(1, I), w2, b2.reshape(1, H),
      gamma.reshape(1, H), beta.reshape(1, H))


def pallas_lm_head(x2d, w_hv):
    """logits = x @ w_hv (no bias); w_hv is the tied weight, (H,V), bf16."""
    M, H = x2d.shape
    V = w_hv.shape[1]
    TM = _row_tile(M)
    TV = V if V <= _TV else _TV
    return pl.pallas_call(
        functools.partial(_matmul_kernel, matmul_dtype=_MATMUL_DTYPE),
        out_shape=jax.ShapeDtypeStruct((M, V), jnp.float32),
        grid=(pl.cdiv(M, TM), pl.cdiv(V, TV)),
        in_specs=[pl.BlockSpec((TM, H), lambda i, j: (i, 0)),
                  pl.BlockSpec((H, TV), lambda i, j: (0, j))],
        out_specs=pl.BlockSpec((TM, TV), lambda i, j: (i, j)),
        compiler_params=_cparams("parallel", "parallel"),
    )(x2d, w_hv)


# ------------------------------- Model (glue) --------------------------------

class Config:
    vocab_size = 64
    hidden_size = 32
    num_hidden_layers = 2
    num_attention_heads = 4
    intermediate_size = 64
    max_position_embeddings = 16
    layer_norm_eps = 1e-12
    hidden_act = "gelu"
    attention_dropout_prob = 0.0   # eval mode -> dropout is a no-op
    hidden_dropout_prob = 0.0
    tie_word_embeddings = True


def init_params(key, cfg):
    """Weights stored in MXU-native (in, out) layout, head-blocked for the
    attention path, and cast to bf16 once at init. The tied lm_head weight is
    pre-transposed to (H, V) bf16 so no transpose happens inside the jit."""
    H, I, V, P = (cfg.hidden_size, cfg.intermediate_size,
                  cfg.vocab_size, cfg.max_position_embeddings)
    nH = cfg.num_attention_heads
    hd = H // nH

    def nrm(k, shape, dtype=jnp.float32):
        return (0.02 * jax.random.normal(k, shape, jnp.float32)).astype(dtype)

    keys = jax.random.split(key, 2 + cfg.num_hidden_layers * 4)
    word_emb = nrm(keys[0], (V, H))
    params = {
        "word_emb": word_emb,                                    # f32 (gather)
        "lm_head_w": jnp.asarray(word_emb.T, _WEIGHT_DTYPE),     # tied, (H,V)
        "pos_emb": nrm(keys[1], (P, H)),
        "emb_ln_g": jnp.ones((H,), jnp.float32),
        "emb_ln_b": jnp.zeros((H,), jnp.float32),
        "layers": [],
    }
    for l in range(cfg.num_hidden_layers):
        k = keys[2 + l * 4: 2 + (l + 1) * 4]
        params["layers"].append({
            # Per-head fused [q|k|v] projection blocks: (nH, H, 3*hd).
            "wqkv": nrm(k[0], (nH, H, 3 * hd), _WEIGHT_DTYPE),
            "bqkv": jnp.zeros((nH, 1, 3 * hd), jnp.float32),
            # Output projection, head-blocked (nH, hd, H) for the reduction grid.
            "wo": nrm(k[1], (nH, hd, H), _WEIGHT_DTYPE),
            "bo": jnp.zeros((H,), jnp.float32),
            "ln1_g": jnp.ones((H,), jnp.float32),
            "ln1_b": jnp.zeros((H,), jnp.float32),
            "w1": nrm(k[2], (H, I), _WEIGHT_DTYPE),
            "b1": jnp.zeros((I,), jnp.float32),
            "w2": nrm(k[3], (I, H), _WEIGHT_DTYPE),
            "b2": jnp.zeros((H,), jnp.float32),
            "ln2_g": jnp.ones((H,), jnp.float32),
            "ln2_b": jnp.zeros((H,), jnp.float32),
        })
    return params


def transformer_forward(params, cfg, input_ids, attention_mask=None,
                        position_ids=None):
    B, S = input_ids.shape
    H = cfg.hidden_size
    nH = cfg.num_attention_heads
    hd = H // nH
    M = B * S

    if position_ids is None:
        position_ids = jnp.broadcast_to(jnp.arange(S, dtype=jnp.int32), (B, S))

    # Embeddings: word + position gathers (XLA), fused add + LayerNorm (Pallas).
    # TODO(synk): token_type embeddings not modeled (reference only sums word + position).
    word = jnp.take(params["word_emb"], input_ids, axis=0).reshape(M, H)
    pos = jnp.take(params["pos_emb"], position_ids, axis=0).reshape(M, H)
    hidden = pallas_add_layernorm(word, pos, params["emb_ln_g"],
                                  params["emb_ln_b"], cfg.layer_norm_eps)

    # Extended attention mask: (1 - mask) * -10000 over key positions.
    if attention_mask is not None:
        ext = (1.0 - attention_mask.astype(jnp.float32)) * -10000.0
    else:
        ext = jnp.zeros((B, S), jnp.float32)
    ext = ext.reshape(B, 1, S)

    scale = 1.0 / float(hd) ** 0.5

    for layer in params["layers"]:
        # Head-blocked QKV projection -> (nH, M, 3hd) bf16 (no XLA transposes).
        qkv_h = pallas_qkv_proj(hidden, layer["wqkv"], layer["bqkv"])
        # Per-(batch, head) flash attention -> (nH, M, hd) bf16.
        ctx_h = pallas_mha(qkv_h, ext, B, S, hd, scale)
        # Output projection (head reduction) + residual + LayerNorm, one kernel.
        hidden = pallas_ctx_proj_res_ln(ctx_h, hidden, layer["wo"], layer["bo"],
                                        layer["ln1_g"], layer["ln1_b"],
                                        cfg.layer_norm_eps)
        # FFN (linear-gelu-linear, I-tiled reduction) + residual + LN, one kernel.
        hidden = pallas_ffn_res_ln(hidden, layer["w1"], layer["b1"],
                                   layer["w2"], layer["b2"],
                                   layer["ln2_g"], layer["ln2_b"],
                                   cfg.layer_norm_eps)

    # Tied lm_head (bias=False in the reference), vocab-tiled.
    logits = pallas_lm_head(hidden, params["lm_head_w"])        # (M, V) f32

    # TODO(synk): labels / CrossEntropyLoss path not implemented (inference-only forward).
    return {
        "loss": None,
        "logits": logits.reshape(B, S, cfg.vocab_size),
        "last_hidden_state": hidden.reshape(B, S, H),
        "hidden_states": None,
        "attentions": None,
    }


if __name__ == "__main__":
    cfg = Config()
    key = jax.random.PRNGKey(0)
    pkey, ikey = jax.random.split(key)
    params = init_params(pkey, cfg)

    B, S = 2, 8
    input_ids = jax.random.randint(ikey, (B, S), 0, cfg.vocab_size,
                                   dtype=jnp.int32)
    attention_mask = jnp.ones((B, S), jnp.float32).at[1, 6:].set(0.0)

    @jax.jit
    def fwd(ids, mask):
        return transformer_forward(params, cfg, ids, mask)

    out = fwd(input_ids, attention_mask)
    jax.block_until_ready(out["logits"])
    assert out["logits"].shape == (B, S, cfg.vocab_size)
    assert out["last_hidden_state"].shape == (B, S, cfg.hidden_size)
    print("KERNEL_OK")
</pallas_src>

<mosaic_0001>
module attributes {stable_mosaic.version = 11 : i64} {
  func.func @_add_ln_kernel(%arg0: i32, %arg1: memref<16x32xf32, #tpu.memory_space<vmem>>, %arg2: memref<16x32xf32, #tpu.memory_space<vmem>>, %arg3: memref<1x32xf32, #tpu.memory_space<vmem>>, %arg4: memref<1x32xf32, #tpu.memory_space<vmem>>, %arg5: memref<16x32xf32, #tpu.memory_space<vmem>>) attributes {dimension_semantics = [#tpu.dimension_semantics<parallel>], iteration_bounds = array<i64: 1>, scalar_prefetch = 0 : i64, scratch_operands = 0 : i64, tpu.core_type = #tpu.core_type<tc>, window_params = [{transform_indices = @transform_0, window_bounds = array<i64: 16, 32>}, {transform_indices = @transform_1, window_bounds = array<i64: 16, 32>}, {pipeline_mode = #tpu.pipeline_mode<synchronous>, transform_indices = @transform_2, window_bounds = array<i64: 1, 32>}, {pipeline_mode = #tpu.pipeline_mode<synchronous>, transform_indices = @transform_3, window_bounds = array<i64: 1, 32>}, {transform_indices = @transform_4, window_bounds = array<i64: 16, 32>}]} {
    %c0 = arith.constant 0 : index
    %c0_0 = arith.constant 0 : index
    %0 = vector.load %arg1[%c0, %c0_0] : memref<16x32xf32, #tpu.memory_space<vmem>>, vector<16x32xf32>
    %c0_1 = arith.constant 0 : index
    %c0_2 = arith.constant 0 : index
    %1 = vector.load %arg2[%c0_1, %c0_2] : memref<16x32xf32, #tpu.memory_space<vmem>>, vector<16x32xf32>
    %2 = arith.addf %0, %1 : vector<16x32xf32>
    %cst = arith.constant dense<0.000000e+00> : vector<16xf32>
    %3 = vector.multi_reduction <add>, %2, %cst [1] : vector<16x32xf32> to vector<16xf32>
    %4 = vector.shape_cast %3 : vector<16xf32> to vector<16x1xf32>
    %cst_3 = arith.constant 3.200000e+01 : f32
    %5 = vector.broadcast %cst_3 : f32 to vector<16x1xf32>
    %6 = arith.divf %4, %5 : vector<16x1xf32>
    %7 = vector.broadcast %6 : vector<16x1xf32> to vector<16x32xf32>
    %8 = arith.subf %2, %7 : vector<16x32xf32>
    %9 = arith.mulf %8, %8 : vector<16x32xf32>
    %cst_4 = arith.constant dense<0.000000e+00> : vector<16xf32>
    %10 = vector.multi_reduction <add>, %9, %cst_4 [1] : vector<16x32xf32> to vector<16xf32>
    %11 = vector.shape_cast %10 : vector<16xf32> to vector<16x1xf32>
    %cst_5 = arith.constant 3.200000e+01 : f32
    %12 = vector.broadcast %cst_5 : f32 to vector<16x1xf32>
    %13 = arith.divf %11, %12 : vector<16x1xf32>
    %14 = vector.broadcast %6 : vector<16x1xf32> to vector<16x32xf32>
    %15 = arith.subf %2, %14 : vector<16x32xf32>
    %cst_6 = arith.constant 9.99999996E-13 : f32
    %16 = vector.broadcast %cst_6 : f32 to vector<16x1xf32>
    %17 = arith.addf %13, %16 : vector<16x1xf32>
    %18 = math.rsqrt %17 : vector<16x1xf32>
    %19 = vector.broadcast %18 : vector<16x1xf32> to vector<16x32xf32>
    %20 = arith.mulf %15, %19 : vector<16x32xf32>
    %c0_7 = arith.constant 0 : index
    %c0_8 = arith.constant 0 : index
    %21 = vector.load %arg3[%c0_7, %c0_8] : memref<1x32xf32, #tpu.memory_space<vmem>>, vector<1x32xf32>
    %22 = vector.broadcast %21 : vector<1x32xf32> to vector<16x32xf32>
    %23 = arith.mulf %20, %22 : vector<16x32xf32>
    %c0_9 = arith.constant 0 : index
    %c0_10 = arith.constant 0 : index
    %24 = vector.load %arg4[%c0_9, %c0_10] : memref<1x32xf32, #tpu.memory_space<vmem>>, vector<1x32xf32>
    %25 = vector.broadcast %24 : vector<1x32xf32> to vector<16x32xf32>
    %26 = arith.addf %23, %25 : vector<16x32xf32>
    %c0_11 = arith.constant 0 : index
    %c0_12 = arith.constant 0 : index
    %27 = vector.load %arg5[%c0_11, %c0_12] : memref<16x32xf32, #tpu.memory_space<vmem>>, vector<16x32xf32>
    tpu.vector_store %arg5[%c0_11, %c0_12], %26 {strides = array<i32>} : memref<16x32xf32, #tpu.memory_space<vmem>>, vector<16x32xf32>,
    return
  }
  func.func @transform_0(%arg0: i32) -> (i32, i32) {
    %c0_i32 = arith.constant 0 : i32
    %c0_i32_0 = arith.constant 0 : i32
    return %arg0, %c0_i32 : i32, i32
  }
  func.func @transform_1(%arg0: i32) -> (i32, i32) {
    %c0_i32 = arith.constant 0 : i32
    %c0_i32_0 = arith.constant 0 : i32
    return %arg0, %c0_i32 : i32, i32
  }
  func.func @transform_2(%arg0: i32) -> (i32, i32) {
    %c0_i32 = arith.constant 0 : i32
    %c0_i32_0 = arith.constant 0 : i32
    %c0_i32_1 = arith.constant 0 : i32
    return %c0_i32, %c0_i32_0 : i32, i32
  }
  func.func @transform_3(%arg0: i32) -> (i32, i32) {
    %c0_i32 = arith.constant 0 : i32
    %c0_i32_0 = arith.constant 0 : i32
    %c0_i32_1 = arith.constant 0 : i32
    return %c0_i32, %c0_i32_0 : i32, i32
  }
  func.func @transform_4(%arg0: i32) -> (i32, i32) {
    %c0_i32 = arith.constant 0 : i32
    %c0_i32_0 = arith.constant 0 : i32
    return %arg0, %c0_i32 : i32, i32
  }
}

module attributes {stable_mosaic.version = 11 : i64} {
  func.func @_mha_kernel(%arg0: i32, %arg1: i32, %arg2: memref<1x8x24xbf16, #tpu.memory_space<vmem>>, %arg3: memref<1x1x8xf32, #tpu.memory_space<vmem>>, %arg4: memref<1x8x8xbf16, #tpu.memory_space<vmem>>) attributes {dimension_semantics = [#tpu.dimension_semantics<parallel>, #tpu.dimension_semantics<parallel>], iteration_bounds = array<i64: 2, 4>, scalar_prefetch = 0 : i64, scratch_operands = 0 : i64, tpu.core_type = #tpu.core_type<tc>, window_params = [{transform_indices = @transform_0, window_bounds = array<i64: 1, 8, 24>}, {transform_indices = @transform_1, window_bounds = array<i64: 1, 1, 8>}, {transform_indices = @transform_2, window_bounds = array<i64: 1, 8, 8>}]} {
    %c0 = arith.constant 0 : index
    %c0_0 = arith.constant 0 : index
    %c0_1 = arith.constant 0 : index
    %0 = vector.load %arg2[%c0, %c0_0, %c0_1] : memref<1x8x24xbf16, #tpu.memory_space<vmem>>, vector<1x8x24xbf16>
    %1 = vector.shape_cast %0 : vector<1x8x24xbf16> to vector<8x24xbf16>
    %2 = vector.extract_strided_slice %1 {offsets = [0, 0], sizes = [8, 8], strides = [1, 1]} : vector<8x24xbf16> to vector<8x8xbf16>
    %3 = vector.extract_strided_slice %1 {offsets = [0, 8], sizes = [8, 8], strides = [1, 1]} : vector<8x24xbf16> to vector<8x8xbf16>
    %4 = vector.extract_strided_slice %1 {offsets = [0, 16], sizes = [8, 8], strides = [1, 1]} : vector<8x24xbf16> to vector<8x8xbf16>
    %c0_2 = arith.constant 0 : index
    %c0_3 = arith.constant 0 : index
    %c0_4 = arith.constant 0 : index
    %5 = vector.load %arg3[%c0_2, %c0_3, %c0_4] : memref<1x1x8xf32, #tpu.memory_space<vmem>>, vector<1x1x8xf32>
    %6 = vector.shape_cast %5 : vector<1x1x8xf32> to vector<1x8xf32>
    %cst = arith.constant 0xFF800000 : f32
    %7 = vector.broadcast %cst : f32 to vector<8x1xf32>
    %cst_5 = arith.constant 0.000000e+00 : f32
    %8 = vector.broadcast %cst_5 : f32 to vector<8x1xf32>
    %cst_6 = arith.constant 0.000000e+00 : f32
    %9 = vector.broadcast %cst_6 : f32 to vector<8x8xf32>
    %cst_7 = arith.constant dense<0.000000e+00> : vector<8x8xf32>
    %10 = tpu.matmul %2, %3, %cst_7 {dimension_numbers = #tpu.dot_dimension_numbers<[1], [1], [0], [0], [0, 0, 1, 0], [], []>} : vector<8x8xbf16>, vector<8x8xbf16>, vector<8x8xf32> -> vector<8x8xf32>
    %cst_8 = arith.constant 0.353553385 : f32
    %11 = vector.broadcast %cst_8 : f32 to vector<8x8xf32>
    %12 = arith.mulf %10, %11 : vector<8x8xf32>
    %13 = vector.broadcast %6 : vector<1x8xf32> to vector<8x8xf32>
    %14 = arith.addf %12, %13 : vector<8x8xf32>
    %cst_9 = arith.constant dense<0xFF800000> : vector<8xf32>
    %15 = vector.multi_reduction <maximumf>, %14, %cst_9 [1] : vector<8x8xf32> to vector<8xf32>
    %16 = vector.shape_cast %15 : vector<8xf32> to vector<8x1xf32>
    %17 = arith.maximumf %7, %16 : vector<8x1xf32>
    %18 = arith.subf %7, %17 : vector<8x1xf32>
    %19 = math.exp %18 : vector<8x1xf32>
    %20 = vector.broadcast %17 : vector<8x1xf32> to vector<8x8xf32>
    %21 = arith.subf %14, %20 : vector<8x8xf32>
    %22 = math.exp %21 : vector<8x8xf32>
    %23 = arith.mulf %19, %8 : vector<8x1xf32>
    %cst_10 = arith.constant dense<0.000000e+00> : vector<8xf32>
    %24 = vector.multi_reduction <add>, %22, %cst_10 [1] : vector<8x8xf32> to vector<8xf32>
    %25 = vector.shape_cast %24 : vector<8xf32> to vector<8x1xf32>
    %26 = arith.addf %23, %25 : vector<8x1xf32>
    %27 = vector.broadcast %19 : vector<8x1xf32> to vector<8x8xf32>
    %28 = arith.mulf %27, %9 : vector<8x8xf32>
    %29 = arith.truncf %22 : vector<8x8xf32> to vector<8x8xbf16>
    %cst_11 = arith.constant dense<0.000000e+00> : vector<8x8xf32>
    %30 = tpu.matmul %29, %4, %cst_11 {dimension_numbers = #tpu.dot_dimension_numbers<[1], [0], [0], [1], [0, 0, 1, 1], [], []>} : vector<8x8xbf16>, vector<8x8xbf16>, vector<8x8xf32> -> vector<8x8xf32>
    %31 = arith.addf %28, %30 : vector<8x8xf32>
    %32 = vector.broadcast %26 : vector<8x1xf32> to vector<8x8xf32>
    %33 = arith.divf %31, %32 : vector<8x8xf32>
    %34 = arith.truncf %33 : vector<8x8xf32> to vector<8x8xbf16>
    %c0_12 = arith.constant 0 : index
    %c0_13 = arith.constant 0 : index
    %c0_14 = arith.constant 0 : index
    %35 = vector.load %arg4[%c0_12, %c0_13, %c0_14] : memref<1x8x8xbf16, #tpu.memory_space<vmem>>, vector<1x8x8xbf16>
    %36 = vector.shape_cast %35 : vector<1x8x8xbf16> to vector<8x8xbf16>
    %37 = vector.shape_cast %34 : vector<8x8xbf16> to vector<1x8x8xbf16>
    tpu.vector_store %arg4[%c0_12, %c0_13, %c0_14], %37 {strides = array<i32>} : memref<1x8x8xbf16, #tpu.memory_space<vmem>>, vector<1x8x8xbf16>,
    return
  }
  func.func @transform_0(%arg0: i32, %arg1: i32) -> (i32, i32, i32) {
    %c0_i32 = arith.constant 0 : i32
    %c0_i32_0 = arith.constant 0 : i32
    return %arg1, %arg0, %c0_i32 : i32, i32, i32
  }
  func.func @transform_1(%arg0: i32, %arg1: i32) -> (i32, i32, i32) {
    %c0_i32 = arith.constant 0 : i32
    %c0_i32_0 = arith.constant 0 : i32
    %c0_i32_1 = arith.constant 0 : i32
    return %arg0, %c0_i32, %c0_i32_0 : i32, i32, i32
  }
  func.func @transform_2(%arg0: i32, %arg1: i32) -> (i32, i32, i32) {
    %c0_i32 = arith.constant 0 : i32
    %c0_i32_0 = arith.constant 0 : i32
    return %arg1, %arg0, %c0_i32 : i32, i32, i32
  }
}

module attributes {stable_mosaic.version = 11 : i64} {
  func.func @_qkv_head_kernel(%arg0: i32, %arg1: i32, %arg2: memref<16x32xf32, #tpu.memory_space<vmem>>, %arg3: memref<1x32x24xbf16, #tpu.memory_space<vmem>>, %arg4: memref<1x1x24xf32, #tpu.memory_space<vmem>>, %arg5: memref<1x16x24xbf16, #tpu.memory_space<vmem>>) attributes {dimension_semantics = [#tpu.dimension_semantics<parallel>, #tpu.dimension_semantics<parallel>], iteration_bounds = array<i64: 1, 4>, scalar_prefetch = 0 : i64, scratch_operands = 0 : i64, tpu.core_type = #tpu.core_type<tc>, window_params = [{transform_indices = @transform_0, window_bounds = array<i64: 16, 32>}, {transform_indices = @transform_1, window_bounds = array<i64: 1, 32, 24>}, {transform_indices = @transform_2, window_bounds = array<i64: 1, 1, 24>}, {transform_indices = @transform_3, window_bounds = array<i64: 1, 16, 24>}]} {
    %c0 = arith.constant 0 : index
    %c0_0 = arith.constant 0 : index
    %0 = vector.load %arg2[%c0, %c0_0] : memref<16x32xf32, #tpu.memory_space<vmem>>, vector<16x32xf32>
    %1 = arith.truncf %0 : vector<16x32xf32> to vector<16x32xbf16>
    %c0_1 = arith.constant 0 : index
    %c0_2 = arith.constant 0 : index
    %c0_3 = arith.constant 0 : index
    %2 = vector.load %arg3[%c0_1, %c0_2, %c0_3] : memref<1x32x24xbf16, #tpu.memory_space<vmem>>, vector<1x32x24xbf16>
    %3 = vector.shape_cast %2 : vector<1x32x24xbf16> to vector<32x24xbf16>
    %cst = arith.constant dense<0.000000e+00> : vector<16x24xf32>
    %4 = tpu.matmul %1, %3, %cst {dimension_numbers = #tpu.dot_dimension_numbers<[1], [0], [0], [1], [0, 0, 1, 1], [], []>} : vector<16x32xbf16>, vector<32x24xbf16>, vector<16x24xf32> -> vector<16x24xf32>
    %c0_4 = arith.constant 0 : index
    %c0_5 = arith.constant 0 : index
    %c0_6 = arith.constant 0 : index
    %5 = vector.load %arg4[%c0_4, %c0_5, %c0_6] : memref<1x1x24xf32, #tpu.memory_space<vmem>>, vector<1x1x24xf32>
    %6 = vector.shape_cast %5 : vector<1x1x24xf32> to vector<1x24xf32>
    %7 = vector.broadcast %6 : vector<1x24xf32> to vector<16x24xf32>
    %8 = arith.addf %4, %7 : vector<16x24xf32>
    %9 = arith.truncf %8 : vector<16x24xf32> to vector<16x24xbf16>
    %c0_7 = arith.constant 0 : index
    %c0_8 = arith.constant 0 : index
    %c0_9 = arith.constant 0 : index
    %10 = vector.load %arg5[%c0_7, %c0_8, %c0_9] : memref<1x16x24xbf16, #tpu.memory_space<vmem>>, vector<1x16x24xbf16>
    %11 = vector.shape_cast %10 : vector<1x16x24xbf16> to vector<16x24xbf16>
    %12 = vector.shape_cast %9 : vector<16x24xbf16> to vector<1x16x24xbf16>
    tpu.vector_store %arg5[%c0_7, %c0_8, %c0_9], %12 {strides = array<i32>} : memref<1x16x24xbf16, #tpu.memory_space<vmem>>, vector<1x16x24xbf16>,
    return
  }
  func.func @transform_0(%arg0: i32, %arg1: i32) -> (i32, i32) {
    %c0_i32 = arith.constant 0 : i32
    %c0_i32_0 = arith.constant 0 : i32
    return %arg0, %c0_i32 : i32, i32
  }
  func.func @transform_1(%arg0: i32, %arg1: i32) -> (i32, i32, i32) {
    %c0_i32 = arith.constant 0 : i32
    %c0_i32_0 = arith.constant 0 : i32
    %c0_i32_1 = arith.constant 0 : i32
    return %arg1, %c0_i32, %c0_i32_0 : i32, i32, i32
  }
  func.func @transform_2(%arg0: i32, %arg1: i32) -> (i32, i32, i32) {
    %c0_i32 = arith.constant 0 : i32
    %c0_i32_0 = arith.constant 0 : i32
    %c0_i32_1 = arith.constant 0 : i32
    return %arg1, %c0_i32, %c0_i32_0 : i32, i32, i32
  }
  func.func @transform_3(%arg0: i32, %arg1: i32) -> (i32, i32, i32) {
    %c0_i32 = arith.constant 0 : i32
    %c0_i32_0 = arith.constant 0 : i32
    return %arg1, %arg0, %c0_i32 : i32, i32, i32
  }
}

module attributes {stable_mosaic.version = 11 : i64} {
  func.func @_ctx_proj_res_ln_kernel(%arg0: i32, %arg1: i32, %arg2: memref<1x16x8xbf16, #tpu.memory_space<vmem>>, %arg3: memref<16x32xf32, #tpu.memory_space<vmem>>, %arg4: memref<1x8x32xbf16, #tpu.memory_space<vmem>>, %arg5: memref<1x32xf32, #tpu.memory_space<vmem>>, %arg6: memref<1x32xf32, #tpu.memory_space<vmem>>, %arg7: memref<1x32xf32, #tpu.memory_space<vmem>>, %arg8: memref<16x32xf32, #tpu.memory_space<vmem>>, %arg9: memref<16x32xf32, #tpu.memory_space<vmem>>) attributes {dimension_semantics = [#tpu.dimension_semantics<parallel>, #tpu.dimension_semantics<arbitrary>], iteration_bounds = array<i64: 1, 4>, scalar_prefetch = 0 : i64, scratch_operands = 1 : i64, tpu.core_type = #tpu.core_type<tc>, window_params = [{transform_indices = @transform_0, window_bounds = array<i64: 1, 16, 8>}, {transform_indices = @transform_1, window_bounds = array<i64: 16, 32>}, {transform_indices = @transform_2, window_bounds = array<i64: 1, 8, 32>}, {pipeline_mode = #tpu.pipeline_mode<synchronous>, transform_indices = @transform_3, window_bounds = array<i64: 1, 32>}, {pipeline_mode = #tpu.pipeline_mode<synchronous>, transform_indices = @transform_4, window_bounds = array<i64: 1, 32>}, {pipeline_mode = #tpu.pipeline_mode<synchronous>, transform_indices = @transform_5, window_bounds = array<i64: 1, 32>}, {transform_indices = @transform_6, window_bounds = array<i64: 16, 32>}]} {
    %c0_i32 = arith.constant 0 : i32
    %0 = arith.cmpi eq, %arg1, %c0_i32 : i32
    %1 = arith.extui %0 : i1 to i32
    %c0_i32_0 = arith.constant 0 : i32
    %2 = arith.cmpi ne, %1, %c0_i32_0 : i32
    scf.if %2 {
      %cst_11 = arith.constant 0.000000e+00 : f32
      %14 = vector.broadcast %cst_11 : f32 to vector<16x32xf32>
      %c0_12 = arith.constant 0 : index
      %c0_13 = arith.constant 0 : index
      %15 = vector.load %arg9[%c0_12, %c0_13] : memref<16x32xf32, #tpu.memory_space<vmem>>, vector<16x32xf32>
      tpu.vector_store %arg9[%c0_12, %c0_13], %14 {strides = array<i32>} : memref<16x32xf32, #tpu.memory_space<vmem>>, vector<16x32xf32>,
    } else {
    }
    %c0 = arith.constant 0 : index
    %c0_1 = arith.constant 0 : index
    %3 = vector.load %arg9[%c0, %c0_1] : memref<16x32xf32, #tpu.memory_space<vmem>>, vector<16x32xf32>
    %c0_2 = arith.constant 0 : index
    %c0_3 = arith.constant 0 : index
    %c0_4 = arith.constant 0 : index
    %4 = vector.load %arg2[%c0_2, %c0_3, %c0_4] : memref<1x16x8xbf16, #tpu.memory_space<vmem>>, vector<1x16x8xbf16>
    %5 = vector.shape_cast %4 : vector<1x16x8xbf16> to vector<16x8xbf16>
    %c0_5 = arith.constant 0 : index
    %c0_6 = arith.constant 0 : index
    %c0_7 = arith.constant 0 : index
    %6 = vector.load %arg4[%c0_5, %c0_6, %c0_7] : memref<1x8x32xbf16, #tpu.memory_space<vmem>>, vector<1x8x32xbf16>
    %7 = vector.shape_cast %6 : vector<1x8x32xbf16> to vector<8x32xbf16>
    %cst = arith.constant dense<0.000000e+00> : vector<16x32xf32>
    %8 = tpu.matmul %5, %7, %cst {dimension_numbers = #tpu.dot_dimension_numbers<[1], [0], [0], [1], [0, 0, 1, 1], [], []>} : vector<16x8xbf16>, vector<8x32xbf16>, vector<16x32xf32> -> vector<16x32xf32>
    %9 = arith.addf %3, %8 : vector<16x32xf32>
    %c0_8 = arith.constant 0 : index
    %c0_9 = arith.constant 0 : index
    %10 = vector.load %arg9[%c0_8, %c0_9] : memref<16x32xf32, #tpu.memory_space<vmem>>, vector<16x32xf32>
    tpu.vector_store %arg9[%c0_8, %c0_9], %9 {strides = array<i32>} : memref<16x32xf32, #tpu.memory_space<vmem>>, vector<16x32xf32>,
    %c3_i32 = arith.constant 3 : i32
    %11 = arith.cmpi eq, %arg1, %c3_i32 : i32
    %12 = arith.extui %11 : i1 to i32
    %c0_i32_10 = arith.constant 0 : i32
    %13 = arith.cmpi ne, %12, %c0_i32_10 : i32
    scf.if %13 {
      %c0_11 = arith.constant 0 : index
      %c0_12 = arith.constant 0 : index
      %14 = vector.load %arg9[%c0_11, %c0_12] : memref<16x32xf32, #tpu.memory_space<vmem>>, vector<16x32xf32>
      %c0_13 = arith.constant 0 : index
      %c0_14 = arith.constant 0 : index
      %15 = vector.load %arg5[%c0_13, %c0_14] : memref<1x32xf32, #tpu.memory_space<vmem>>, vector<1x32xf32>
      %16 = vector.broadcast %15 : vector<1x32xf32> to vector<16x32xf32>
      %17 = arith.addf %14, %16 : vector<16x32xf32>
      %c0_15 = arith.constant 0 : index
      %c0_16 = arith.constant 0 : index
      %18 = vector.load %arg3[%c0_15, %c0_16] : memref<16x32xf32, #tpu.memory_space<vmem>>, vector<16x32xf32>
      %19 = arith.addf %17, %18 : vector<16x32xf32>
      %cst_17 = arith.constant dense<0.000000e+00> : vector<16xf32>
      %20 = vector.multi_reduction <add>, %19, %cst_17 [1] : vector<16x32xf32> to vector<16xf32>
      %21 = vector.shape_cast %20 : vector<16xf32> to vector<16x1xf32>
      %cst_18 = arith.constant 3.200000e+01 : f32
      %22 = vector.broadcast %cst_18 : f32 to vector<16x1xf32>
      %23 = arith.divf %21, %22 : vector<16x1xf32>
      %24 = vector.broadcast %23 : vector<16x1xf32> to vector<16x32xf32>
      %25 = arith.subf %19, %24 : vector<16x32xf32>
      %26 = arith.mulf %25, %25 : vector<16x32xf32>
      %cst_19 = arith.constant dense<0.000000e+00> : vector<16xf32>
      %27 = vector.multi_reduction <add>, %26, %cst_19 [1] : vector<16x32xf32> to vector<16xf32>
      %28 = vector.shape_cast %27 : vector<16xf32> to vector<16x1xf32>
      %cst_20 = arith.constant 3.200000e+01 : f32
      %29 = vector.broadcast %cst_20 : f32 to vector<16x1xf32>
      %30 = arith.divf %28, %29 : vector<16x1xf32>
      %31 = vector.broadcast %23 : vector<16x1xf32> to vector<16x32xf32>
      %32 = arith.subf %19, %31 : vector<16x32xf32>
      %cst_21 = arith.constant 9.99999996E-13 : f32
      %33 = vector.broadcast %cst_21 : f32 to vector<16x1xf32>
      %34 = arith.addf %30, %33 : vector<16x1xf32>
      %35 = math.rsqrt %34 : vector<16x1xf32>
      %36 = vector.broadcast %35 : vector<16x1xf32> to vector<16x32xf32>
      %37 = arith.mulf %32, %36 : vector<16x32xf32>
      %c0_22 = arith.constant 0 : index
      %c0_23 = arith.constant 0 : index
      %38 = vector.load %arg6[%c0_22, %c0_23] : memref<1x32xf32, #tpu.memory_space<vmem>>, vector<1x32xf32>
      %39 = vector.broadcast %38 : vector<1x32xf32> to vector<16x32xf32>
      %40 = arith.mulf %37, %39 : vector<16x32xf32>
      %c0_24 = arith.constant 0 : index
      %c0_25 = arith.constant 0 : index
      %41 = vector.load %arg7[%c0_24, %c0_25] : memref<1x32xf32, #tpu.memory_space<vmem>>, vector<1x32xf32>
      %42 = vector.broadcast %41 : vector<1x32xf32> to vector<16x32xf32>
      %43 = arith.addf %40, %42 : vector<16x32xf32>
      %c0_26 = arith.constant 0 : index
      %c0_27 = arith.constant 0 : index
      %44 = vector.load %arg8[%c0_26, %c0_27] : memref<16x32xf32, #tpu.memory_space<vmem>>, vector<16x32xf32>
      tpu.vector_store %arg8[%c0_26, %c0_27], %43 {strides = array<i32>} : memref<16x32xf32, #tpu.memory_space<vmem>>, vector<16x32xf32>,
    } else {
    }
    return
  }
  func.func @transform_0(%arg0: i32, %arg1: i32) -> (i32, i32, i32) {
    %c0_i32 = arith.constant 0 : i32
    %c0_i32_0 = arith.constant 0 : i32
    return %arg1, %arg0, %c0_i32 : i32, i32, i32
  }
  func.func @transform_1(%arg0: i32, %arg1: i32) -> (i32, i32) {
    %c0_i32 = arith.constant 0 : i32
    %c0_i32_0 = arith.constant 0 : i32
    return %arg0, %c0_i32 : i32, i32
  }
  func.func @transform_2(%arg0: i32, %arg1: i32) -> (i32, i32, i32) {
    %c0_i32 = arith.constant 0 : i32
    %c0_i32_0 = arith.constant 0 : i32
    %c0_i32_1 = arith.constant 0 : i32
    return %arg1, %c0_i32, %c0_i32_0 : i32, i32, i32
  }
  func.func @transform_3(%arg0: i32, %arg1: i32) -> (i32, i32) {
    %c0_i32 = arith.constant 0 : i32
    %c0_i32_0 = arith.constant 0 : i32
    %c0_i32_1 = arith.constant 0 : i32
    return %c0_i32, %c0_i32_0 : i32, i32
  }
  func.func @transform_4(%arg0: i32, %arg1: i32) -> (i32, i32) {
    %c0_i32 = arith.constant 0 : i32
    %c0_i32_0 = arith.constant 0 : i32
    %c0_i32_1 = arith.constant 0 : i32
    return %c0_i32, %c0_i32_0 : i32, i32
  }
  func.func @transform_5(%arg0: i32, %arg1: i32) -> (i32, i32) {
    %c0_i32 = arith.constant 0 : i32
    %c0_i32_0 = arith.constant 0 : i32
    %c0_i32_1 = arith.constant 0 : i32
    return %c0_i32, %c0_i32_0 : i32, i32
  }
  func.func @transform_6(%arg0: i32, %arg1: i32) -> (i32, i32) {
    %c0_i32 = arith.constant 0 : i32
    %c0_i32_0 = arith.constant 0 : i32
    return %arg0, %c0_i32 : i32, i32
  }
}

module attributes {stable_mosaic.version = 11 : i64} {
  func.func @_ffn_res_ln_kernel(%arg0: i32, %arg1: i32, %arg2: memref<16x32xf32, #tpu.memory_space<vmem>>, %arg3: memref<32x64xbf16, #tpu.memory_space<vmem>>, %arg4: memref<1x64xf32, #tpu.memory_space<vmem>>, %arg5: memref<64x32xbf16, #tpu.memory_space<vmem>>, %arg6: memref<1x32xf32, #tpu.memory_space<vmem>>, %arg7: memref<1x32xf32, #tpu.memory_space<vmem>>, %arg8: memref<1x32xf32, #tpu.memory_space<vmem>>, %arg9: memref<16x32xf32, #tpu.memory_space<vmem>>, %arg10: memref<16x32xf32, #tpu.memory_space<vmem>>) attributes {dimension_semantics = [#tpu.dimension_semantics<parallel>, #tpu.dimension_semantics<arbitrary>], iteration_bounds = array<i64: 1, 1>, scalar_prefetch = 0 : i64, scratch_operands = 1 : i64, tpu.core_type = #tpu.core_type<tc>, window_params = [{transform_indices = @transform_0, window_bounds = array<i64: 16, 32>}, {transform_indices = @transform_1, window_bounds = array<i64: 32, 64>}, {transform_indices = @transform_2, window_bounds = array<i64: 1, 64>}, {transform_indices = @transform_3, window_bounds = array<i64: 64, 32>}, {pipeline_mode = #tpu.pipeline_mode<synchronous>, transform_indices = @transform_4, window_bounds = array<i64: 1, 32>}, {pipeline_mode = #tpu.pipeline_mode<synchronous>, transform_indices = @transform_5, window_bounds = array<i64: 1, 32>}, {pipeline_mode = #tpu.pipeline_mode<synchronous>, transform_indices = @transform_6, window_bounds = array<i64: 1, 32>}, {transform_indices = @transform_7, window_bounds = array<i64: 16, 32>}]} {
    %c0_i32 = arith.constant 0 : i32
    %0 = arith.cmpi eq, %arg1, %c0_i32 : i32
    %1 = arith.extui %0 : i1 to i32
    %c0_i32_0 = arith.constant 0 : i32
    %2 = arith.cmpi ne, %1, %c0_i32_0 : i32
    scf.if %2 {
      %cst_19 = arith.constant 0.000000e+00 : f32
      %32 = vector.broadcast %cst_19 : f32 to vector<16x32xf32>
      %c0_20 = arith.constant 0 : index
      %c0_21 = arith.constant 0 : index
      %33 = vector.load %arg10[%c0_20, %c0_21] : memref<16x32xf32, #tpu.memory_space<vmem>>, vector<16x32xf32>
      tpu.vector_store %arg10[%c0_20, %c0_21], %32 {strides = array<i32>} : memref<16x32xf32, #tpu.memory_space<vmem>>, vector<16x32xf32>,
    } else {
    }
    %c0 = arith.constant 0 : index
    %c0_1 = arith.constant 0 : index
    %3 = vector.load %arg2[%c0, %c0_1] : memref<16x32xf32, #tpu.memory_space<vmem>>, vector<16x32xf32>
    %4 = arith.truncf %3 : vector<16x32xf32> to vector<16x32xbf16>
    %c0_2 = arith.constant 0 : index
    %c0_3 = arith.constant 0 : index
    %5 = vector.load %arg3[%c0_2, %c0_3] : memref<32x64xbf16, #tpu.memory_space<vmem>>, vector<32x64xbf16>
    %cst = arith.constant dense<0.000000e+00> : vector<16x64xf32>
    %6 = tpu.matmul %4, %5, %cst {dimension_numbers = #tpu.dot_dimension_numbers<[1], [0], [0], [1], [0, 0, 1, 1], [], []>} : vector<16x32xbf16>, vector<32x64xbf16>, vector<16x64xf32> -> vector<16x64xf32>
    %c0_4 = arith.constant 0 : index
    %c0_5 = arith.constant 0 : index
    %7 = vector.load %arg4[%c0_4, %c0_5] : memref<1x64xf32, #tpu.memory_space<vmem>>, vector<1x64xf32>
    %8 = vector.broadcast %7 : vector<1x64xf32> to vector<16x64xf32>
    %9 = arith.addf %6, %8 : vector<16x64xf32>
    %10 = arith.mulf %9, %9 : vector<16x64xf32>
    %11 = arith.mulf %9, %10 : vector<16x64xf32>
    %cst_6 = arith.constant 4.471500e-02 : f32
    %12 = vector.broadcast %cst_6 : f32 to vector<16x64xf32>
    %13 = arith.mulf %12, %11 : vector<16x64xf32>
    %14 = arith.addf %9, %13 : vector<16x64xf32>
    %cst_7 = arith.constant 0.797884583 : f32
    %15 = vector.broadcast %cst_7 : f32 to vector<16x64xf32>
    %16 = arith.mulf %15, %14 : vector<16x64xf32>
    %17 = math.tanh %16 : vector<16x64xf32>
    %cst_8 = arith.constant 1.000000e+00 : f32
    %18 = vector.broadcast %cst_8 : f32 to vector<16x64xf32>
    %19 = arith.addf %18, %17 : vector<16x64xf32>
    %cst_9 = arith.constant 5.000000e-01 : f32
    %20 = vector.broadcast %cst_9 : f32 to vector<16x64xf32>
    %21 = arith.mulf %20, %19 : vector<16x64xf32>
    %22 = arith.mulf %9, %21 : vector<16x64xf32>
    %c0_10 = arith.constant 0 : index
    %c0_11 = arith.constant 0 : index
    %23 = vector.load %arg10[%c0_10, %c0_11] : memref<16x32xf32, #tpu.memory_space<vmem>>, vector<16x32xf32>
    %24 = arith.truncf %22 : vector<16x64xf32> to vector<16x64xbf16>
    %c0_12 = arith.constant 0 : index
    %c0_13 = arith.constant 0 : index
    %25 = vector.load %arg5[%c0_12, %c0_13] : memref<64x32xbf16, #tpu.memory_space<vmem>>, vector<64x32xbf16>
    %cst_14 = arith.constant dense<0.000000e+00> : vector<16x32xf32>
    %26 = tpu.matmul %24, %25, %cst_14 {dimension_numbers = #tpu.dot_dimension_numbers<[1], [0], [0], [1], [0, 0, 1, 1], [], []>} : vector<16x64xbf16>, vector<64x32xbf16>, vector<16x32xf32> -> vector<16x32xf32>
    %27 = arith.addf %23, %26 : vector<16x32xf32>
    %c0_15 = arith.constant 0 : index
    %c0_16 = arith.constant 0 : index
    %28 = vector.load %arg10[%c0_15, %c0_16] : memref<16x32xf32, #tpu.memory_space<vmem>>, vector<16x32xf32>
    tpu.vector_store %arg10[%c0_15, %c0_16], %27 {strides = array<i32>} : memref<16x32xf32, #tpu.memory_space<vmem>>, vector<16x32xf32>,
    %c0_i32_17 = arith.constant 0 : i32
    %29 = arith.cmpi eq, %arg1, %c0_i32_17 : i32
    %30 = arith.extui %29 : i1 to i32
    %c0_i32_18 = arith.constant 0 : i32
    %31 = arith.cmpi ne, %30, %c0_i32_18 : i32
    scf.if %31 {
      %c0_19 = arith.constant 0 : index
      %c0_20 = arith.constant 0 : index
      %32 = vector.load %arg10[%c0_19, %c0_20] : memref<16x32xf32, #tpu.memory_space<vmem>>, vector<16x32xf32>
      %c0_21 = arith.constant 0 : index
      %c0_22 = arith.constant 0 : index
      %33 = vector.load %arg6[%c0_21, %c0_22] : memref<1x32xf32, #tpu.memory_space<vmem>>, vector<1x32xf32>
      %34 = vector.broadcast %33 : vector<1x32xf32> to vector<16x32xf32>
      %35 = arith.addf %32, %34 : vector<16x32xf32>
      %36 = arith.addf %35, %3 : vector<16x32xf32>
      %cst_23 = arith.constant dense<0.000000e+00> : vector<16xf32>
      %37 = vector.multi_reduction <add>, %36, %cst_23 [1] : vector<16x32xf32> to vector<16xf32>
      %38 = vector.shape_cast %37 : vector<16xf32> to vector<16x1xf32>
      %cst_24 = arith.constant 3.200000e+01 : f32
      %39 = vector.broadcast %cst_24 : f32 to vector<16x1xf32>
      %40 = arith.divf %38, %39 : vector<16x1xf32>
      %41 = vector.broadcast %40 : vector<16x1xf32> to vector<16x32xf32>
      %42 = arith.subf %36, %41 : vector<16x32xf32>
      %43 = arith.mulf %42, %42 : vector<16x32xf32>
      %cst_25 = arith.constant dense<0.000000e+00> : vector<16xf32>
      %44 = vector.multi_reduction <add>, %43, %cst_25 [1] : vector<16x32xf32> to vector<16xf32>
      %45 = vector.shape_cast %44 : vector<16xf32> to vector<16x1xf32>
      %cst_26 = arith.constant 3.200000e+01 : f32
      %46 = vector.broadcast %cst_26 : f32 to vector<16x1xf32>
      %47 = arith.divf %45, %46 : vector<16x1xf32>
      %48 = vector.broadcast %40 : vector<16x1xf32> to vector<16x32xf32>
      %49 = arith.subf %36, %48 : vector<16x32xf32>
      %cst_27 = arith.constant 9.99999996E-13 : f32
      %50 = vector.broadcast %cst_27 : f32 to vector<16x1xf32>
      %51 = arith.addf %47, %50 : vector<16x1xf32>
      %52 = math.rsqrt %51 : vector<16x1xf32>
      %53 = vector.broadcast %52 : vector<16x1xf32> to vector<16x32xf32>
      %54 = arith.mulf %49, %53 : vector<16x32xf32>
      %c0_28 = arith.constant 0 : index
      %c0_29 = arith.constant 0 : index
      %55 = vector.load %arg7[%c0_28, %c0_29] : memref<1x32xf32, #tpu.memory_space<vmem>>, vector<1x32xf32>
      %56 = vector.broadcast %55 : vector<1x32xf32> to vector<16x32xf32>
      %57 = arith.mulf %54, %56 : vector<16x32xf32>
      %c0_30 = arith.constant 0 : index
      %c0_31 = arith.constant 0 : index
      %58 = vector.load %arg8[%c0_30, %c0_31] : memref<1x32xf32, #tpu.memory_space<vmem>>, vector<1x32xf32>
      %59 = vector.broadcast %58 : vector<1x32xf32> to vector<16x32xf32>
      %60 = arith.addf %57, %59 : vector<16x32xf32>
      %c0_32 = arith.constant 0 : index
      %c0_33 = arith.constant 0 : index
      %61 = vector.load %arg9[%c0_32, %c0_33] : memref<16x32xf32, #tpu.memory_space<vmem>>, vector<16x32xf32>
      tpu.vector_store %arg9[%c0_32, %c0_33], %60 {strides = array<i32>} : memref<16x32xf32, #tpu.memory_space<vmem>>, vector<16x32xf32>,
    } else {
    }
    return
  }
  func.func @transform_0(%arg0: i32, %arg1: i32) -> (i32, i32) {
    %c0_i32 = arith.constant 0 : i32
    %c0_i32_0 = arith.constant 0 : i32
    return %arg0, %c0_i32 : i32, i32
  }
  func.func @transform_1(%arg0: i32, %arg1: i32) -> (i32, i32) {
    %c0_i32 = arith.constant 0 : i32
    %c0_i32_0 = arith.constant 0 : i32
    return %c0_i32, %arg1 : i32, i32
  }
  func.func @transform_2(%arg0: i32, %arg1: i32) -> (i32, i32) {
    %c0_i32 = arith.constant 0 : i32
    %c0_i32_0 = arith.constant 0 : i32
    return %c0_i32, %arg1 : i32, i32
  }
  func.func @transform_3(%arg0: i32, %arg1: i32) -> (i32, i32) {
    %c0_i32 = arith.constant 0 : i32
    %c0_i32_0 = arith.constant 0 : i32
    return %arg1, %c0_i32 : i32, i32
  }
  func.func @transform_4(%arg0: i32, %arg1: i32) -> (i32, i32) {
    %c0_i32 = arith.constant 0 : i32
    %c0_i32_0 = arith.constant 0 : i32
    %c0_i32_1 = arith.constant 0 : i32
    return %c0_i32, %c0_i32_0 : i32, i32
  }
  func.func @transform_5(%arg0: i32, %arg1: i32) -> (i32, i32) {
    %c0_i32 = arith.constant 0 : i32
    %c0_i32_0 = arith.constant 0 : i32
    %c0_i32_1 = arith.constant 0 : i32
    return %c0_i32, %c0_i32_0 : i32, i32
  }
  func.func @transform_6(%arg0: i32, %arg1: i32) -> (i32, i32) {
    %c0_i32 = arith.constant 0 : i32
    %c0_i32_0 = arith.constant 0 : i32
    %c0_i32_1 = arith.constant 0 : i32
    return %c0_i32, %c0_i32_0 : i32, i32
  }
  func.func @transform_7(%arg0: i32, %arg1: i32) -> (i32, i32) {
    %c0_i32 = arith.constant 0 : i32
    %c0_i32_0 = arith.constant 0 : i32
    return %arg0, %c0_i32 : i32, i32
  }
}

module attributes {stable_mosaic.version = 11 : i64} {
  func.func @_matmul_kernel(%arg0: i32, %arg1: i32, %arg2: memref<16x32xf32, #tpu.memory_space<vmem>>, %arg3: memref<32x64xbf16, #tpu.memory_space<vmem>>, %arg4: memref<16x64xf32, #tpu.memory_space<vmem>>) attributes {dimension_semantics = [#tpu.dimension_semantics<parallel>, #tpu.dimension_semantics<parallel>], iteration_bounds = array<i64: 1, 1>, scalar_prefetch = 0 : i64, scratch_operands = 0 : i64, tpu.core_type = #tpu.core_type<tc>, window_params = [{transform_indices = @transform_0, window_bounds = array<i64: 16, 32>}, {transform_indices = @transform_1, window_bounds = array<i64: 32, 64>}, {transform_indices = @transform_2, window_bounds = array<i64: 16, 64>}]} {
    %c0 = arith.constant 0 : index
    %c0_0 = arith.constant 0 : index
    %0 = vector.load %arg2[%c0, %c0_0] : memref<16x32xf32, #tpu.memory_space<vmem>>, vector<16x32xf32>
    %1 = arith.truncf %0 : vector<16x32xf32> to vector<16x32xbf16>
    %c0_1 = arith.constant 0 : index
    %c0_2 = arith.constant 0 : index
    %2 = vector.load %arg3[%c0_1, %c0_2] : memref<32x64xbf16, #tpu.memory_space<vmem>>, vector<32x64xbf16>
    %cst = arith.constant dense<0.000000e+00> : vector<16x64xf32>
    %3 = tpu.matmul %1, %2, %cst {dimension_numbers = #tpu.dot_dimension_numbers<[1], [0], [0], [1], [0, 0, 1, 1], [], []>} : vector<16x32xbf16>, vector<32x64xbf16>, vector<16x64xf32> -> vector<16x64xf32>
    %c0_3 = arith.constant 0 : index
    %c0_4 = arith.constant 0 : index
    %4 = vector.load %arg4[%c0_3, %c0_4] : memref<16x64xf32, #tpu.memory_space<vmem>>, vector<16x64xf32>
    tpu.vector_store %arg4[%c0_3, %c0_4], %3 {strides = array<i32>} : memref<16x64xf32, #tpu.memory_space<vmem>>, vector<16x64xf32>,
    return
  }
  func.func @transform_0(%arg0: i32, %arg1: i32) -> (i32, i32) {
    %c0_i32 = arith.constant 0 : i32
    %c0_i32_0 = arith.constant 0 : i32
    return %arg0, %c0_i32 : i32, i32
  }
  func.func @transform_1(%arg0: i32, %arg1: i32) -> (i32, i32) {
    %c0_i32 = arith.constant 0 : i32
    %c0_i32_0 = arith.constant 0 : i32
    return %c0_i32, %arg1 : i32, i32
  }
  func.func @transform_2(%arg0: i32, %arg1: i32) -> (i32, i32) {
    %c0_i32 = arith.constant 0 : i32
    return %arg0, %arg1 : i32, i32
  }
}

module attributes {stable_mosaic.version = 11 : i64} {
  func.func @_ffn_res_ln_kernel(%arg0: i32, %arg1: i32, %arg2: memref<16x32xf32, #tpu.memory_space<vmem>>, %arg3: memref<32x64xbf16, #tpu.memory_space<vmem>>, %arg4: memref<1x64xf32, #tpu.memory_space<vmem>>, %arg5: memref<64x32xbf16, #tpu.memory_space<vmem>>, %arg6: memref<1x32xf32, #tpu.memory_space<vmem>>, %arg7: memref<1x32xf32, #tpu.memory_space<vmem>>, %arg8: memref<1x32xf32, #tpu.memory_space<vmem>>, %arg9: memref<16x32xf32, #tpu.memory_space<vmem>>, %arg10: memref<16x32xf32, #tpu.memory_space<vmem>>) attributes {dimension_semantics = [#tpu.dimension_semantics<parallel>, #tpu.dimension_semantics<arbitrary>], iteration_bounds = array<i64: 1, 1>, scalar_prefetch = 0 : i64, scratch_operands = 1 : i64, tpu.core_type = #tpu.core_type<tc>, window_params = [{transform_indices = @transform_0, window_bounds = array<i64: 16, 32>}, {transform_indices = @transform_1, window_bounds = array<i64: 32, 64>}, {transform_indices = @transform_2, window_bounds = array<i64: 1, 64>}, {transform_indices = @transform_3, window_bounds = array<i64: 64, 32>}, {pipeline_mode = #tpu.pipeline_mode<synchronous>, transform_indices = @transform_4, window_bounds = array<i64: 1, 32>}, {pipeline_mode = #tpu.pipeline_mode<synchronous>, transform_indices = @transform_5, window_bounds = array<i64: 1, 32>}, {pipeline_mode = #tpu.pipeline_mode<synchronous>, transform_indices = @transform_6, window_bounds = array<i64: 1, 32>}, {transform_indices = @transform_7, window_bounds = array<i64: 16, 32>}]} {
    %c0_i32 = arith.constant 0 : i32
    %0 = arith.cmpi eq, %arg1, %c0_i32 : i32
    %1 = arith.extui %0 : i1 to i32
    %c0_i32_0 = arith.constant 0 : i32
    %2 = arith.cmpi ne, %1, %c0_i32_0 : i32
    scf.if %2 {
      %cst_19 = arith.constant 0.000000e+00 : f32
      %32 = vector.broadcast %cst_19 : f32 to vector<16x32xf32>
      %c0_20 = arith.constant 0 : index
      %c0_21 = arith.constant 0 : index
      %33 = vector.load %arg10[%c0_20, %c0_21] : memref<16x32xf32, #tpu.memory_space<vmem>>, vector<16x32xf32>
      tpu.vector_store %arg10[%c0_20, %c0_21], %32 {strides = array<i32>} : memref<16x32xf32, #tpu.memory_space<vmem>>, vector<16x32xf32>,
    } else {
    }
    %c0 = arith.constant 0 : index
    %c0_1 = arith.constant 0 : index
    %3 = vector.load %arg2[%c0, %c0_1] : memref<16x32xf32, #tpu.memory_space<vmem>>, vector<16x32xf32>
    %4 = arith.truncf %3 : vector<16x32xf32> to vector<16x32xbf16>
    %c0_2 = arith.constant 0 : index
    %c0_3 = arith.constant 0 : index
    %5 = vector.load %arg3[%c0_2, %c0_3] : memref<32x64xbf16, #tpu.memory_space<vmem>>, vector<32x64xbf16>
    %cst = arith.constant dense<0.000000e+00> : vector<16x64xf32>
    %6 = tpu.matmul %4, %5, %cst {dimension_numbers = #tpu.dot_dimension_numbers<[1], [0], [0], [1], [0, 0, 1, 1], [], []>} : vector<16x32xbf16>, vector<32x64xbf16>, vector<16x64xf32> -> vector<16x64xf32>
    %c0_4 = arith.constant 0 : index
    %c0_5 = arith.constant 0 : index
    %7 = vector.load %arg4[%c0_4, %c0_5] : memref<1x64xf32, #tpu.memory_space<vmem>>, vector<1x64xf32>
    %8 = vector.broadcast %7 : vector<1x64xf32> to vector<16x64xf32>
    %9 = arith.addf %6, %8 : vector<16x64xf32>
    %10 = arith.mulf %9, %9 : vector<16x64xf32>
    %11 = arith.mulf %9, %10 : vector<16x64xf32>
    %cst_6 = arith.constant 4.471500e-02 : f32
    %12 = vector.broadcast %cst_6 : f32 to vector<16x64xf32>
    %13 = arith.mulf %12, %11 : vector<16x64xf32>
    %14 = arith.addf %9, %13 : vector<16x64xf32>
    %cst_7 = arith.constant 0.797884583 : f32
    %15 = vector.broadcast %cst_7 : f32 to vector<16x64xf32>
    %16 = arith.mulf %15, %14 : vector<16x64xf32>
    %17 = math.tanh %16 : vector<16x64xf32>
    %cst_8 = arith.constant 1.000000e+00 : f32
    %18 = vector.broadcast %cst_8 : f32 to vector<16x64xf32>
    %19 = arith.addf %18, %17 : vector<16x64xf32>
    %cst_9 = arith.constant 5.000000e-01 : f32
    %20 = vector.broadcast %cst_9 : f32 to vector<16x64xf32>
    %21 = arith.mulf %20, %19 : vector<16x64xf32>
    %22 = arith.mulf %9, %21 : vector<16x64xf32>
    %c0_10 = arith.constant 0 : index
    %c0_11 = arith.constant 0 : index
    %23 = vector.load %arg10[%c0_10, %c0_11] : memref<16x32xf32, #tpu.memory_space<vmem>>, vector<16x32xf32>
    %24 = arith.truncf %22 : vector<16x64xf32> to vector<16x64xbf16>
    %c0_12 = arith.constant 0 : index
    %c0_13 = arith.constant 0 : index
    %25 = vector.load %arg5[%c0_12, %c0_13] : memref<64x32xbf16, #tpu.memory_space<vmem>>, vector<64x32xbf16>
    %cst_14 = arith.constant dense<0.000000e+00> : vector<16x32xf32>
    %26 = tpu.matmul %24, %25, %cst_14 {dimension_numbers = #tpu.dot_dimension_numbers<[1], [0], [0], [1], [0, 0, 1, 1], [], []>} : vector<16x64xbf16>, vector<64x32xbf16>, vector<16x32xf32> -> vector<16x32xf32>
    %27 = arith.addf %23, %26 : vector<16x32xf32>
    %c0_15 = arith.constant 0 : index
    %c0_16 = arith.constant 0 : index
    %28 = vector.load %arg10[%c0_15, %c0_16] : memref<16x32xf32, #tpu.memory_space<vmem>>, vector<16x32xf32>
    tpu.vector_store %arg10[%c0_15, %c0_16], %27 {strides = array<i32>} : memref<16x32xf32, #tpu.memory_space<vmem>>, vector<16x32xf32>,
    %c0_i32_17 = arith.constant 0 : i32
    %29 = arith.cmpi eq, %arg1, %c0_i32_17 : i32
    %30 = arith.extui %29 : i1 to i32
    %c0_i32_18 = arith.constant 0 : i32
    %31 = arith.cmpi ne, %30, %c0_i32_18 : i32
    scf.if %31 {
      %c0_19 = arith.constant 0 : index
      %c0_20 = arith.constant 0 : index
      %32 = vector.load %arg10[%c0_19, %c0_20] : memref<16x32xf32, #tpu.memory_space<vmem>>, vector<16x32xf32>
      %c0_21 = arith.constant 0 : index
      %c0_22 = arith.constant 0 : index
      %33 = vector.load %arg6[%c0_21, %c0_22] : memref<1x32xf32, #tpu.memory_space<vmem>>, vector<1x32xf32>
      %34 = vector.broadcast %33 : vector<1x32xf32> to vector<16x32xf32>
      %35 = arith.addf %32, %34 : vector<16x32xf32>
      %36 = arith.addf %35, %3 : vector<16x32xf32>
      %cst_23 = arith.constant dense<0.000000e+00> : vector<16xf32>
      %37 = vector.multi_reduction <add>, %36, %cst_23 [1] : vector<16x32xf32> to vector<16xf32>
      %38 = vector.shape_cast %37 : vector<16xf32> to vector<16x1xf32>
      %cst_24 = arith.constant 3.200000e+01 : f32
      %39 = vector.broadcast %cst_24 : f32 to vector<16x1xf32>
      %40 = arith.divf %38, %39 : vector<16x1xf32>
      %41 = vector.broadcast %40 : vector<16x1xf32> to vector<16x32xf32>
      %42 = arith.subf %36, %41 : vector<16x32xf32>
      %43 = arith.mulf %42, %42 : vector<16x32xf32>
      %cst_25 = arith.constant dense<0.000000e+00> : vector<16xf32>
      %44 = vector.multi_reduction <add>, %43, %cst_25 [1] : vector<16x32xf32> to vector<16xf32>
      %45 = vector.shape_cast %44 : vector<16xf32> to vector<16x1xf32>
      %cst_26 = arith.constant 3.200000e+01 : f32
      %46 = vector.broadcast %cst_26 : f32 to vector<16x1xf32>
      %47 = arith.divf %45, %46 : vector<16x1xf32>
      %48 = vector.broadcast %40 : vector<16x1xf32> to vector<16x32xf32>
      %49 = arith.subf %36, %48 : vector<16x32xf32>
      %cst_27 = arith.constant 9.99999996E-13 : f32
      %50 = vector.broadcast %cst_27 : f32 to vector<16x1xf32>
      %51 = arith.addf %47, %50 : vector<16x1xf32>
      %52 = math.rsqrt %51 : vector<16x1xf32>
      %53 = vector.broadcast %52 : vector<16x1xf32> to vector<16x32xf32>
      %54 = arith.mulf %49, %53 : vector<16x32xf32>
      %c0_28 = arith.constant 0 : index
      %c0_29 = arith.constant 0 : index
      %55 = vector.load %arg7[%c0_28, %c0_29] : memref<1x32xf32, #tpu.memory_space<vmem>>, vector<1x32xf32>
      %56 = vector.broadcast %55 : vector<1x32xf32> to vector<16x32xf32>
      %57 = arith.mulf %54, %56 : vector<16x32xf32>
      %c0_30 = arith.constant 0 : index
      %c0_31 = arith.constant 0 : index
      %58 = vector.load %arg8[%c0_30, %c0_31] : memref<1x32xf32, #tpu.memory_space<vmem>>, vector<1x32xf32>
      %59 = vector.broadcast %58 : vector<1x32xf32> to vector<16x32xf32>
      %60 = arith.addf %57, %59 : vector<16x32xf32>
      %c0_32 = arith.constant 0 : index
      %c0_33 = arith.constant 0 : index
      %61 = vector.load %arg9[%c0_32, %c0_33] : memref<16x32xf32, #tpu.memory_space<vmem>>, vector<16x32xf32>
      tpu.vector_store %arg9[%c0_32, %c0_33], %60 {strides = array<i32>} : memref<16x32xf32, #tpu.memory_space<vmem>>, vector<16x32xf32>,
    } else {
    }
    return
  }
  func.func @transform_0(%arg0: i32, %arg1: i32) -> (i32, i32) {
    %c0_i32 = arith.constant 0 : i32
    %c0_i32_0 = arith.constant 0 : i32
    return %arg0, %c0_i32 : i32, i32
  }
  func.func @transform_1(%arg0: i32, %arg1: i32) -> (i32, i32) {
    %c0_i32 = arith.constant 0 : i32
    %c0_i32_0 = arith.constant 0 : i32
    return %c0_i32, %arg1 : i32, i32
  }
  func.func @transform_2(%arg0: i32, %arg1: i32) -> (i32, i32) {
    %c0_i32 = arith.constant 0 : i32
    %c0_i32_0 = arith.constant 0 : i32
    return %c0_i32, %arg1 : i32, i32
  }
  func.func @transform_3(%arg0: i32, %arg1: i32) -> (i32, i32) {
    %c0_i32 = arith.constant 0 : i32
    %c0_i32_0 = arith.constant 0 : i32
    return %arg1, %c0_i32 : i32, i32
  }
  func.func @transform_4(%arg0: i32, %arg1: i32) -> (i32, i32) {
    %c0_i32 = arith.constant 0 : i32
    %c0_i32_0 = arith.constant 0 : i32
    %c0_i32_1 = arith.constant 0 : i32
    return %c0_i32, %c0_i32_0 : i32, i32
  }
  func.func @transform_5(%arg0: i32, %arg1: i32) -> (i32, i32) {
    %c0_i32 = arith.constant 0 : i32
    %c0_i32_0 = arith.constant 0 : i32
    %c0_i32_1 = arith.constant 0 : i32
    return %c0_i32, %c0_i32_0 : i32, i32
  }
  func.func @transform_6(%arg0: i32, %arg1: i32) -> (i32, i32) {
    %c0_i32 = arith.constant 0 : i32
    %c0_i32_0 = arith.constant 0 : i32
    %c0_i32_1 = arith.constant 0 : i32
    return %c0_i32, %c0_i32_0 : i32, i32
  }
  func.func @transform_7(%arg0: i32, %arg1: i32) -> (i32, i32) {
    %c0_i32 = arith.constant 0 : i32
    %c0_i32_0 = arith.constant 0 : i32
    return %arg0, %c0_i32 : i32, i32
  }
}

module attributes {stable_mosaic.version = 11 : i64} {
  func.func @_ctx_proj_res_ln_kernel(%arg0: i32, %arg1: i32, %arg2: memref<1x16x8xbf16, #tpu.memory_space<vmem>>, %arg3: memref<16x32xf32, #tpu.memory_space<vmem>>, %arg4: memref<1x8x32xbf16, #tpu.memory_space<vmem>>, %arg5: memref<1x32xf32, #tpu.memory_space<vmem>>, %arg6: memref<1x32xf32, #tpu.memory_space<vmem>>, %arg7: memref<1x32xf32, #tpu.memory_space<vmem>>, %arg8: memref<16x32xf32, #tpu.memory_space<vmem>>, %arg9: memref<16x32xf32, #tpu.memory_space<vmem>>) attributes {dimension_semantics = [#tpu.dimension_semantics<parallel>, #tpu.dimension_semantics<arbitrary>], iteration_bounds = array<i64: 1, 4>, scalar_prefetch = 0 : i64, scratch_operands = 1 : i64, tpu.core_type = #tpu.core_type<tc>, window_params = [{transform_indices = @transform_0, window_bounds = array<i64: 1, 16, 8>}, {transform_indices = @transform_1, window_bounds = array<i64: 16, 32>}, {transform_indices = @transform_2, window_bounds = array<i64: 1, 8, 32>}, {pipeline_mode = #tpu.pipeline_mode<synchronous>, transform_indices = @transform_3, window_bounds = array<i64: 1, 32>}, {pipeline_mode = #tpu.pipeline_mode<synchronous>, transform_indices = @transform_4, window_bounds = array<i64: 1, 32>}, {pipeline_mode = #tpu.pipeline_mode<synchronous>, transform_indices = @transform_5, window_bounds = array<i64: 1, 32>}, {transform_indices = @transform_6, window_bounds = array<i64: 16, 32>}]} {
    %c0_i32 = arith.constant 0 : i32
    %0 = arith.cmpi eq, %arg1, %c0_i32 : i32
    %1 = arith.extui %0 : i1 to i32
    %c0_i32_0 = arith.constant 0 : i32
    %2 = arith.cmpi ne, %1, %c0_i32_0 : i32
    scf.if %2 {
      %cst_11 = arith.constant 0.000000e+00 : f32
      %14 = vector.broadcast %cst_11 : f32 to vector<16x32xf32>
      %c0_12 = arith.constant 0 : index
      %c0_13 = arith.constant 0 : index
      %15 = vector.load %arg9[%c0_12, %c0_13] : memref<16x32xf32, #tpu.memory_space<vmem>>, vector<16x32xf32>
      tpu.vector_store %arg9[%c0_12, %c0_13], %14 {strides = array<i32>} : memref<16x32xf32, #tpu.memory_space<vmem>>, vector<16x32xf32>,
    } else {
    }
    %c0 = arith.constant 0 : index
    %c0_1 = arith.constant 0 : index
    %3 = vector.load %arg9[%c0, %c0_1] : memref<16x32xf32, #tpu.memory_space<vmem>>, vector<16x32xf32>
    %c0_2 = arith.constant 0 : index
    %c0_3 = arith.constant 0 : index
    %c0_4 = arith.constant 0 : index
    %4 = vector.load %arg2[%c0_2, %c0_3, %c0_4] : memref<1x16x8xbf16, #tpu.memory_space<vmem>>, vector<1x16x8xbf16>
    %5 = vector.shape_cast %4 : vector<1x16x8xbf16> to vector<16x8xbf16>
    %c0_5 = arith.constant 0 : index
    %c0_6 = arith.constant 0 : index
    %c0_7 = arith.constant 0 : index
    %6 = vector.load %arg4[%c0_5, %c0_6, %c0_7] : memref<1x8x32xbf16, #tpu.memory_space<vmem>>, vector<1x8x32xbf16>
    %7 = vector.shape_cast %6 : vector<1x8x32xbf16> to vector<8x32xbf16>
    %cst = arith.constant dense<0.000000e+00> : vector<16x32xf32>
    %8 = tpu.matmul %5, %7, %cst {dimension_numbers = #tpu.dot_dimension_numbers<[1], [0], [0], [1], [0, 0, 1, 1], [], []>} : vector<16x8xbf16>, vector<8x32xbf16>, vector<16x32xf32> -> vector<16x32xf32>
    %9 = arith.addf %3, %8 : vector<16x32xf32>
    %c0_8 = arith.constant 0 : index
    %c0_9 = arith.constant 0 : index
    %10 = vector.load %arg9[%c0_8, %c0_9] : memref<16x32xf32, #tpu.memory_space<vmem>>, vector<16x32xf32>
    tpu.vector_store %arg9[%c0_8, %c0_9], %9 {strides = array<i32>} : memref<16x32xf32, #tpu.memory_space<vmem>>, vector<16x32xf32>,
    %c3_i32 = arith.constant 3 : i32
    %11 = arith.cmpi eq, %arg1, %c3_i32 : i32
    %12 = arith.extui %11 : i1 to i32
    %c0_i32_10 = arith.constant 0 : i32
    %13 = arith.cmpi ne, %12, %c0_i32_10 : i32
    scf.if %13 {
      %c0_11 = arith.constant 0 : index
      %c0_12 = arith.constant 0 : index
      %14 = vector.load %arg9[%c0_11, %c0_12] : memref<16x32xf32, #tpu.memory_space<vmem>>, vector<16x32xf32>
      %c0_13 = arith.constant 0 : index
      %c0_14 = arith.constant 0 : index
      %15 = vector.load %arg5[%c0_13, %c0_14] : memref<1x32xf32, #tpu.memory_space<vmem>>, vector<1x32xf32>
      %16 = vector.broadcast %15 : vector<1x32xf32> to vector<16x32xf32>
      %17 = arith.addf %14, %16 : vector<16x32xf32>
      %c0_15 = arith.constant 0 : index
      %c0_16 = arith.constant 0 : index
      %18 = vector.load %arg3[%c0_15, %c0_16] : memref<16x32xf32, #tpu.memory_space<vmem>>, vector<16x32xf32>
      %19 = arith.addf %17, %18 : vector<16x32xf32>
      %cst_17 = arith.constant dense<0.000000e+00> : vector<16xf32>
      %20 = vector.multi_reduction <add>, %19, %cst_17 [1] : vector<16x32xf32> to vector<16xf32>
      %21 = vector.shape_cast %20 : vector<16xf32> to vector<16x1xf32>
      %cst_18 = arith.constant 3.200000e+01 : f32
      %22 = vector.broadcast %cst_18 : f32 to vector<16x1xf32>
      %23 = arith.divf %21, %22 : vector<16x1xf32>
      %24 = vector.broadcast %23 : vector<16x1xf32> to vector<16x32xf32>
      %25 = arith.subf %19, %24 : vector<16x32xf32>
      %26 = arith.mulf %25, %25 : vector<16x32xf32>
      %cst_19 = arith.constant dense<0.000000e+00> : vector<16xf32>
      %27 = vector.multi_reduction <add>, %26, %cst_19 [1] : vector<16x32xf32> to vector<16xf32>
      %28 = vector.shape_cast %27 : vector<16xf32> to vector<16x1xf32>
      %cst_20 = arith.constant 3.200000e+01 : f32
      %29 = vector.broadcast %cst_20 : f32 to vector<16x1xf32>
      %30 = arith.divf %28, %29 : vector<16x1xf32>
      %31 = vector.broadcast %23 : vector<16x1xf32> to vector<16x32xf32>
      %32 = arith.subf %19, %31 : vector<16x32xf32>
      %cst_21 = arith.constant 9.99999996E-13 : f32
      %33 = vector.broadcast %cst_21 : f32 to vector<16x1xf32>
      %34 = arith.addf %30, %33 : vector<16x1xf32>
      %35 = math.rsqrt %34 : vector<16x1xf32>
      %36 = vector.broadcast %35 : vector<16x1xf32> to vector<16x32xf32>
      %37 = arith.mulf %32, %36 : vector<16x32xf32>
      %c0_22 = arith.constant 0 : index
      %c0_23 = arith.constant 0 : index
      %38 = vector.load %arg6[%c0_22, %c0_23] : memref<1x32xf32, #tpu.memory_space<vmem>>, vector<1x32xf32>
      %39 = vector.broadcast %38 : vector<1x32xf32> to vector<16x32xf32>
      %40 = arith.mulf %37, %39 : vector<16x32xf32>
      %c0_24 = arith.constant 0 : index
      %c0_25 = arith.constant 0 : index
      %41 = vector.load %arg7[%c0_24, %c0_25] : memref<1x32xf32, #tpu.memory_space<vmem>>, vector<1x32xf32>
      %42 = vector.broadcast %41 : vector<1x32xf32> to vector<16x32xf32>
      %43 = arith.addf %40, %42 : vector<16x32xf32>
      %c0_26 = arith.constant 0 : index
      %c0_27 = arith.constant 0 : index
      %44 = vector.load %arg8[%c0_26, %c0_27] : memref<16x32xf32, #tpu.memory_space<vmem>>, vector<16x32xf32>
      tpu.vector_store %arg8[%c0_26, %c0_27], %43 {strides = array<i32>} : memref<16x32xf32, #tpu.memory_space<vmem>>, vector<16x32xf32>,
    } else {
    }
    return
  }
  func.func @transform_0(%arg0: i32, %arg1: i32) -> (i32, i32, i32) {
    %c0_i32 = arith.constant 0 : i32
    %c0_i32_0 = arith.constant 0 : i32
    return %arg1, %arg0, %c0_i32 : i32, i32, i32
  }
  func.func @transform_1(%arg0: i32, %arg1: i32) -> (i32, i32) {
    %c0_i32 = arith.constant 0 : i32
    %c0_i32_0 = arith.constant 0 : i32
    return %arg0, %c0_i32 : i32, i32
  }
  func.func @transform_2(%arg0: i32, %arg1: i32) -> (i32, i32, i32) {
    %c0_i32 = arith.constant 0 : i32
    %c0_i32_0 = arith.constant 0 : i32
    %c0_i32_1 = arith.constant 0 : i32
    return %arg1, %c0_i32, %c0_i32_0 : i32, i32, i32
  }
  func.func @transform_3(%arg0: i32, %arg1: i32) -> (i32, i32) {
    %c0_i32 = arith.constant 0 : i32
    %c0_i32_0 = arith.constant 0 : i32
    %c0_i32_1 = arith.constant 0 : i32
    return %c0_i32, %c0_i32_0 : i32, i32
  }
  func.func @transform_4(%arg0: i32, %arg1: i32) -> (i32, i32) {
    %c0_i32 = arith.constant 0 : i32
    %c0_i32_0 = arith.constant 0 : i32
    %c0_i32_1 = arith.constant 0 : i32
    return %c0_i32, %c0_i32_0 : i32, i32
  }
  func.func @transform_5(%arg0: i32, %arg1: i32) -> (i32, i32) {
    %c0_i32 = arith.constant 0 : i32
    %c0_i32_0 = arith.constant 0 : i32
    %c0_i32_1 = arith.constant 0 : i32
    return %c0_i32, %c0_i32_0 : i32, i32
  }
  func.func @transform_6(%arg0: i32, %arg1: i32) -> (i32, i32) {
    %c0_i32 = arith.constant 0 : i32
    %c0_i32_0 = arith.constant 0 : i32
    return %arg0, %c0_i32 : i32, i32
  }
}

</mosaic_0001>

<llo_original>
// kernel: fwd.10
$region0: #{fwd.10}
  #allocation0 [shape = 'u32[]', space=smem, size = 0x4, offset = 0x4, fixed_abs, tag = 'smem constant byte address 0x4 - core index']
  #allocation1 [shape = 'u32[72,128]{1,0:T(1,128)}', space=vmem, size = 0x9000, scoped, tag = 'internal scratch']
  %s0 = inlined_call_operand.vmem [shape: f32[16,32], index: 0, kind: input, shape index: {}]
  %s1 = inlined_call_operand.vmem [shape: f32[16,32], index: 1, kind: input, shape index: {}]
  %s2 = inlined_call_operand.vmem [shape: f32[1,32], index: 2, kind: input, shape index: {}]
  %s3 = inlined_call_operand.vmem [shape: f32[1,32], index: 3, kind: input, shape index: {}]
  %s4 = inlined_call_operand.vmem [shape: f32[16,32], index: 4, kind: output, shape index: {}]
  %s5 = sld [smem:[#allocation0]]
  $region26: #{fwd.10} parent=0
    _
  %s7 = ssub.s32 1, %s5
  %s8 = scalar_select 0, %s7, %s5
  // Predicated region
  $region2: #{fwd.10} parent=0 // pred_check
    _
  $region3: #{fwd.10} parent=0 // pred_check_branch
    %10 = sbr.rel (0) target = $region5
  $region4: #{fwd.10} parent=0 // pred_region
    _
  $region5: #{fwd.10} parent=0 // pred_fallthru
    _
  // Predicated region
  $region6: #{fwd.10} parent=0 // pred_check
    _
  $region7: #{fwd.10} parent=0 // pred_check_branch
    %12 = sbr.rel (0) target = $region9
  $region8: #{fwd.10} parent=0 // pred_region
    _
  $region9: #{fwd.10} parent=0 // pred_fallthru
    _
  // Predicated region
  $region10: #{fwd.10} parent=0 // pred_check
    _
  $region11: #{fwd.10} parent=0 // pred_check_branch
    %14 = sbr.rel (0) target = $region13
  $region12: #{fwd.10} parent=0 // pred_region
    _
  $region13: #{fwd.10} parent=0 // pred_fallthru
    _
  // Predicated region
  $region14: #{fwd.10} parent=0 // pred_check
    _
  $region15: #{fwd.10} parent=0 // pred_check_branch
    %16 = sbr.rel (0) target = $region17
  $region16: #{fwd.10} parent=0 // pred_region
    _
  $region17: #{fwd.10} parent=0 // pred_fallthru
    _
  %v17 = vld [vmem:[%s0] sm:$0xff]
  %v18 = vld [vmem:[%s0 + $0x8] sm:$0xff]
  %v19 = vld [vmem:[%s1] sm:$0xff]
  %v20 = vld [vmem:[%s1 + $0x8] sm:$0xff]
  %v21 = vadd.f32 %v17, %v19
  %v22 = vadd.f32 %v18, %v20
  %vm23 = vcmask 261120
  %v24 = vsel %vm23, %v21, 0.0
  %25 = vadd.xlane.f32.xlu0 %v24
  %v26 = vpop.xlane.xlu0 %25
  %v27 = vsel %vm23, %v22, 0.0
  %28 = vadd.xlane.f32.xlu0 %v27
  %v29 = vpop.xlane.xlu0 %28
  %v30 = vrcp.pop 32.0
  %v31 = vmul.f32 32.0, %v30
  %v32 = vsub.f32 1.0, %v31
  %v33 = vmul.f32 %v30, %v32
  %v34 = vadd.f32 %v30, %v33
  %vm35 = vweird.f32 %v30
  %v36 = vsel %vm35, %v30, %v34
  %v37 = vmul.f32 %v26, %v36
  %v38 = vmul.f32 %v29, %v36
  %v39 = vsub.f32 %v21, %v37
  %v40 = vsub.f32 %v22, %v38
  %v41 = vmul.f32 %v39, %v39
  %v42 = vmul.f32 %v40, %v40
  %v43 = vsel %vm23, %v41, 0.0
  %44 = vadd.xlane.f32.xlu0 %v43
  %v45 = vpop.xlane.xlu0 %44
  %v46 = vsel %vm23, %v42, 0.0
  %47 = vadd.xlane.f32.xlu0 %v46
  %v48 = vpop.xlane.xlu0 %47
  %v49 = vmul.f32 %v45, %v36
  %v50 = vmul.f32 %v48, %v36
  %v51 = vadd.f32 %v49, 1e-12
  %v52 = vadd.f32 %v50, 1e-12
  %v53 = vrsqrt.pop %v51
  %v54 = vmul.f32 %v53, %v51
  %v55 = vmul.f32 %v54, %v53
  %v56 = vmul.f32 0.5, %v55
  %v57 = vsub.f32 1.5, %v56
  %v58 = vmul.f32 %v53, %v57
  %vm59 = vweird.f32 %v51
  %vm60 = vweird.f32 %v53
  %vm61 = vmor %vm59, %vm60
  %v62 = vsel %vm61, %v53, %v58
  %v63 = vrsqrt.pop %v52
  %v64 = vmul.f32 %v63, %v52
  %v65 = vmul.f32 %v64, %v63
  %v66 = vmul.f32 0.5, %v65
  %v67 = vsub.f32 1.5, %v66
  %v68 = vmul.f32 %v63, %v67
  %vm69 = vweird.f32 %v52
  %vm70 = vweird.f32 %v63
  %vm71 = vmor %vm69, %vm70
  %v72 = vsel %vm71, %v63, %v68
  %v73 = vmul.f32 %v39, %v62
  %v74 = vmul.f32 %v40, %v72
  %v75 = vld [vmem:[%s2] sm:$0x1]
  %v77 = vperm.slane %v75, 0
  %v79 = vmul.f32 %v73, %v77
  %v80 = vmul.f32 %v74, %v77
  %v81 = vld [vmem:[%s3] sm:$0x1]
  %v83 = vperm.slane %v81, 0
  %v85 = vadd.f32 %v79, %v83
  %v86 = vadd.f32 %v80, %v83
  %87 = vst.msk [vmem:[%s4] sm:$0xff] %vm23, %v85
  %88 = vst.msk [vmem:[%s4 + $0x8] sm:$0xff] %vm23, %v86
  // Predicated region
  $region18: #{fwd.10} parent=0 // pred_check
    _
  $region19: #{fwd.10} parent=0 // pred_check_branch
    %90 = sbr.rel (0) target = $region21
  $region20: #{fwd.10} parent=0 // pred_region
    _
  $region21: #{fwd.10} parent=0 // pred_fallthru
    _
  // Predicated region
  $region22: #{fwd.10} parent=0 // pred_check
    _
  $region23: #{fwd.10} parent=0 // pred_check_branch
    %92 = sbr.rel (0) target = $region25
  $region24: #{fwd.10} parent=0 // pred_region
    _
  $region25: #{fwd.10} parent=0 // pred_fallthru
    _

// kernel: fwd.12
$region0: #{fwd.12}
  #allocation0 [shape = 'u32[]', space=smem, size = 0x4, offset = 0x4, fixed_abs, tag = 'smem constant byte address 0x4 - core index']
  #allocation1 [shape = 'u32[72,128]{1,0:T(1,128)}', space=vmem, size = 0x9000, scoped, tag = 'internal scratch']
  %s0 = inlined_call_operand.vmem [shape: bf16[4,16,24], index: 0, kind: input, shape index: {}]
  %s1 = inlined_call_operand.vmem [shape: f32[2,1,8], index: 1, kind: input, shape index: {}]
  %s2 = inlined_call_operand.vmem [shape: bf16[4,16,8], index: 2, kind: output, shape index: {}]
  %s3 = sld [smem:[#allocation0]]
  $region41: #{fwd.12} parent=0
    _
  %s5 = ssub.s32 1, %s3
  %s6 = scalar_select 0, %s5, %s3
  loop: start=0, step=1, limit=10
  $region2: #{fwd.12} parent=0 // loop_pre_header
    _
  $region3: #{fwd.12} parent=0 // loop_header
    %s8 = sphi 0, %s12
    %p9 = scmp.ge.s32.totalorder %s8, 10
    %s15 = sphi 0, %s27
    %s16 = sphi 0, %s23
    %s17 = sphi 0, %s15
    %s18 = sphi 0, %s16
    %s19 = sphi 0, %s17
    %s20 = sphi 0, %s18
    %s32 = sphi 0, %s34
    %s35 = sphi 0, %s32
    %s36 = sphi 0, %s35
    %s52 = sphi 0, %s36
    %s58 = sphi 0, %s60
    %s61 = sphi 0, %s58
    %s62 = sphi 0, %s61
    %s78 = sphi 0, %s62
    %s86 = sphi 0, %s88
    %s89 = sphi 0, %s86
    %s90 = sphi 0, %s89
    %s106 = sphi 0, %s90
  $region4: #{fwd.12} parent=0 // loop_header_branch
    %11 = sbr.rel (%p9) target = $region8
  $region5: #{fwd.12} parent=0 // loop_body
    %s13 = ssub.s32 %s8, 1
    %s14 = ssub.s32 %s8, 2
    %s21 = sadd.s32 1, %s16
    %p22 = scmp.ge.s32.totalorder %s21, 4
    %s23 = scalar_select %p22, 0, %s21
    %s24 = sadd.s32 1, %s15
    %s25 = scalar_select %p22, %s24, %s15
    %p26 = scmp.ge.s32.totalorder %s25, 2
    %s27 = scalar_select %p26, 0, %s25
    %s28 = ssub.s32 %s16, %s23
    %s29 = ssub.s32 %s15, %s27
    %s30 = sor.u32 %s28, %s29
    %p31 = scmp.eq.s32.totalorder %s30, 0
    %s33 = sadd.s32 %s32, 1
    %s34 = scalar_select %p31, %s32, %s33
    %p37 = pneg %p31
    %p38 = scmp.eq.s32.totalorder %s8, 7
    %p39 = por %p37, %p38
    %p40 = scmp.ne.s32.totalorder %s32, %s35
    %p41 = scmp.eq.s32.totalorder %s8, 0
    %p42 = por %p40, %p41
    %p43 = scmp.ne.s32.totalorder %s32, %s35
    %p44 = scmp.eq.s32.totalorder %s13, 7
    %p45 = por %p43, %p44
    %p46 = scmp.ne.s32.totalorder %s35, %s36
    %p47 = scmp.eq.s32.totalorder %s13, 0
    %p48 = por %p46, %p47
    %p49 = scmp.ne.s32.totalorder %s35, %s36
    %p50 = scmp.eq.s32.totalorder %s14, 7
    %p51 = por %p49, %p50
    %p53 = scmp.ne.s32.totalorder %s36, %s52
    %p54 = scmp.eq.s32.totalorder %s14, 0
    %p55 = por %p53, %p54
    %s56 = ssub.s32 %s15, %s27
    %p57 = scmp.eq.s32.totalorder %s56, 0
    %s59 = sadd.s32 %s58, 1
    %s60 = scalar_select %p57, %s58, %s59
    %p63 = pneg %p57
    %p64 = scmp.eq.s32.totalorder %s8, 7
    %p65 = por %p63, %p64
    %p66 = scmp.ne.s32.totalorder %s58, %s61
    %p67 = scmp.eq.s32.totalorder %s8, 0
    %p68 = por %p66, %p67
    %p69 = scmp.ne.s32.totalorder %s58, %s61
    %p70 = scmp.eq.s32.totalorder %s13, 7
    %p71 = por %p69, %p70
    %p72 = scmp.ne.s32.totalorder %s61, %s62
    %p73 = scmp.eq.s32.totalorder %s13, 0
    %p74 = por %p72, %p73
    %p75 = scmp.ne.s32.totalorder %s61, %s62
    %p76 = scmp.eq.s32.totalorder %s14, 7
    %p77 = por %p75, %p76
    %p79 = scmp.ne.s32.totalorder %s62, %s78
    %p80 = scmp.eq.s32.totalorder %s14, 0
    %p81 = por %p79, %p80
    %s82 = ssub.s32 %s16, %s23
    %s83 = ssub.s32 %s15, %s27
    %s84 = sor.u32 %s82, %s83
    %p85 = scmp.eq.s32.totalorder %s84, 0
    %s87 = sadd.s32 %s86, 1
    %s88 = scalar_select %p85, %s86, %s87
    %p91 = pneg %p85
    %p92 = scmp.eq.s32.totalorder %s8, 7
    %p93 = por %p91, %p92
    %p94 = scmp.ne.s32.totalorder %s86, %s89
    %p95 = scmp.eq.s32.totalorder %s8, 0
    %p96 = por %p94, %p95
    %p97 = scmp.ne.s32.totalorder %s86, %s89
    %p98 = scmp.eq.s32.totalorder %s13, 7
    %p99 = por %p97, %p98
    %p100 = scmp.ne.s32.totalorder %s89, %s90
    %p101 = scmp.eq.s32.totalorder %s13, 0
    %p102 = por %p100, %p101
    %p103 = scmp.ne.s32.totalorder %s89, %s90
    %p104 = scmp.eq.s32.totalorder %s14, 7
    %p105 = por %p103, %p104
    %p107 = scmp.ne.s32.totalorder %s90, %s106
    %p108 = scmp.eq.s32.totalorder %s14, 0
    %p109 = por %p107, %p108
    %p110 = scmp.le.s32.totalorder 1, %s8
    %p111 = scmp.lt.s32.totalorder %s8, 9
    %p112 = pnand %p110, %p111
    %p113 = pneg %p112
    // Predicated region
    $region9: #{fwd.12} parent=5 // pred_check
      _
    $region10: #{fwd.12} parent=5 // pred_check_branch
      %115 = sbr.rel (%p112) target = $region12
    $region11: #{fwd.12} parent=5 // pred_region
      %s116 = ssub.s32 %s8, 1
    $region12: #{fwd.12} parent=5 // pred_fallthru
      _
    %p117 = scmp.lt.s32.totalorder %s8, 8
    // Predicated region
    $region13: #{fwd.12} parent=5 // pred_check
      %p118 = pneg %p117
    $region14: #{fwd.12} parent=5 // pred_check_branch
      %120 = sbr.rel (%p118) target = $region16
    $region15: #{fwd.12} parent=5 // pred_region
      // Predicated region
      $region17: #{fwd.12} parent=15 // pred_check
        %p121 = pneg %p42
      $region18: #{fwd.12} parent=15 // pred_check_branch
        %123 = sbr.rel (%p121) target = $region20
      $region19: #{fwd.12} parent=15 // pred_region
        %p124 = scmp.lt.s32.totalorder %s16, 3
        %s125 = scalar_select %p124, %s16, 3
        %p126 = scmp.lt.s32.totalorder %s15, 1
        %s127 = scalar_select %p126, %s15, 1
        %s128 = smul.addr %s125, 2
        %s129 = sadd.s32 %s127, %s128
        %s130 = smul.addr %s129, 4
        %s131 = scalar_lea.vmem %s0, %s130
      $region20: #{fwd.12} parent=15 // pred_fallthru
        _
      // Predicated region
      $region21: #{fwd.12} parent=15 // pred_check
        %p132 = pneg %p68
      $region22: #{fwd.12} parent=15 // pred_check_branch
        %134 = sbr.rel (%p132) target = $region24
      $region23: #{fwd.12} parent=15 // pred_region
        %p135 = scmp.lt.s32.totalorder %s15, 1
        %s136 = scalar_select %p135, %s15, 1
        %s137 = scalar_lea.vmem %s1, %s136
      $region24: #{fwd.12} parent=15 // pred_fallthru
        _
    $region16: #{fwd.12} parent=5 // pred_fallthru
      _
    %p138 = scmp.le.s32.totalorder 1, %s8
    %p139 = scmp.lt.s32.totalorder %s8, 9
    %p140 = pnand %p138, %p139
    %p141 = pneg %p140
    // Predicated region
    $region25: #{fwd.12} parent=5 // pred_check
      _
    $region26: #{fwd.12} parent=5 // pred_check_branch
      %143 = sbr.rel (%p140) target = $region28
    $region27: #{fwd.12} parent=5 // pred_region
      %s144 = ssub.s32 %s8, 1
      %p145 = scmp.lt.s32.totalorder %s18, 3
      %s146 = scalar_select %p145, %s18, 3
      %p147 = scmp.lt.s32.totalorder %s17, 1
      %s148 = scalar_select %p147, %s17, 1
      %s149 = smul.addr %s146, 2
      %s150 = sadd.s32 %s148, %s149
      %s151 = smul.addr %s150, 4
      %s152 = scalar_lea.vmem %s0, %s151
      %p153 = pneg %p48
      %p154 = pneg %p45
      %p155 = scmp.lt.s32.totalorder %s17, 1
      %s156 = scalar_select %p155, %s17, 1
      %s157 = scalar_lea.vmem %s1, %s156
      %p158 = pneg %p74
      %p159 = pneg %p71
      %p160 = pneg %p102
      %p161 = pneg %p99
      %p162 = scmp.lt.s32.totalorder %s18, 3
      %s163 = scalar_select %p162, %s18, 3
      %p164 = scmp.lt.s32.totalorder %s17, 1
      %s165 = scalar_select %p164, %s17, 1
      %s166 = smul.addr %s163, 2
      %s167 = sadd.s32 %s165, %s166
      %s168 = smul.addr %s167, 4
      %s169 = scalar_lea.vmem %s2, %s168
      %p170 = scmp.lt.s32.totalorder %s18, 3
      %s171 = scalar_select %p170, %s18, 3
      %p172 = scmp.lt.s32.totalorder %s17, 1
      %s173 = scalar_select %p172, %s17, 1
      %s174 = smul.addr %s171, 2
      %s175 = sadd.s32 %s173, %s174
      %s176 = smul.addr %s175, 4
      %s177 = scalar_lea.vmem %s0, %s176
      %p178 = scmp.lt.s32.totalorder %s17, 1
      %s179 = scalar_select %p178, %s17, 1
      %s180 = scalar_lea.vmem %s1, %s179
      %p181 = scmp.lt.s32.totalorder %s18, 3
      %s182 = scalar_select %p181, %s18, 3
      %p183 = scmp.lt.s32.totalorder %s17, 1
      %s184 = scalar_select %p183, %s17, 1
      %s185 = smul.addr %s182, 2
      %s186 = sadd.s32 %s184, %s185
      %s187 = smul.addr %s186, 4
      %s188 = scalar_lea.vmem %s2, %s187
      %v190 = vld [vmem:[%s177] sm:$0xf]
      %v191 = vld [vmem:[%s180] sm:$0x1]
      %v193 = vunpack.c.l.b16 %v190
      %v194 = vpack.c.b16 %v193, %v193
      %195 = vrot.lane.b32.xlu0 %v194, 120
      %v196 = vpop.permute.xlu0 %195
      %vm197 = vcmask 64512
      %v199 = vsel %vm197, %v190, 0
      %v202 = vsel %vm197, %v196, 0
      %204 = vmatpush.bf16.xpose.msra.mxu0 0
      %205 = vmatpush.bf16.xpose.msra.mxu0 0
      %206 = vmatpush.bf16.xpose.msra.mxu0 0
      %207 = vmatpush.bf16.xpose.msra.mxu0 0
      %208 = vmatpush.bf16.xpose.msra.mxu0 0
      %209 = vmatpush.bf16.xpose.msra.mxu0 0
      %210 = vmatpush.bf16.xpose.msra.mxu0 0
      %211 = vmatpush.bf16.xpose.msra.mxu0 %v202
      %212 = vmatmul.bf16.gmra.mxu0 %v199
      %v213 = vpop.f32.mrf.mxu0
      %v214 = vadd.f32 0.0, %v213
      %v215 = vpop.f32.mrf.mxu0
      %216 = vdwg.mxu0
      %v217 = vmul.f32 %v214, 0.35355338
      %v219 = vperm.slane %v191, 0
      %v221 = vadd.f32 %v217, %v219
      %v222 = vsel %vm197, %v221, -inf
      %223 = vmax.xlane.f32.xlu0 %v222
      %v224 = vpop.xlane.xlu0 %223
      %v225 = vsub.f32 -inf, %v224
      %v226 = vmul.f32 %v225, 1.442695
      %v227 = vpow.pop %v226
      %v228 = vsub.f32 %v221, %v224
      %v229 = vmul.f32 %v228, 1.442695
      %v230 = vpow.pop %v229
      %v231 = vmul.f32 %v227, 0.0
      %v232 = vsel %vm197, %v230, 0.0
      %233 = vadd.xlane.f32.xlu0 %v232
      %v234 = vpop.xlane.xlu0 %233
      %v235 = vadd.f32 %v231, %v234
      %v236 = vpack.c.bf16 %v230, %v230
      %237 = vrot.lane.b32.xlu0 %v194, 112
      %v238 = vpop.permute.xlu0 %237
      %v240 = vsel %vm197, %v236, 0
      %vm242 = vcmask 1043456
      %v244 = vsel %vm242, %v238, 0
      %246 = vmatpush.bf16.msra.mxu0 0
      %247 = vmatpush.bf16.msra.mxu0 0
      %248 = vmatpush.bf16.msra.mxu0 0
      %249 = vmatpush.bf16.msra.mxu0 0
      %250 = vmatpush.bf16.msra.mxu0 0
      %251 = vmatpush.bf16.msra.mxu0 0
      %252 = vmatpush.bf16.msra.mxu0 0
      %253 = vmatpush.bf16.msra.mxu0 %v244
      %254 = vmatmul.bf16.gmra.mxu0 %v240
      %v255 = vpop.f32.mrf.mxu0
      %v256 = vadd.f32 0.0, %v255
      %v257 = vpop.f32.mrf.mxu0
      %258 = vdwg.mxu0
      %v259 = vadd.f32 %v231, %v256
      %v260 = vrcp.pop %v235
      %v261 = vmul.f32 %v235, %v260
      %v262 = vsub.f32 1.0, %v261
      %v263 = vmul.f32 %v260, %v262
      %v264 = vadd.f32 %v260, %v263
      %vm265 = vweird.f32 %v235
      %vm266 = vweird.f32 %v260
      %vm267 = vmor %vm265, %vm266
      %v268 = vsel %vm267, %v260, %v264
      %v269 = vand.u32 2147483647, %v235
      %vm270 = vcmp.eq.f32.partialorder %v269, 8.507059e+37
      %v271 = vand.u32 %v235, 2147483648
      %v272 = vor.u32 1.1754944e-38, %v271
      %v273 = vsel %vm270, %v272, %v268
      %v274 = vmul.f32 %v259, %v273
      %v275 = vpack.c.bf16 %v274, %v274
      %vm276 = vcmask 60416
      %277 = vst.msk [vmem:[%s188] sm:$0xf] %vm276, %v275
      %p278 = scmp.lt.s32.totalorder %s18, 3
      %s279 = scalar_select %p278, %s18, 3
      %p280 = scmp.lt.s32.totalorder %s17, 1
      %s281 = scalar_select %p280, %s17, 1
      %s282 = smul.addr %s279, 2
      %s283 = sadd.s32 %s281, %s282
      %s284 = smul.addr %s283, 4
      %s285 = scalar_lea.vmem %s2, %s284
      // Predicated region
      $region29: #{fwd.12} parent=27 // pred_check
        %p286 = pneg %p99
      $region30: #{fwd.12} parent=27 // pred_check_branch
        %288 = sbr.rel (%p286) target = $region32
      $region31: #{fwd.12} parent=27 // pred_region
        _
      $region32: #{fwd.12} parent=27 // pred_fallthru
        _
    $region28: #{fwd.12} parent=5 // pred_fallthru
      _
    %p289 = scmp.le.s32.totalorder 2, %s8
    // Predicated region
    $region33: #{fwd.12} parent=5 // pred_check
      %p290 = pneg %p289
    $region34: #{fwd.12} parent=5 // pred_check_branch
      %292 = sbr.rel (%p290) target = $region36
    $region35: #{fwd.12} parent=5 // pred_region
      %s293 = ssub.s32 %s8, 2
      // Predicated region
      $region37: #{fwd.12} parent=35 // pred_check
        %p294 = pneg %p105
      $region38: #{fwd.12} parent=35 // pred_check_branch
        %296 = sbr.rel (%p294) target = $region40
      $region39: #{fwd.12} parent=35 // pred_region
        %p297 = scmp.lt.s32.totalorder %s20, 3
        %s298 = scalar_select %p297, %s20, 3
        %p299 = scmp.lt.s32.totalorder %s19, 1
        %s300 = scalar_select %p299, %s19, 1
        %s301 = smul.addr %s298, 2
        %s302 = sadd.s32 %s300, %s301
        %s303 = smul.addr %s302, 4
        %s304 = scalar_lea.vmem %s2, %s303
      $region40: #{fwd.12} parent=35 // pred_fallthru
        _
    $region36: #{fwd.12} parent=5 // pred_fallthru
      _
  $region6: #{fwd.12} parent=0 // loop_footer
    %s12 = sadd.s32 1, %s8
  $region7: #{fwd.12} parent=0 // loop_footer_branch
    %7 = sbr.rel target = $region3
  $region8: #{fwd.12} parent=0 // loop_exit
    _

// kernel: fwd.11
$region0: #{fwd.11}
  #allocation0 [shape = 'u32[]', space=smem, size = 0x4, offset = 0x4, fixed_abs, tag = 'smem constant byte address 0x4 - core index']
  #allocation1 [shape = 'u32[72,128]{1,0:T(1,128)}', space=vmem, size = 0x9000, scoped, tag = 'internal scratch']
  %s0 = inlined_call_operand.vmem [shape: f32[16,32], index: 0, kind: input, shape index: {}]
  %s1 = inlined_call_operand.vmem [shape: bf16[4,32,24], index: 1, kind: input, shape index: {}]
  %s2 = inlined_call_operand.vmem [shape: f32[4,1,24], index: 2, kind: input, shape index: {}]
  %s3 = inlined_call_operand.vmem [shape: bf16[4,16,24], index: 3, kind: output, shape index: {}]
  %s4 = sld [smem:[#allocation0]]
  $region45: #{fwd.11} parent=0
    _
  %s6 = ssub.s32 1, %s4
  %s7 = scalar_select 0, %s6, %s4
  loop: start=0, step=1, limit=6
  $region2: #{fwd.11} parent=0 // loop_pre_header
    _
  $region3: #{fwd.11} parent=0 // loop_header
    %s9 = sphi 0, %s13
    %p10 = scmp.ge.s32.totalorder %s9, 6
    %s16 = sphi 0, %s28
    %s17 = sphi 0, %s24
    %s18 = sphi 0, %s16
    %s19 = sphi 0, %s17
    %s20 = sphi 0, %s18
    %s21 = sphi 0, %s19
    %s31 = sphi 0, %s33
    %s34 = sphi 0, %s31
    %s35 = sphi 0, %s34
    %s51 = sphi 0, %s35
    %s57 = sphi 0, %s59
    %s60 = sphi 0, %s57
    %s61 = sphi 0, %s60
    %s77 = sphi 0, %s61
    %s83 = sphi 0, %s85
    %s86 = sphi 0, %s83
    %s87 = sphi 0, %s86
    %s103 = sphi 0, %s87
    %s111 = sphi 0, %s113
    %s114 = sphi 0, %s111
    %s115 = sphi 0, %s114
    %s131 = sphi 0, %s115
  $region4: #{fwd.11} parent=0 // loop_header_branch
    %12 = sbr.rel (%p10) target = $region8
  $region5: #{fwd.11} parent=0 // loop_body
    %s14 = ssub.s32 %s9, 1
    %s15 = ssub.s32 %s9, 2
    %s22 = sadd.s32 1, %s17
    %p23 = scmp.ge.s32.totalorder %s22, 4
    %s24 = scalar_select %p23, 0, %s22
    %s25 = sadd.s32 1, %s16
    %s26 = scalar_select %p23, %s25, %s16
    %p27 = scmp.ge.s32.totalorder %s26, 1
    %s28 = scalar_select %p27, 0, %s26
    %s29 = ssub.s32 %s16, %s28
    %p30 = scmp.eq.s32.totalorder %s29, 0
    %s32 = sadd.s32 %s31, 1
    %s33 = scalar_select %p30, %s31, %s32
    %p36 = pneg %p30
    %p37 = scmp.eq.s32.totalorder %s9, 3
    %p38 = por %p36, %p37
    %p39 = scmp.ne.s32.totalorder %s31, %s34
    %p40 = scmp.eq.s32.totalorder %s9, 0
    %p41 = por %p39, %p40
    %p42 = scmp.ne.s32.totalorder %s31, %s34
    %p43 = scmp.eq.s32.totalorder %s14, 3
    %p44 = por %p42, %p43
    %p45 = scmp.ne.s32.totalorder %s34, %s35
    %p46 = scmp.eq.s32.totalorder %s14, 0
    %p47 = por %p45, %p46
    %p48 = scmp.ne.s32.totalorder %s34, %s35
    %p49 = scmp.eq.s32.totalorder %s15, 3
    %p50 = por %p48, %p49
    %p52 = scmp.ne.s32.totalorder %s35, %s51
    %p53 = scmp.eq.s32.totalorder %s15, 0
    %p54 = por %p52, %p53
    %s55 = ssub.s32 %s17, %s24
    %p56 = scmp.eq.s32.totalorder %s55, 0
    %s58 = sadd.s32 %s57, 1
    %s59 = scalar_select %p56, %s57, %s58
    %p62 = pneg %p56
    %p63 = scmp.eq.s32.totalorder %s9, 3
    %p64 = por %p62, %p63
    %p65 = scmp.ne.s32.totalorder %s57, %s60
    %p66 = scmp.eq.s32.totalorder %s9, 0
    %p67 = por %p65, %p66
    %p68 = scmp.ne.s32.totalorder %s57, %s60
    %p69 = scmp.eq.s32.totalorder %s14, 3
    %p70 = por %p68, %p69
    %p71 = scmp.ne.s32.totalorder %s60, %s61
    %p72 = scmp.eq.s32.totalorder %s14, 0
    %p73 = por %p71, %p72
    %p74 = scmp.ne.s32.totalorder %s60, %s61
    %p75 = scmp.eq.s32.totalorder %s15, 3
    %p76 = por %p74, %p75
    %p78 = scmp.ne.s32.totalorder %s61, %s77
    %p79 = scmp.eq.s32.totalorder %s15, 0
    %p80 = por %p78, %p79
    %s81 = ssub.s32 %s17, %s24
    %p82 = scmp.eq.s32.totalorder %s81, 0
    %s84 = sadd.s32 %s83, 1
    %s85 = scalar_select %p82, %s83, %s84
    %p88 = pneg %p82
    %p89 = scmp.eq.s32.totalorder %s9, 3
    %p90 = por %p88, %p89
    %p91 = scmp.ne.s32.totalorder %s83, %s86
    %p92 = scmp.eq.s32.totalorder %s9, 0
    %p93 = por %p91, %p92
    %p94 = scmp.ne.s32.totalorder %s83, %s86
    %p95 = scmp.eq.s32.totalorder %s14, 3
    %p96 = por %p94, %p95
    %p97 = scmp.ne.s32.totalorder %s86, %s87
    %p98 = scmp.eq.s32.totalorder %s14, 0
    %p99 = por %p97, %p98
    %p100 = scmp.ne.s32.totalorder %s86, %s87
    %p101 = scmp.eq.s32.totalorder %s15, 3
    %p102 = por %p100, %p101
    %p104 = scmp.ne.s32.totalorder %s87, %s103
    %p105 = scmp.eq.s32.totalorder %s15, 0
    %p106 = por %p104, %p105
    %s107 = ssub.s32 %s17, %s24
    %s108 = ssub.s32 %s16, %s28
    %s109 = sor.u32 %s107, %s108
    %p110 = scmp.eq.s32.totalorder %s109, 0
    %s112 = sadd.s32 %s111, 1
    %s113 = scalar_select %p110, %s111, %s112
    %p116 = pneg %p110
    %p117 = scmp.eq.s32.totalorder %s9, 3
    %p118 = por %p116, %p117
    %p119 = scmp.ne.s32.totalorder %s111, %s114
    %p120 = scmp.eq.s32.totalorder %s9, 0
    %p121 = por %p119, %p120
    %p122 = scmp.ne.s32.totalorder %s111, %s114
    %p123 = scmp.eq.s32.totalorder %s14, 3
    %p124 = por %p122, %p123
    %p125 = scmp.ne.s32.totalorder %s114, %s115
    %p126 = scmp.eq.s32.totalorder %s14, 0
    %p127 = por %p125, %p126
    %p128 = scmp.ne.s32.totalorder %s114, %s115
    %p129 = scmp.eq.s32.totalorder %s15, 3
    %p130 = por %p128, %p129
    %p132 = scmp.ne.s32.totalorder %s115, %s131
    %p133 = scmp.eq.s32.totalorder %s15, 0
    %p134 = por %p132, %p133
    %p135 = scmp.le.s32.totalorder 1, %s9
    %p136 = scmp.lt.s32.totalorder %s9, 5
    %p137 = pnand %p135, %p136
    %p138 = pneg %p137
    // Predicated region
    $region9: #{fwd.11} parent=5 // pred_check
      _
    $region10: #{fwd.11} parent=5 // pred_check_branch
      %140 = sbr.rel (%p137) target = $region12
    $region11: #{fwd.11} parent=5 // pred_region
      %s141 = ssub.s32 %s9, 1
      // Predicated region
      $region13: #{fwd.11} parent=11 // pred_check
        %p142 = pneg %p47
      $region14: #{fwd.11} parent=11 // pred_check_branch
        %144 = sbr.rel (%p142) target = $region16
      $region15: #{fwd.11} parent=11 // pred_region
        %s145 = smul.u32 2, %s18
        %p146 = scmp.lt.s32.totalorder %s145, 1
        %s147 = scalar_select %p146, %s145, 1
        %s148 = smul.addr %s147, 8
        %s149 = scalar_lea.vmem %s0, %s148
        %s150 = smul.u32 2, %s18
      $region16: #{fwd.11} parent=11 // pred_fallthru
        _
    $region12: #{fwd.11} parent=5 // pred_fallthru
      _
    %p151 = scmp.lt.s32.totalorder %s9, 4
    // Predicated region
    $region17: #{fwd.11} parent=5 // pred_check
      %p152 = pneg %p151
    $region18: #{fwd.11} parent=5 // pred_check_branch
      %154 = sbr.rel (%p152) target = $region20
    $region19: #{fwd.11} parent=5 // pred_region
      // Predicated region
      $region21: #{fwd.11} parent=19 // pred_check
        %p155 = pneg %p67
      $region22: #{fwd.11} parent=19 // pred_check_branch
        %157 = sbr.rel (%p155) target = $region24
      $region23: #{fwd.11} parent=19 // pred_region
        %p158 = scmp.lt.s32.totalorder %s17, 3
        %s159 = scalar_select %p158, %s17, 3
        %s160 = smul.addr %s159, 4
        %s161 = smul.addr %s160, 4
        %s162 = scalar_lea.vmem %s1, %s161
      $region24: #{fwd.11} parent=19 // pred_fallthru
        _
      // Predicated region
      $region25: #{fwd.11} parent=19 // pred_check
        %p163 = pneg %p93
      $region26: #{fwd.11} parent=19 // pred_check_branch
        %165 = sbr.rel (%p163) target = $region28
      $region27: #{fwd.11} parent=19 // pred_region
        %p166 = scmp.lt.s32.totalorder %s17, 3
        %s167 = scalar_select %p166, %s17, 3
        %s168 = scalar_lea.vmem %s2, %s167
      $region28: #{fwd.11} parent=19 // pred_fallthru
        _
    $region20: #{fwd.11} parent=5 // pred_fallthru
      _
    %p169 = scmp.le.s32.totalorder 1, %s9
    %p170 = scmp.lt.s32.totalorder %s9, 5
    %p171 = pnand %p169, %p170
    %p172 = pneg %p171
    // Predicated region
    $region29: #{fwd.11} parent=5 // pred_check
      _
    $region30: #{fwd.11} parent=5 // pred_check_branch
      %174 = sbr.rel (%p171) target = $region32
    $region31: #{fwd.11} parent=5 // pred_region
      %s175 = ssub.s32 %s9, 1
      %s176 = smul.u32 2, %s18
      %p177 = scmp.lt.s32.totalorder %s176, 1
      %s178 = scalar_select %p177, %s176, 1
      %s179 = smul.addr %s178, 8
      %s180 = scalar_lea.vmem %s0, %s179
      %p181 = pneg %p47
      %p182 = pneg %p44
      %p183 = scmp.lt.s32.totalorder %s19, 3
      %s184 = scalar_select %p183, %s19, 3
      %s185 = smul.addr %s184, 4
      %s186 = smul.addr %s185, 4
      %s187 = scalar_lea.vmem %s1, %s186
      %p188 = pneg %p73
      %p189 = pneg %p70
      %p190 = scmp.lt.s32.totalorder %s19, 3
      %s191 = scalar_select %p190, %s19, 3
      %s192 = scalar_lea.vmem %s2, %s191
      %p193 = pneg %p99
      %p194 = pneg %p96
      %p195 = pneg %p127
      %p196 = pneg %p124
      %s197 = smul.u32 2, %s18
      %p198 = scmp.lt.s32.totalorder %s19, 3
      %s199 = scalar_select %p198, %s19, 3
      %p200 = scmp.lt.s32.totalorder %s197, 1
      %s201 = scalar_select %p200, %s197, 1
      %s202 = smul.addr %s199, 2
      %s203 = sadd.s32 %s201, %s202
      %s204 = smul.addr %s203, 4
      %s205 = scalar_lea.vmem %s3, %s204
      %s206 = smul.u32 2, %s18
      %p207 = scmp.lt.s32.totalorder %s206, 1
      %s208 = scalar_select %p207, %s206, 1
      %s209 = smul.addr %s208, 8
      %s210 = scalar_lea.vmem %s0, %s209
      %s211 = smul.u32 2, %s18
      %p212 = scmp.lt.s32.totalorder %s19, 3
      %s213 = scalar_select %p212, %s19, 3
      %s214 = smul.addr %s213, 4
      %s215 = smul.addr %s214, 4
      %s216 = scalar_lea.vmem %s1, %s215
      %p217 = scmp.lt.s32.totalorder %s19, 3
      %s218 = scalar_select %p217, %s19, 3
      %s219 = scalar_lea.vmem %s2, %s218
      %s220 = smul.u32 2, %s18
      %p221 = scmp.lt.s32.totalorder %s19, 3
      %s222 = scalar_select %p221, %s19, 3
      %p223 = scmp.lt.s32.totalorder %s220, 1
      %s224 = scalar_select %p223, %s220, 1
      %s225 = smul.addr %s222, 2
      %s226 = sadd.s32 %s224, %s225
      %s227 = smul.addr %s226, 4
      %s228 = scalar_lea.vmem %s3, %s227
      %s229 = smul.u32 2, %s18
      %v231 = vld [vmem:[%s210] sm:$0xff]
      %v232 = vld [vmem:[%s210 + $0x8] sm:$0xff]
      %v233 = vpack.c.bf16 %v232, %v231
      %v234 = vld [vmem:[%s216] sm:$0xf]
      %v235 = vld [vmem:[%s216 + $0x4] sm:$0xf]
      %v236 = vld [vmem:[%s216 + $0x8] sm:$0xf]
      %v237 = vld [vmem:[%s216 + $0xc] sm:$0xf]
      %v238 = vld [vmem:[%s219] sm:$0x1]
      %v240 = vperm.slane %v238, 0
      %v246 = vunpack.c.l.b16 %v234
      %v247 = vunpack.c.l.b16 %v235
      %v248 = vunpack.c.l.b16 %v236
      %v249 = vunpack.c.l.b16 %v237
      %v250 = vpack.c.b16 %v247, %v246
      %v251 = vpack.c.b16 %v249, %v248
      %vm254 = vcmask 261120
      %v256 = vsel %vm254, %v233, 0
      %258 = vmatpush.bf16.msra.mxu0 0
      %259 = vmatpush.bf16.msra.mxu0 0
      %260 = vmatpush.bf16.msra.mxu0 0
      %261 = vmatpush.bf16.msra.mxu0 0
      %262 = vmatpush.bf16.msra.mxu0 0
      %263 = vmatpush.bf16.msra.mxu0 0
      %264 = vmatpush.bf16.msra.mxu0 %v251
      %265 = vmatpush.bf16.msra.mxu0 %v250
      %266 = vmatmul.bf16.gmra.mxu0 %v256
      %v267 = vpop.f32.mrf.mxu0
      %v268 = vadd.f32 %v240, %v267
      %v269 = vpop.f32.mrf.mxu0
      %v270 = vadd.f32 %v240, %v269
      %271 = vdwg.mxu0
      %v272 = vpack.c.bf16 %v268, %v268
      %v273 = vpack.c.bf16 %v270, %v270
      %vm274 = vcmask 191488
      %275 = vst.msk [vmem:[%s228] sm:$0xf] %vm274, %v272
      %276 = vst.msk [vmem:[%s228 + $0x4] sm:$0xf] %vm274, %v273
      %s277 = smul.u32 2, %s18
      %p278 = scmp.lt.s32.totalorder %s19, 3
      %s279 = scalar_select %p278, %s19, 3
      %p280 = scmp.lt.s32.totalorder %s277, 1
      %s281 = scalar_select %p280, %s277, 1
      %s282 = smul.addr %s279, 2
      %s283 = sadd.s32 %s281, %s282
      %s284 = smul.addr %s283, 4
      %s285 = scalar_lea.vmem %s3, %s284
      // Predicated region
      $region33: #{fwd.11} parent=31 // pred_check
        %p286 = pneg %p124
      $region34: #{fwd.11} parent=31 // pred_check_branch
        %288 = sbr.rel (%p286) target = $region36
      $region35: #{fwd.11} parent=31 // pred_region
        %s289 = smul.u32 2, %s18
      $region36: #{fwd.11} parent=31 // pred_fallthru
        _
    $region32: #{fwd.11} parent=5 // pred_fallthru
      _
    %p290 = scmp.le.s32.totalorder 2, %s9
    // Predicated region
    $region37: #{fwd.11} parent=5 // pred_check
      %p291 = pneg %p290
    $region38: #{fwd.11} parent=5 // pred_check_branch
      %293 = sbr.rel (%p291) target = $region40
    $region39: #{fwd.11} parent=5 // pred_region
      %s294 = ssub.s32 %s9, 2
      // Predicated region
      $region41: #{fwd.11} parent=39 // pred_check
        %p295 = pneg %p130
      $region42: #{fwd.11} parent=39 // pred_check_branch
        %297 = sbr.rel (%p295) target = $region44
      $region43: #{fwd.11} parent=39 // pred_region
        %s298 = smul.u32 2, %s20
        %p299 = scmp.lt.s32.totalorder %s21, 3
        %s300 = scalar_select %p299, %s21, 3
        %p301 = scmp.lt.s32.totalorder %s298, 1
        %s302 = scalar_select %p301, %s298, 1
        %s303 = smul.addr %s300, 2
        %s304 = sadd.s32 %s302, %s303
        %s305 = smul.addr %s304, 4
        %s306 = scalar_lea.vmem %s3, %s305
      $region44: #{fwd.11} parent=39 // pred_fallthru
        _
    $region40: #{fwd.11} parent=5 // pred_fallthru
      _
  $region6: #{fwd.11} parent=0 // loop_footer
    %s13 = sadd.s32 1, %s9
  $region7: #{fwd.11} parent=0 // loop_footer_branch
    %8 = sbr.rel target = $region3
  $region8: #{fwd.11} parent=0 // loop_exit
    _

// kernel: fwd.13
$region0: #{fwd.13}
  #allocation0 [shape = 'u32[]', space=smem, size = 0x4, offset = 0x4, fixed_abs, tag = 'smem constant byte address 0x4 - core index']
  #allocation1 [shape = 'u32[72,128]{1,0:T(1,128)}', space=vmem, size = 0x9000, scoped, tag = 'internal scratch']
  #allocation2 [shape = 'f32[16,32]{1,0:T(8,128)}', space=vmem, size = 0x2000, scoped, tag = 'scratch operand']
  %s0 = inlined_call_operand.vmem [shape: bf16[4,16,8], index: 0, kind: input, shape index: {}]
  %s1 = inlined_call_operand.vmem [shape: f32[16,32], index: 1, kind: input, shape index: {}]
  %s2 = inlined_call_operand.hbm [shape: bf16[4,8,32], index: 2, kind: input, shape index: {}]
  %s3 = inlined_call_operand.vmem [shape: f32[1,32], index: 3, kind: input, shape index: {}, may-alias: {3,5}]
  %s4 = inlined_call_operand.vmem [shape: f32[1,32], index: 4, kind: input, shape index: {}]
  %s5 = inlined_call_operand.vmem [shape: f32[1,32], index: 5, kind: input, shape index: {}, may-alias: {3,5}]
  %s6 = inlined_call_operand.vmem [shape: f32[16,32], index: 6, kind: output, shape index: {}]
  %s7 = sld [smem:[#allocation0]]
  $region69: #{fwd.13} parent=0
    _
  %s9 = ssub.s32 1, %s7
  %s10 = scalar_select 0, %s9, %s7
  $region1: #{fwd.13} parent=0
    #allocation3 [shape = 'u8[4096]{0}', space=vmem, size = 0x1000, scoped, tag = 'input window, operand 2']
    #allocation4 [shape = 's32[2]{0}', space=sflag, size = 0x8, scoped, tag = 'scoped memory for fwd.13']
    %11 = vsyncpa [#allocation4], 0
    %s12 = scalar_lea.sflag [#allocation4], 1
    %13 = vsyncpa %s12, 0
    loop: start=0, step=1, limit=6
    $region2: #{fwd.13} parent=1 // loop_pre_header
      _
    $region3: #{fwd.13} parent=1 // loop_header
      %s15 = sphi 0, %s19
      %p16 = scmp.ge.s32.totalorder %s15, 6
      %s22 = sphi 0, %s34
      %s23 = sphi 0, %s30
      %s24 = sphi 0, %s22
      %s25 = sphi 0, %s23
      %s26 = sphi 0, %s24
      %s27 = sphi 0, %s25
      %s39 = sphi 0, %s41
      %s42 = sphi 0, %s39
      %s43 = sphi 0, %s42
      %s59 = sphi 0, %s43
      %s65 = sphi 0, %s67
      %s68 = sphi 0, %s65
      %s69 = sphi 0, %s68
      %s85 = sphi 0, %s69
      %s91 = sphi 0, %s93
      %s94 = sphi 0, %s91
      %s95 = sphi 0, %s94
      %s111 = sphi 0, %s95
      %s115 = sphi 0, %s115
      %s117 = sphi 0, %s115
      %s118 = sphi 0, %s117
      %s132 = sphi 0, %s118
      %s136 = sphi 0, %s136
      %s138 = sphi 0, %s136
      %s139 = sphi 0, %s138
      %s153 = sphi 0, %s139
      %s157 = sphi 0, %s157
      %s159 = sphi 0, %s157
      %s160 = sphi 0, %s159
      %s174 = sphi 0, %s160
      %s180 = sphi 0, %s182
      %s183 = sphi 0, %s180
      %s184 = sphi 0, %s183
      %s200 = sphi 0, %s184
    $region4: #{fwd.13} parent=1 // loop_header_branch
      %18 = sbr.rel (%p16) target = $region8
    $region5: #{fwd.13} parent=1 // loop_body
      %s20 = ssub.s32 %s15, 1
      %s21 = ssub.s32 %s15, 2
      %s28 = sadd.s32 1, %s23
      %p29 = scmp.ge.s32.totalorder %s28, 4
      %s30 = scalar_select %p29, 0, %s28
      %s31 = sadd.s32 1, %s22
      %s32 = scalar_select %p29, %s31, %s22
      %p33 = scmp.ge.s32.totalorder %s32, 1
      %s34 = scalar_select %p33, 0, %s32
      %s35 = ssub.s32 %s23, %s30
      %s36 = ssub.s32 %s22, %s34
      %s37 = sor.u32 %s35, %s36
      %p38 = scmp.eq.s32.totalorder %s37, 0
      %s40 = sadd.s32 %s39, 1
      %s41 = scalar_select %p38, %s39, %s40
      %p44 = pneg %p38
      %p45 = scmp.eq.s32.totalorder %s15, 3
      %p46 = por %p44, %p45
      %p47 = scmp.ne.s32.totalorder %s39, %s42
      %p48 = scmp.eq.s32.totalorder %s15, 0
      %p49 = por %p47, %p48
      %p50 = scmp.ne.s32.totalorder %s39, %s42
      %p51 = scmp.eq.s32.totalorder %s20, 3
      %p52 = por %p50, %p51
      %p53 = scmp.ne.s32.totalorder %s42, %s43
      %p54 = scmp.eq.s32.totalorder %s20, 0
      %p55 = por %p53, %p54
      %p56 = scmp.ne.s32.totalorder %s42, %s43
      %p57 = scmp.eq.s32.totalorder %s21, 3
      %p58 = por %p56, %p57
      %p60 = scmp.ne.s32.totalorder %s43, %s59
      %p61 = scmp.eq.s32.totalorder %s21, 0
      %p62 = por %p60, %p61
      %s63 = ssub.s32 %s22, %s34
      %p64 = scmp.eq.s32.totalorder %s63, 0
      %s66 = sadd.s32 %s65, 1
      %s67 = scalar_select %p64, %s65, %s66
      %p70 = pneg %p64
      %p71 = scmp.eq.s32.totalorder %s15, 3
      %p72 = por %p70, %p71
      %p73 = scmp.ne.s32.totalorder %s65, %s68
      %p74 = scmp.eq.s32.totalorder %s15, 0
      %p75 = por %p73, %p74
      %p76 = scmp.ne.s32.totalorder %s65, %s68
      %p77 = scmp.eq.s32.totalorder %s20, 3
      %p78 = por %p76, %p77
      %p79 = scmp.ne.s32.totalorder %s68, %s69
      %p80 = scmp.eq.s32.totalorder %s20, 0
      %p81 = por %p79, %p80
      %p82 = scmp.ne.s32.totalorder %s68, %s69
      %p83 = scmp.eq.s32.totalorder %s21, 3
      %p84 = por %p82, %p83
      %p86 = scmp.ne.s32.totalorder %s69, %s85
      %p87 = scmp.eq.s32.totalorder %s21, 0
      %p88 = por %p86, %p87
      %s89 = ssub.s32 %s23, %s30
      %p90 = scmp.eq.s32.totalorder %s89, 0
      %s92 = sadd.s32 %s91, 1
      %s93 = scalar_select %p90, %s91, %s92
      %p96 = pneg %p90
      %p97 = scmp.eq.s32.totalorder %s15, 3
      %p98 = por %p96, %p97
      %p99 = scmp.ne.s32.totalorder %s91, %s94
      %p100 = scmp.eq.s32.totalorder %s15, 0
      %p101 = por %p99, %p100
      %p102 = scmp.ne.s32.totalorder %s91, %s94
      %p103 = scmp.eq.s32.totalorder %s20, 3
      %p104 = por %p102, %p103
      %p105 = scmp.ne.s32.totalorder %s94, %s95
      %p106 = scmp.eq.s32.totalorder %s20, 0
      %p107 = por %p105, %p106
      %p108 = scmp.ne.s32.totalorder %s94, %s95
      %p109 = scmp.eq.s32.totalorder %s21, 3
      %p110 = por %p108, %p109
      %p112 = scmp.ne.s32.totalorder %s95, %s111
      %p113 = scmp.eq.s32.totalorder %s21, 0
      %p114 = por %p112, %p113
      %s116 = sadd.s32 %s115, 1
      %p119 = scmp.eq.s32.totalorder %s15, 3
      %p120 = scmp.ne.s32.totalorder %s115, %s117
      %p121 = scmp.eq.s32.totalorder %s15, 0
      %p122 = por %p120, %p121
      %p123 = scmp.ne.s32.totalorder %s115, %s117
      %p124 = scmp.eq.s32.totalorder %s20, 3
      %p125 = por %p123, %p124
      %p126 = scmp.ne.s32.totalorder %s117, %s118
      %p127 = scmp.eq.s32.totalorder %s20, 0
      %p128 = por %p126, %p127
      %p129 = scmp.ne.s32.totalorder %s117, %s118
      %p130 = scmp.eq.s32.totalorder %s21, 3
      %p131 = por %p129, %p130
      %p133 = scmp.ne.s32.totalorder %s118, %s132
      %p134 = scmp.eq.s32.totalorder %s21, 0
      %p135 = por %p133, %p134
      %s137 = sadd.s32 %s136, 1
      %p140 = scmp.eq.s32.totalorder %s15, 3
      %p141 = scmp.ne.s32.totalorder %s136, %s138
      %p142 = scmp.eq.s32.totalorder %s15, 0
      %p143 = por %p141, %p142
      %p144 = scmp.ne.s32.totalorder %s136, %s138
      %p145 = scmp.eq.s32.totalorder %s20, 3
      %p146 = por %p144, %p145
      %p147 = scmp.ne.s32.totalorder %s138, %s139
      %p148 = scmp.eq.s32.totalorder %s20, 0
      %p149 = por %p147, %p148
      %p150 = scmp.ne.s32.totalorder %s138, %s139
      %p151 = scmp.eq.s32.totalorder %s21, 3
      %p152 = por %p150, %p151
      %p154 = scmp.ne.s32.totalorder %s139, %s153
      %p155 = scmp.eq.s32.totalorder %s21, 0
      %p156 = por %p154, %p155
      %s158 = sadd.s32 %s157, 1
      %p161 = scmp.eq.s32.totalorder %s15, 3
      %p162 = scmp.ne.s32.totalorder %s157, %s159
      %p163 = scmp.eq.s32.totalorder %s15, 0
      %p164 = por %p162, %p163
      %p165 = scmp.ne.s32.totalorder %s157, %s159
      %p166 = scmp.eq.s32.totalorder %s20, 3
      %p167 = por %p165, %p166
      %p168 = scmp.ne.s32.totalorder %s159, %s160
      %p169 = scmp.eq.s32.totalorder %s20, 0
      %p170 = por %p168, %p169
      %p171 = scmp.ne.s32.totalorder %s159, %s160
      %p172 = scmp.eq.s32.totalorder %s21, 3
      %p173 = por %p171, %p172
      %p175 = scmp.ne.s32.totalorder %s160, %s174
      %p176 = scmp.eq.s32.totalorder %s21, 0
      %p177 = por %p175, %p176
      %s178 = ssub.s32 %s22, %s34
      %p179 = scmp.eq.s32.totalorder %s178, 0
      %s181 = sadd.s32 %s180, 1
      %s182 = scalar_select %p179, %s180, %s181
      %p185 = pneg %p179
      %p186 = scmp.eq.s32.totalorder %s15, 3
      %p187 = por %p185, %p186
      %p188 = scmp.ne.s32.totalorder %s180, %s183
      %p189 = scmp.eq.s32.totalorder %s15, 0
      %p190 = por %p188, %p189
      %p191 = scmp.ne.s32.totalorder %s180, %s183
      %p192 = scmp.eq.s32.totalorder %s20, 3
      %p193 = por %p191, %p192
      %p194 = scmp.ne.s32.totalorder %s183, %s184
      %p195 = scmp.eq.s32.totalorder %s20, 0
      %p196 = por %p194, %p195
      %p197 = scmp.ne.s32.totalorder %s183, %s184
      %p198 = scmp.eq.s32.totalorder %s21, 3
      %p199 = por %p197, %p198
      %p201 = scmp.ne.s32.totalorder %s184, %s200
      %p202 = scmp.eq.s32.totalorder %s21, 0
      %p203 = por %p201, %p202
      %p204 = scmp.le.s32.totalorder 1, %s15
      %p205 = scmp.lt.s32.totalorder %s15, 5
      %p206 = pnand %p204, %p205
      %p207 = pneg %p206
      // Predicated region
      $region9: #{fwd.13} parent=5 // pred_check
        _
      $region10: #{fwd.13} parent=5 // pred_check_branch
        %209 = sbr.rel (%p206) target = $region12
      $region11: #{fwd.13} parent=5 // pred_region
        %s210 = ssub.s32 %s15, 1
        // Predicated region
        $region13: #{fwd.13} parent=11 // pred_check
          %p211 = pneg %p81
        $region14: #{fwd.13} parent=11 // pred_check_branch
          %213 = sbr.rel (%p211) target = $region16
        $region15: #{fwd.13} parent=11 // pred_region
          %s214 = smul.u32 2, %s24
          %p215 = scmp.lt.s32.totalorder %s214, 1
          %s216 = scalar_select %p215, %s214, 1
          %s217 = smul.addr %s216, 8
          %s218 = scalar_lea.vmem %s1, %s217
          %s219 = smul.u32 2, %s24
        $region16: #{fwd.13} parent=11 // pred_fallthru
          _
        // Predicated region
        $region17: #{fwd.13} parent=11 // pred_check
          %p220 = pneg %p128
        $region18: #{fwd.13} parent=11 // pred_check_branch
          %222 = sbr.rel (%p220) target = $region20
        $region19: #{fwd.13} parent=11 // pred_region
          _
        $region20: #{fwd.13} parent=11 // pred_fallthru
          _
        // Predicated region
        $region21: #{fwd.13} parent=11 // pred_check
          %p223 = pneg %p149
        $region22: #{fwd.13} parent=11 // pred_check_branch
          %225 = sbr.rel (%p223) target = $region24
        $region23: #{fwd.13} parent=11 // pred_region
          _
        $region24: #{fwd.13} parent=11 // pred_fallthru
          _
        // Predicated region
        $region25: #{fwd.13} parent=11 // pred_check
          %p226 = pneg %p170
        $region26: #{fwd.13} parent=11 // pred_check_branch
          %228 = sbr.rel (%p226) target = $region28
        $region27: #{fwd.13} parent=11 // pred_region
          _
        $region28: #{fwd.13} parent=11 // pred_fallthru
          _
      $region12: #{fwd.13} parent=5 // pred_fallthru
        _
      %p229 = scmp.lt.s32.totalorder %s15, 4
      // Predicated region
      $region29: #{fwd.13} parent=5 // pred_check
        %p230 = pneg %p229
      $region30: #{fwd.13} parent=5 // pred_check_branch
        %232 = sbr.rel (%p230) target = $region32
      $region31: #{fwd.13} parent=5 // pred_region
        // Predicated region
        $region33: #{fwd.13} parent=31 // pred_check
          %p233 = pneg %p49
        $region34: #{fwd.13} parent=31 // pred_check_branch
          %235 = sbr.rel (%p233) target = $region36
        $region35: #{fwd.13} parent=31 // pred_region
          %s236 = smul.u32 2, %s22
          %p237 = scmp.lt.s32.totalorder %s23, 3
          %s238 = scalar_select %p237, %s23, 3
          %p239 = scmp.lt.s32.totalorder %s236, 1
          %s240 = scalar_select %p239, %s236, 1
          %s241 = smul.addr %s238, 2
          %s242 = sadd.s32 %s240, %s241
          %s243 = smul.addr %s242, 4
          %s244 = scalar_lea.vmem %s0, %s243
          %s245 = smul.u32 2, %s22
        $region36: #{fwd.13} parent=31 // pred_fallthru
          _
        // Predicated region
        $region37: #{fwd.13} parent=31 // pred_check
          %p246 = pneg %p101
        $region38: #{fwd.13} parent=31 // pred_check_branch
          %248 = sbr.rel (%p246) target = $region40
        $region39: #{fwd.13} parent=31 // pred_region
          %s249 = sand.u32 %s91, 1
          %s250 = scalar_lea.sflag [#allocation4], %s249
          %s251 = sand.u32 %s91, 1
          %s252 = smul.addr %s251, 4
          %s253 = scalar_lea.vmem [#allocation3], %s252
          %255 = vsyncadd %s250, 0
          %s256 = smul.addr %s23, 4
          %s257 = scalar_lea.hbm %s2, %s256
          %s259 = sshll.u32 %s257, 4
          %s260 = int_to_ptr.hbm [resolvable:$true] %s259
          %s261 = sshll.u32 %s253, 4
          %s262 = int_to_ptr.vmem [resolvable:$true] %s261
          %264 = dma.hbm_to_vmem [thread:$0]  %s260, 64, %s262, %s250
        $region40: #{fwd.13} parent=31 // pred_fallthru
          _
      $region32: #{fwd.13} parent=5 // pred_fallthru
        _
      %p265 = scmp.le.s32.totalorder 1, %s15
      %p266 = scmp.lt.s32.totalorder %s15, 5
      %p267 = pnand %p265, %p266
      %p268 = pneg %p267
      // Predicated region
      $region41: #{fwd.13} parent=5 // pred_check
        _
      $region42: #{fwd.13} parent=5 // pred_check_branch
        %270 = sbr.rel (%p267) target = $region44
      $region43: #{fwd.13} parent=5 // pred_region
        %s271 = ssub.s32 %s15, 1
        %s272 = sand.u32 %s94, 1
        %s273 = scalar_lea.sflag [#allocation4], %s272
        %s274 = sand.u32 %s94, 1
        %s275 = smul.addr %s274, 4
        %s276 = scalar_lea.vmem [#allocation3], %s275
        // Predicated region
        $region45: #{fwd.13} parent=43 // pred_check
          %p277 = pneg %p107
        $region46: #{fwd.13} parent=43 // pred_check_branch
          %279 = sbr.rel (%p277) target = $region48
        $region47: #{fwd.13} parent=43 // pred_region
          %281 = dma.done %s273, 64
        $region48: #{fwd.13} parent=43 // pred_fallthru
          _
        %s282 = smul.u32 2, %s24
        %p283 = scmp.lt.s32.totalorder %s25, 3
        %s284 = scalar_select %p283, %s25, 3
        %p285 = scmp.lt.s32.totalorder %s282, 1
        %s286 = scalar_select %p285, %s282, 1
        %s287 = smul.addr %s284, 2
        %s288 = sadd.s32 %s286, %s287
        %s289 = smul.addr %s288, 4
        %s290 = scalar_lea.vmem %s0, %s289
        %p291 = pneg %p55
        %p292 = pneg %p52
        %s293 = smul.u32 2, %s24
        %p294 = scmp.lt.s32.totalorder %s293, 1
        %s295 = scalar_select %p294, %s293, 1
        %s296 = smul.addr %s295, 8
        %s297 = scalar_lea.vmem %s1, %s296
        %p298 = pneg %p81
        %p299 = pneg %p78
        %s300 = sand.u32 %s94, 1
        %s301 = scalar_lea.sflag [#allocation4], %s300
        %s302 = sand.u32 %s94, 1
        %s303 = smul.addr %s302, 4
        %s304 = scalar_lea.vmem [#allocation3], %s303
        %p305 = pneg %p107
        %p306 = pneg %p104
        %p307 = pneg %p128
        %p308 = pneg %p125
        %p309 = pneg %p149
        %p310 = pneg %p146
        %p311 = pneg %p170
        %p312 = pneg %p167
        %p313 = pneg %p196
        %p314 = pneg %p193
        %s315 = smul.u32 2, %s24
        %p316 = scmp.lt.s32.totalorder %s315, 1
        %s317 = scalar_select %p316, %s315, 1
        %s318 = smul.addr %s317, 8
        %s319 = scalar_lea.vmem %s6, %s318
        %s320 = smul.u32 2, %s24
        %p321 = scmp.lt.s32.totalorder %s25, 3
        %s322 = scalar_select %p321, %s25, 3
        %p323 = scmp.lt.s32.totalorder %s320, 1
        %s324 = scalar_select %p323, %s320, 1
        %s325 = smul.addr %s322, 2
        %s326 = sadd.s32 %s324, %s325
        %s327 = smul.addr %s326, 4
        %s328 = scalar_lea.vmem %s0, %s327
        %s329 = smul.u32 2, %s24
        %s330 = smul.u32 2, %s24
        %p331 = scmp.lt.s32.totalorder %s330, 1
        %s332 = scalar_select %p331, %s330, 1
        %s333 = smul.addr %s332, 8
        %s334 = scalar_lea.vmem %s1, %s333
        %s335 = smul.u32 2, %s24
        %s336 = smul.u32 2, %s24
        %p337 = scmp.lt.s32.totalorder %s336, 1
        %s338 = scalar_select %p337, %s336, 1
        %s339 = smul.addr %s338, 8
        %s340 = scalar_lea.vmem %s6, %s339
        %s341 = smul.u32 2, %s24
        %p343 = scmp.eq.s32.totalorder %s25, 0
        // Predicated region
        $region49: #{fwd.13} parent=43 // pred_check
          %p344 = pneg %p343
        $region50: #{fwd.13} parent=43 // pred_check_branch
          %346 = sbr.rel (%p344) target = $region52
        $region51: #{fwd.13} parent=43 // pred_region
          %vm347 = vcmask 261120
          %348 = vst.msk [vmem:[#allocation2] sm:$0xff] %vm347, 0.0
          %349 = vst.msk [vmem:[#allocation2 + $0x8] sm:$0xff] %vm347, 0.0
        $region52: #{fwd.13} parent=43 // pred_fallthru
          _
        %v350 = vld [vmem:[#allocation2] sm:$0xff]
        %v351 = vld [vmem:[#allocation2 + $0x8] sm:$0xff]
        %v352 = vld [vmem:[%s328] sm:$0xf]
        %v353 = vld [vmem:[%s328 + $0x4] sm:$0xf]
        %v354 = vld [vmem:[%s276] sm:$0xf]
        %v357 = vunpack.c.l.b16 %v352
        %v358 = vunpack.c.l.b16 %v353
        %v359 = vpack.c.b16 %v358, %v357
        %vm360 = vcmask 64512
        %v362 = vsel %vm360, %v359, 0
        %vm364 = vcmask 1043456
        %v366 = vsel %vm364, %v354, 0
        %368 = vmatpush.bf16.msra.mxu0 0
        %369 = vmatpush.bf16.msra.mxu0 0
        %370 = vmatpush.bf16.msra.mxu0 0
        %371 = vmatpush.bf16.msra.mxu0 0
        %372 = vmatpush.bf16.msra.mxu0 0
        %373 = vmatpush.bf16.msra.mxu0 0
        %374 = vmatpush.bf16.msra.mxu0 0
        %375 = vmatpush.bf16.msra.mxu0 %v366
        %376 = vmatmul.bf16.gmra.mxu0 %v362
        %v377 = vpop.f32.mrf.mxu0
        %v378 = vadd.f32 0.0, %v377
        %v379 = vpop.f32.mrf.mxu0
        %v380 = vadd.f32 0.0, %v379
        %381 = vdwg.mxu0
        %v382 = vadd.f32 %v350, %v378
        %v383 = vadd.f32 %v351, %v380
        %vm384 = vcmask 261120
        %385 = vst.msk [vmem:[#allocation2] sm:$0xff] %vm384, %v382
        %386 = vst.msk [vmem:[#allocation2 + $0x8] sm:$0xff] %vm384, %v383
        %p387 = scmp.eq.s32.totalorder %s25, 3
        // Predicated region
        $region53: #{fwd.13} parent=43 // pred_check
          %p388 = pneg %p387
        $region54: #{fwd.13} parent=43 // pred_check_branch
          %390 = sbr.rel (%p388) target = $region56
        $region55: #{fwd.13} parent=43 // pred_region
          %v391 = vld [vmem:[#allocation2] sm:$0xff]
          %v392 = vld [vmem:[#allocation2 + $0x8] sm:$0xff]
          %v393 = vld [vmem:[%s3] sm:$0x1]
          %v395 = vperm.slane %v393, 0
          %v397 = vadd.f32 %v391, %v395
          %v398 = vadd.f32 %v392, %v395
          %v399 = vld [vmem:[%s334] sm:$0xff]
          %v400 = vld [vmem:[%s334 + $0x8] sm:$0xff]
          %v401 = vadd.f32 %v397, %v399
          %v402 = vadd.f32 %v398, %v400
          %v403 = vsel %vm384, %v401, 0.0
          %404 = vadd.xlane.f32.xlu0 %v403
          %v405 = vpop.xlane.xlu0 %404
          %v406 = vsel %vm384, %v402, 0.0
          %407 = vadd.xlane.f32.xlu0 %v406
          %v408 = vpop.xlane.xlu0 %407
          %v409 = vrcp.pop 32.0
          %v410 = vmul.f32 32.0, %v409
          %v411 = vsub.f32 1.0, %v410
          %v412 = vmul.f32 %v409, %v411
          %v413 = vadd.f32 %v409, %v412
          %vm414 = vweird.f32 %v409
          %v415 = vsel %vm414, %v409, %v413
          %v416 = vmul.f32 %v405, %v415
          %v417 = vmul.f32 %v408, %v415
          %v418 = vsub.f32 %v401, %v416
          %v419 = vsub.f32 %v402, %v417
          %v420 = vmul.f32 %v418, %v418
          %v421 = vmul.f32 %v419, %v419
          %v422 = vsel %vm384, %v420, 0.0
          %423 = vadd.xlane.f32.xlu0 %v422
          %v424 = vpop.xlane.xlu0 %423
          %v425 = vsel %vm384, %v421, 0.0
          %426 = vadd.xlane.f32.xlu0 %v425
          %v427 = vpop.xlane.xlu0 %426
          %v428 = vmul.f32 %v424, %v415
          %v429 = vmul.f32 %v427, %v415
          %v430 = vadd.f32 %v428, 1e-12
          %v431 = vadd.f32 %v429, 1e-12
          %v432 = vrsqrt.pop %v430
          %v433 = vmul.f32 %v432, %v430
          %v434 = vmul.f32 %v433, %v432
          %v435 = vmul.f32 0.5, %v434
          %v436 = vsub.f32 1.5, %v435
          %v437 = vmul.f32 %v432, %v436
          %vm438 = vweird.f32 %v430
          %vm439 = vweird.f32 %v432
          %vm440 = vmor %vm438, %vm439
          %v441 = vsel %vm440, %v432, %v437
          %v442 = vrsqrt.pop %v431
          %v443 = vmul.f32 %v442, %v431
          %v444 = vmul.f32 %v443, %v442
          %v445 = vmul.f32 0.5, %v444
          %v446 = vsub.f32 1.5, %v445
          %v447 = vmul.f32 %v442, %v446
          %vm448 = vweird.f32 %v431
          %vm449 = vweird.f32 %v442
          %vm450 = vmor %vm448, %vm449
          %v451 = vsel %vm450, %v442, %v447
          %v452 = vmul.f32 %v418, %v441
          %v453 = vmul.f32 %v419, %v451
          %v454 = vld [vmem:[%s4] sm:$0x1]
          %v456 = vperm.slane %v454, 0
          %v458 = vmul.f32 %v452, %v456
          %v459 = vmul.f32 %v453, %v456
          %v460 = vld [vmem:[%s5] sm:$0x1]
          %v462 = vperm.slane %v460, 0
          %v464 = vadd.f32 %v458, %v462
          %v465 = vadd.f32 %v459, %v462
          %466 = vst.msk [vmem:[%s340] sm:$0xff] %vm384, %v464
          %467 = vst.msk [vmem:[%s340 + $0x8] sm:$0xff] %vm384, %v465
        $region56: #{fwd.13} parent=43 // pred_fallthru
          _
        %s468 = smul.u32 2, %s24
        %p469 = scmp.lt.s32.totalorder %s468, 1
        %s470 = scalar_select %p469, %s468, 1
        %s471 = smul.addr %s470, 8
        %s472 = scalar_lea.vmem %s6, %s471
        // Predicated region
        $region57: #{fwd.13} parent=43 // pred_check
          %p473 = pneg %p193
        $region58: #{fwd.13} parent=43 // pred_check_branch
          %475 = sbr.rel (%p473) target = $region60
        $region59: #{fwd.13} parent=43 // pred_region
          %s476 = smul.u32 2, %s24
        $region60: #{fwd.13} parent=43 // pred_fallthru
          _
        // Predicated region
        $region61: #{fwd.13} parent=43 // pred_check
          %p477 = pneg %p193
        $region62: #{fwd.13} parent=43 // pred_check_branch
          %479 = sbr.rel (%p477) target = $region64
        $region63: #{fwd.13} parent=43 // pred_region
          %s480 = smul.u32 2, %s24
          %p481 = scmp.lt.s32.totalorder %s480, 1
          %s482 = scalar_select %p481, %s480, 1
          %s483 = smul.addr %s482, 8
          %s484 = scalar_lea.vmem %s6, %s483
        $region64: #{fwd.13} parent=43 // pred_fallthru
          _
      $region44: #{fwd.13} parent=5 // pred_fallthru
        _
      %p485 = scmp.le.s32.totalorder 2, %s15
      // Predicated region
      $region65: #{fwd.13} parent=5 // pred_check
        %p486 = pneg %p485
      $region66: #{fwd.13} parent=5 // pred_check_branch
        %488 = sbr.rel (%p486) target = $region68
      $region67: #{fwd.13} parent=5 // pred_region
        %s489 = ssub.s32 %s15, 2
      $region68: #{fwd.13} parent=5 // pred_fallthru
        _
    $region6: #{fwd.13} parent=1 // loop_footer
      %s19 = sadd.s32 1, %s15
    $region7: #{fwd.13} parent=1 // loop_footer_branch
      %14 = sbr.rel target = $region3
    $region8: #{fwd.13} parent=1 // loop_exit
      _
    %490 = vsyncpa [#allocation4], 1
    %s491 = scalar_lea.sflag [#allocation4], 1
    %492 = vsyncpa %s491, 1

// kernel: fwd.19
$region0: #{fwd.19}
  #allocation0 [shape = 'u32[]', space=smem, size = 0x4, offset = 0x4, fixed_abs, tag = 'smem constant byte address 0x4 - core index']
  #allocation1 [shape = 'u32[72,128]{1,0:T(1,128)}', space=vmem, size = 0x9000, scoped, tag = 'internal scratch']
  %s0 = inlined_call_operand.vmem [shape: f32[16,32], index: 0, kind: input, shape index: {}]
  %s1 = inlined_call_operand.vmem [shape: bf16[32,64], index: 1, kind: input, shape index: {}]
  %s2 = inlined_call_operand.hbm [shape: f32[16,64], index: 2, kind: output, shape index: {}]
  %s3 = sld [smem:[#allocation0]]
  $region18: #{fwd.19} parent=0
    _
  %s5 = ssub.s32 1, %s3
  %s6 = scalar_select 0, %s5, %s3
  $region1: #{fwd.19} parent=0
    #allocation2 [shape = 'u8[8192]{0}', space=vmem, size = 0x2000, scoped, tag = 'output window, operand 0, single buffered']
    #allocation3 [shape = 's32[1]{0}', space=sflag, size = 0x4, scoped, tag = 'scoped memory for fwd.19']
    %7 = vsyncpa [#allocation3], 0
    // Predicated region
    $region2: #{fwd.19} parent=1 // pred_check
      _
    $region3: #{fwd.19} parent=1 // pred_check_branch
      %9 = sbr.rel (0) target = $region5
    $region4: #{fwd.19} parent=1 // pred_region
      _
    $region5: #{fwd.19} parent=1 // pred_fallthru
      _
    // Predicated region
    $region6: #{fwd.19} parent=1 // pred_check
      _
    $region7: #{fwd.19} parent=1 // pred_check_branch
      %11 = sbr.rel (0) target = $region9
    $region8: #{fwd.19} parent=1 // pred_region
      _
    $region9: #{fwd.19} parent=1 // pred_fallthru
      _
    %v13 = vld [vmem:[%s0] sm:$0xff]
    %v14 = vld [vmem:[%s0 + $0x8] sm:$0xff]
    %v15 = vpack.c.bf16 %v14, %v13
    %v16 = vld [vmem:[%s1] sm:$0xf]
    %v17 = vld [vmem:[%s1 + $0x4] sm:$0xf]
    %v18 = vld [vmem:[%s1 + $0x8] sm:$0xf]
    %v19 = vld [vmem:[%s1 + $0xc] sm:$0xf]
    %v24 = vunpack.c.l.b16 %v16
    %v25 = vunpack.c.l.b16 %v17
    %v26 = vunpack.c.l.b16 %v18
    %v27 = vunpack.c.l.b16 %v19
    %v28 = vpack.c.b16 %v25, %v24
    %v29 = vpack.c.b16 %v27, %v26
    %vm32 = vcmask 261120
    %v34 = vsel %vm32, %v15, 0
    %36 = vmatpush.bf16.msra.mxu0 0
    %37 = vmatpush.bf16.msra.mxu0 0
    %38 = vmatpush.bf16.msra.mxu0 0
    %39 = vmatpush.bf16.msra.mxu0 0
    %40 = vmatpush.bf16.msra.mxu0 0
    %41 = vmatpush.bf16.msra.mxu0 0
    %42 = vmatpush.bf16.msra.mxu0 %v29
    %43 = vmatpush.bf16.msra.mxu0 %v28
    %44 = vmatmul.bf16.gmra.mxu0 %v34
    %v45 = vpop.f32.mrf.mxu0
    %v46 = vadd.f32 0.0, %v45
    %v47 = vpop.f32.mrf.mxu0
    %v48 = vadd.f32 0.0, %v47
    %49 = vdwg.mxu0
    %vm50 = vcmask 523264
    %51 = vst.msk [vmem:[#allocation2] sm:$0xff] %vm50, %v46
    %52 = vst.msk [vmem:[#allocation2 + $0x8] sm:$0xff] %vm50, %v48
    // Predicated region
    $region10: #{fwd.19} parent=1 // pred_check
      _
    $region11: #{fwd.19} parent=1 // pred_check_branch
      %54 = sbr.rel (0) target = $region13
    $region12: #{fwd.19} parent=1 // pred_region
      %56 = vsyncadd [#allocation3], 0
      %s57 = sshll.u32 [#allocation2], 4
      %s58 = int_to_ptr.vmem [resolvable:$true] %s57
      %s59 = sshll.u32 %s2, 4
      %s60 = int_to_ptr.hbm [resolvable:$true] %s59
      %65 = dma.vmem_to_hbm [thread:$0]  %s58, 256, %s60, [#allocation3], 128, 128, 8
    $region13: #{fwd.19} parent=1 // pred_fallthru
      _
    // Predicated region
    $region14: #{fwd.19} parent=1 // pred_check
      _
    $region15: #{fwd.19} parent=1 // pred_check_branch
      %67 = sbr.rel (0) target = $region17
    $region16: #{fwd.19} parent=1 // pred_region
      %69 = dma.done [#allocation3], 256
    $region17: #{fwd.19} parent=1 // pred_fallthru
      _
    %70 = vsyncpa [#allocation3], 1

// kernel: fwd.14
$region0: #{fwd.14}
  #allocation0 [shape = 'u32[]', space=smem, size = 0x4, offset = 0x4, fixed_abs, tag = 'smem constant byte address 0x4 - core index']
  #allocation1 [shape = 'u32[72,128]{1,0:T(1,128)}', space=vmem, size = 0x9000, scoped, tag = 'internal scratch']
  #allocation2 [shape = 'f32[16,32]{1,0:T(8,128)}', space=vmem, size = 0x2000, scoped, tag = 'scratch operand']
  %s0 = inlined_call_operand.vmem [shape: f32[16,32], index: 0, kind: input, shape index: {}]
  %s1 = inlined_call_operand.hbm [shape: bf16[32,64], index: 1, kind: input, shape index: {}]
  %s2 = inlined_call_operand.vmem [shape: f32[1,64], index: 2, kind: input, shape index: {}]
  %s3 = inlined_call_operand.vmem [shape: bf16[64,32], index: 3, kind: input, shape index: {}]
  %s4 = inlined_call_operand.vmem [shape: f32[1,32], index: 4, kind: input, shape index: {}, may-alias: {4,6}]
  %s5 = inlined_call_operand.vmem [shape: f32[1,32], index: 5, kind: input, shape index: {}]
  %s6 = inlined_call_operand.vmem [shape: f32[1,32], index: 6, kind: input, shape index: {}, may-alias: {4,6}]
  %s7 = inlined_call_operand.vmem [shape: f32[16,32], index: 7, kind: output, shape index: {}]
  %s8 = sld [smem:[#allocation0]]
  $region50: #{fwd.14} parent=0
    _
  %s10 = ssub.s32 1, %s8
  %s11 = scalar_select 0, %s10, %s8
  $region1: #{fwd.14} parent=0
    #allocation3 [shape = 'u8[8192]{0}', space=vmem, size = 0x2000, scoped, tag = 'input window, operand 1, single buffered']
    #allocation4 [shape = 's32[1]{0}', space=sflag, size = 0x4, scoped, tag = 'scoped memory for fwd.14']
    %12 = vsyncpa [#allocation4], 0
    // Predicated region
    $region2: #{fwd.14} parent=1 // pred_check
      _
    $region3: #{fwd.14} parent=1 // pred_check_branch
      %14 = sbr.rel (0) target = $region5
    $region4: #{fwd.14} parent=1 // pred_region
      _
    $region5: #{fwd.14} parent=1 // pred_fallthru
      _
    // Predicated region
    $region6: #{fwd.14} parent=1 // pred_check
      _
    $region7: #{fwd.14} parent=1 // pred_check_branch
      %16 = sbr.rel (0) target = $region9
    $region8: #{fwd.14} parent=1 // pred_region
      %18 = vsyncadd [#allocation4], 0
      %s19 = sshll.u32 %s1, 4
      %s20 = int_to_ptr.hbm [resolvable:$true] %s19
      %s21 = sshll.u32 [#allocation3], 4
      %s22 = int_to_ptr.vmem [resolvable:$true] %s21
      %27 = dma.hbm_to_vmem [thread:$0]  %s20, 256, %s22, [#allocation4], 64, 64, 4
    $region9: #{fwd.14} parent=1 // pred_fallthru
      _
    // Predicated region
    $region10: #{fwd.14} parent=1 // pred_check
      _
    $region11: #{fwd.14} parent=1 // pred_check_branch
      %29 = sbr.rel (0) target = $region13
    $region12: #{fwd.14} parent=1 // pred_region
      _
    $region13: #{fwd.14} parent=1 // pred_fallthru
      _
    // Predicated region
    $region14: #{fwd.14} parent=1 // pred_check
      _
    $region15: #{fwd.14} parent=1 // pred_check_branch
      %31 = sbr.rel (0) target = $region17
    $region16: #{fwd.14} parent=1 // pred_region
      _
    $region17: #{fwd.14} parent=1 // pred_fallthru
      _
    // Predicated region
    $region18: #{fwd.14} parent=1 // pred_check
      _
    $region19: #{fwd.14} parent=1 // pred_check_branch
      %33 = sbr.rel (0) target = $region21
    $region20: #{fwd.14} parent=1 // pred_region
      _
    $region21: #{fwd.14} parent=1 // pred_fallthru
      _
    // Predicated region
    $region22: #{fwd.14} parent=1 // pred_check
      _
    $region23: #{fwd.14} parent=1 // pred_check_branch
      %35 = sbr.rel (0) target = $region25
    $region24: #{fwd.14} parent=1 // pred_region
      _
    $region25: #{fwd.14} parent=1 // pred_fallthru
      _
    // Predicated region
    $region26: #{fwd.14} parent=1 // pred_check
      _
    $region27: #{fwd.14} parent=1 // pred_check_branch
      %37 = sbr.rel (0) target = $region29
    $region28: #{fwd.14} parent=1 // pred_region
      _
    $region29: #{fwd.14} parent=1 // pred_fallthru
      _
    // Predicated region
    $region30: #{fwd.14} parent=1 // pred_check
      _
    $region31: #{fwd.14} parent=1 // pred_check_branch
      %39 = sbr.rel (0) target = $region33
    $region32: #{fwd.14} parent=1 // pred_region
      %41 = dma.done [#allocation4], 256
    $region33: #{fwd.14} parent=1 // pred_fallthru
      _
    %p43 = scmp.eq.s32.totalorder 0, 0
    // Predicated region
    $region34: #{fwd.14} parent=1 // pred_check
      %p44 = pneg %p43
    $region35: #{fwd.14} parent=1 // pred_check_branch
      %46 = sbr.rel (%p44) target = $region37
    $region36: #{fwd.14} parent=1 // pred_region
      %vm47 = vcmask 261120
      %48 = vst.msk [vmem:[#allocation2] sm:$0xff] %vm47, 0.0
      %49 = vst.msk [vmem:[#allocation2 + $0x8] sm:$0xff] %vm47, 0.0
    $region37: #{fwd.14} parent=1 // pred_fallthru
      _
    %v50 = vld [vmem:[%s0] sm:$0xff]
    %v51 = vld [vmem:[%s0 + $0x8] sm:$0xff]
    %v52 = vpack.c.bf16 %v51, %v50
    %v53 = vld [vmem:[#allocation3] sm:$0xf]
    %v54 = vld [vmem:[#allocation3 + $0x4] sm:$0xf]
    %v55 = vld [vmem:[#allocation3 + $0x8] sm:$0xf]
    %v56 = vld [vmem:[#allocation3 + $0xc] sm:$0xf]
    %v57 = vld [vmem:[%s2] sm:$0x1]
    %v59 = vperm.slane %v57, 0
    %v65 = vunpack.c.l.b16 %v53
    %v66 = vunpack.c.l.b16 %v54
    %v67 = vunpack.c.l.b16 %v55
    %v68 = vunpack.c.l.b16 %v56
    %v69 = vpack.c.b16 %v66, %v65
    %v70 = vpack.c.b16 %v68, %v67
    %vm73 = vcmask 261120
    %v75 = vsel %vm73, %v52, 0
    %77 = vmatpush.bf16.msra.mxu0 0
    %78 = vmatpush.bf16.msra.mxu0 0
    %79 = vmatpush.bf16.msra.mxu0 0
    %80 = vmatpush.bf16.msra.mxu0 0
    %81 = vmatpush.bf16.msra.mxu0 0
    %82 = vmatpush.bf16.msra.mxu0 0
    %83 = vmatpush.bf16.msra.mxu0 %v70
    %84 = vmatpush.bf16.msra.mxu0 %v69
    %85 = vmatmul.bf16.gmra.mxu0 %v75
    %v86 = vpop.f32.mrf.mxu0
    %v87 = vadd.f32 %v59, %v86
    %v88 = vpop.f32.mrf.mxu0
    %v89 = vadd.f32 %v59, %v88
    %90 = vdwg.mxu0
    %v91 = vmul.f32 %v87, %v87
    %v92 = vmul.f32 %v89, %v89
    %v93 = vmul.f32 %v87, %v91
    %v94 = vmul.f32 %v89, %v92
    %v95 = vmul.f32 %v93, 0.044715
    %v96 = vmul.f32 %v94, 0.044715
    %v97 = vadd.f32 %v87, %v95
    %v98 = vadd.f32 %v89, %v96
    %v99 = vmul.f32 %v97, 0.7978846
    %v100 = vmul.f32 %v98, 0.7978846
    %v101 = vtanh.pop %v99
    %v102 = vtanh.pop %v100
    %v103 = vadd.f32 %v101, 1.0
    %v104 = vadd.f32 %v102, 1.0
    %v105 = vmul.f32 %v103, 0.5
    %v106 = vmul.f32 %v104, 0.5
    %v107 = vmul.f32 %v87, %v105
    %v108 = vmul.f32 %v89, %v106
    %v109 = vld [vmem:[#allocation2] sm:$0xff]
    %v110 = vld [vmem:[#allocation2 + $0x8] sm:$0xff]
    %v111 = vpack.c.bf16 %v108, %v107
    %v112 = vld [vmem:[%s3] sm:$0xf]
    %v113 = vld [vmem:[%s3 + $0x4] sm:$0xf]
    %v114 = vld [vmem:[%s3 + $0x8] sm:$0xf]
    %v115 = vld [vmem:[%s3 + $0xc] sm:$0xf]
    %v116 = vld [vmem:[%s3 + $0x10] sm:$0xf]
    %v117 = vld [vmem:[%s3 + $0x14] sm:$0xf]
    %v118 = vld [vmem:[%s3 + $0x18] sm:$0xf]
    %v119 = vld [vmem:[%s3 + $0x1c] sm:$0xf]
    %v128 = vunpack.c.l.b16 %v112
    %v129 = vunpack.c.l.b16 %v113
    %v130 = vunpack.c.l.b16 %v114
    %v131 = vunpack.c.l.b16 %v115
    %v132 = vunpack.c.l.b16 %v116
    %v133 = vunpack.c.l.b16 %v117
    %v134 = vunpack.c.l.b16 %v118
    %v135 = vunpack.c.l.b16 %v119
    %v136 = vpack.c.b16 %v129, %v128
    %v137 = vpack.c.b16 %v131, %v130
    %v138 = vpack.c.b16 %v133, %v132
    %v139 = vpack.c.b16 %v135, %v134
    %vm144 = vcmask 523264
    %v146 = vsel %vm144, %v111, 0
    %148 = vmatpush.bf16.msra.mxu0 0
    %149 = vmatpush.bf16.msra.mxu0 0
    %150 = vmatpush.bf16.msra.mxu0 0
    %151 = vmatpush.bf16.msra.mxu0 0
    %152 = vmatpush.bf16.msra.mxu0 %v139
    %153 = vmatpush.bf16.msra.mxu0 %v138
    %154 = vmatpush.bf16.msra.mxu0 %v137
    %155 = vmatpush.bf16.msra.mxu0 %v136
    %156 = vmatmul.bf16.gmra.mxu0 %v146
    %v157 = vpop.f32.mrf.mxu0
    %v158 = vadd.f32 0.0, %v157
    %v159 = vpop.f32.mrf.mxu0
    %v160 = vadd.f32 0.0, %v159
    %161 = vdwg.mxu0
    %v162 = vadd.f32 %v109, %v158
    %v163 = vadd.f32 %v110, %v160
    %164 = vst.msk [vmem:[#allocation2] sm:$0xff] %vm73, %v162
    %165 = vst.msk [vmem:[#allocation2 + $0x8] sm:$0xff] %vm73, %v163
    // Predicated region
    $region38: #{fwd.14} parent=1 // pred_check
      %p166 = pneg %p43
    $region39: #{fwd.14} parent=1 // pred_check_branch
      %168 = sbr.rel (%p166) target = $region41
    $region40: #{fwd.14} parent=1 // pred_region
      %v169 = vld [vmem:[#allocation2] sm:$0xff]
      %v170 = vld [vmem:[#allocation2 + $0x8] sm:$0xff]
      %v171 = vld [vmem:[%s4] sm:$0x1]
      %v173 = vperm.slane %v171, 0
      %v175 = vadd.f32 %v169, %v173
      %v176 = vadd.f32 %v170, %v173
      %v177 = vadd.f32 %v175, %v50
      %v178 = vadd.f32 %v176, %v51
      %v179 = vsel %vm73, %v177, 0.0
      %180 = vadd.xlane.f32.xlu0 %v179
      %v181 = vpop.xlane.xlu0 %180
      %v182 = vsel %vm73, %v178, 0.0
      %183 = vadd.xlane.f32.xlu0 %v182
      %v184 = vpop.xlane.xlu0 %183
      %v185 = vrcp.pop 32.0
      %v186 = vmul.f32 32.0, %v185
      %v187 = vsub.f32 1.0, %v186
      %v188 = vmul.f32 %v185, %v187
      %v189 = vadd.f32 %v185, %v188
      %vm190 = vweird.f32 %v185
      %v191 = vsel %vm190, %v185, %v189
      %v192 = vmul.f32 %v181, %v191
      %v193 = vmul.f32 %v184, %v191
      %v194 = vsub.f32 %v177, %v192
      %v195 = vsub.f32 %v178, %v193
      %v196 = vmul.f32 %v194, %v194
      %v197 = vmul.f32 %v195, %v195
      %v198 = vsel %vm73, %v196, 0.0
      %199 = vadd.xlane.f32.xlu0 %v198
      %v200 = vpop.xlane.xlu0 %199
      %v201 = vsel %vm73, %v197, 0.0
      %202 = vadd.xlane.f32.xlu0 %v201
      %v203 = vpop.xlane.xlu0 %202
      %v204 = vmul.f32 %v200, %v191
      %v205 = vmul.f32 %v203, %v191
      %v206 = vadd.f32 %v204, 1e-12
      %v207 = vadd.f32 %v205, 1e-12
      %v208 = vrsqrt.pop %v206
      %v209 = vmul.f32 %v208, %v206
      %v210 = vmul.f32 %v209, %v208
      %v211 = vmul.f32 0.5, %v210
      %v212 = vsub.f32 1.5, %v211
      %v213 = vmul.f32 %v208, %v212
      %vm214 = vweird.f32 %v206
      %vm215 = vweird.f32 %v208
      %vm216 = vmor %vm214, %vm215
      %v217 = vsel %vm216, %v208, %v213
      %v218 = vrsqrt.pop %v207
      %v219 = vmul.f32 %v218, %v207
      %v220 = vmul.f32 %v219, %v218
      %v221 = vmul.f32 0.5, %v220
      %v222 = vsub.f32 1.5, %v221
      %v223 = vmul.f32 %v218, %v222
      %vm224 = vweird.f32 %v207
      %vm225 = vweird.f32 %v218
      %vm226 = vmor %vm224, %vm225
      %v227 = vsel %vm226, %v218, %v223
      %v228 = vmul.f32 %v194, %v217
      %v229 = vmul.f32 %v195, %v227
      %v230 = vld [vmem:[%s5] sm:$0x1]
      %v232 = vperm.slane %v230, 0
      %v234 = vmul.f32 %v228, %v232
      %v235 = vmul.f32 %v229, %v232
      %v236 = vld [vmem:[%s6] sm:$0x1]
      %v238 = vperm.slane %v236, 0
      %v240 = vadd.f32 %v234, %v238
      %v241 = vadd.f32 %v235, %v238
      %242 = vst.msk [vmem:[%s7] sm:$0xff] %vm73, %v240
      %243 = vst.msk [vmem:[%s7 + $0x8] sm:$0xff] %vm73, %v241
    $region41: #{fwd.14} parent=1 // pred_fallthru
      _
    // Predicated region
    $region42: #{fwd.14} parent=1 // pred_check
      _
    $region43: #{fwd.14} parent=1 // pred_check_branch
      %245 = sbr.rel (0) target = $region45
    $region44: #{fwd.14} parent=1 // pred_region
      _
    $region45: #{fwd.14} parent=1 // pred_fallthru
      _
    // Predicated region
    $region46: #{fwd.14} parent=1 // pred_check
      _
    $region47: #{fwd.14} parent=1 // pred_check_branch
      %247 = sbr.rel (0) target = $region49
    $region48: #{fwd.14} parent=1 // pred_region
      _
    $region49: #{fwd.14} parent=1 // pred_fallthru
      _
    %248 = vsyncpa [#allocation4], 1

// kernel: fwd.18
$region0: #{fwd.18}
  #allocation0 [shape = 'u32[]', space=smem, size = 0x4, offset = 0x4, fixed_abs, tag = 'smem constant byte address 0x4 - core index']
  #allocation1 [shape = 'u32[72,128]{1,0:T(1,128)}', space=vmem, size = 0x9000, scoped, tag = 'internal scratch']
  #allocation2 [shape = 'f32[16,32]{1,0:T(8,128)}', space=vmem, size = 0x2000, scoped, tag = 'scratch operand']
  %s0 = inlined_call_operand.vmem [shape: f32[16,32], index: 0, kind: input, shape index: {}]
  %s1 = inlined_call_operand.vmem [shape: bf16[32,64], index: 1, kind: input, shape index: {}]
  %s2 = inlined_call_operand.vmem [shape: f32[1,64], index: 2, kind: input, shape index: {}]
  %s3 = inlined_call_operand.vmem [shape: bf16[64,32], index: 3, kind: input, shape index: {}]
  %s4 = inlined_call_operand.vmem [shape: f32[1,32], index: 4, kind: input, shape index: {}, may-alias: {4,6}]
  %s5 = inlined_call_operand.vmem [shape: f32[1,32], index: 5, kind: input, shape index: {}]
  %s6 = inlined_call_operand.vmem [shape: f32[1,32], index: 6, kind: input, shape index: {}, may-alias: {4,6}]
  %s7 = inlined_call_operand.vmem [shape: f32[16,32], index: 7, kind: output, shape index: {}]
  %s8 = sld [smem:[#allocation0]]
  $region46: #{fwd.18} parent=0
    _
  %s10 = ssub.s32 1, %s8
  %s11 = scalar_select 0, %s10, %s8
  // Predicated region
  $region2: #{fwd.18} parent=0 // pred_check
    _
  $region3: #{fwd.18} parent=0 // pred_check_branch
    %13 = sbr.rel (0) target = $region5
  $region4: #{fwd.18} parent=0 // pred_region
    _
  $region5: #{fwd.18} parent=0 // pred_fallthru
    _
  // Predicated region
  $region6: #{fwd.18} parent=0 // pred_check
    _
  $region7: #{fwd.18} parent=0 // pred_check_branch
    %15 = sbr.rel (0) target = $region9
  $region8: #{fwd.18} parent=0 // pred_region
    _
  $region9: #{fwd.18} parent=0 // pred_fallthru
    _
  // Predicated region
  $region10: #{fwd.18} parent=0 // pred_check
    _
  $region11: #{fwd.18} parent=0 // pred_check_branch
    %17 = sbr.rel (0) target = $region13
  $region12: #{fwd.18} parent=0 // pred_region
    _
  $region13: #{fwd.18} parent=0 // pred_fallthru
    _
  // Predicated region
  $region14: #{fwd.18} parent=0 // pred_check
    _
  $region15: #{fwd.18} parent=0 // pred_check_branch
    %19 = sbr.rel (0) target = $region17
  $region16: #{fwd.18} parent=0 // pred_region
    _
  $region17: #{fwd.18} parent=0 // pred_fallthru
    _
  // Predicated region
  $region18: #{fwd.18} parent=0 // pred_check
    _
  $region19: #{fwd.18} parent=0 // pred_check_branch
    %21 = sbr.rel (0) target = $region21
  $region20: #{fwd.18} parent=0 // pred_region
    _
  $region21: #{fwd.18} parent=0 // pred_fallthru
    _
  // Predicated region
  $region22: #{fwd.18} parent=0 // pred_check
    _
  $region23: #{fwd.18} parent=0 // pred_check_branch
    %23 = sbr.rel (0) target = $region25
  $region24: #{fwd.18} parent=0 // pred_region
    _
  $region25: #{fwd.18} parent=0 // pred_fallthru
    _
  // Predicated region
  $region26: #{fwd.18} parent=0 // pred_check
    _
  $region27: #{fwd.18} parent=0 // pred_check_branch
    %25 = sbr.rel (0) target = $region29
  $region28: #{fwd.18} parent=0 // pred_region
    _
  $region29: #{fwd.18} parent=0 // pred_fallthru
    _
  %p27 = scmp.eq.s32.totalorder 0, 0
  // Predicated region
  $region30: #{fwd.18} parent=0 // pred_check
    %p28 = pneg %p27
  $region31: #{fwd.18} parent=0 // pred_check_branch
    %30 = sbr.rel (%p28) target = $region33
  $region32: #{fwd.18} parent=0 // pred_region
    %vm31 = vcmask 261120
    %32 = vst.msk [vmem:[#allocation2] sm:$0xff] %vm31, 0.0
    %33 = vst.msk [vmem:[#allocation2 + $0x8] sm:$0xff] %vm31, 0.0
  $region33: #{fwd.18} parent=0 // pred_fallthru
    _
  %v34 = vld [vmem:[%s0] sm:$0xff]
  %v35 = vld [vmem:[%s0 + $0x8] sm:$0xff]
  %v36 = vpack.c.bf16 %v35, %v34
  %v37 = vld [vmem:[%s1] sm:$0xf]
  %v38 = vld [vmem:[%s1 + $0x4] sm:$0xf]
  %v39 = vld [vmem:[%s1 + $0x8] sm:$0xf]
  %v40 = vld [vmem:[%s1 + $0xc] sm:$0xf]
  %v41 = vld [vmem:[%s2] sm:$0x1]
  %v43 = vperm.slane %v41, 0
  %v49 = vunpack.c.l.b16 %v37
  %v50 = vunpack.c.l.b16 %v38
  %v51 = vunpack.c.l.b16 %v39
  %v52 = vunpack.c.l.b16 %v40
  %v53 = vpack.c.b16 %v50, %v49
  %v54 = vpack.c.b16 %v52, %v51
  %vm57 = vcmask 261120
  %v59 = vsel %vm57, %v36, 0
  %61 = vmatpush.bf16.msra.mxu0 0
  %62 = vmatpush.bf16.msra.mxu0 0
  %63 = vmatpush.bf16.msra.mxu0 0
  %64 = vmatpush.bf16.msra.mxu0 0
  %65 = vmatpush.bf16.msra.mxu0 0
  %66 = vmatpush.bf16.msra.mxu0 0
  %67 = vmatpush.bf16.msra.mxu0 %v54
  %68 = vmatpush.bf16.msra.mxu0 %v53
  %69 = vmatmul.bf16.gmra.mxu0 %v59
  %v70 = vpop.f32.mrf.mxu0
  %v71 = vadd.f32 %v43, %v70
  %v72 = vpop.f32.mrf.mxu0
  %v73 = vadd.f32 %v43, %v72
  %74 = vdwg.mxu0
  %v75 = vmul.f32 %v71, %v71
  %v76 = vmul.f32 %v73, %v73
  %v77 = vmul.f32 %v71, %v75
  %v78 = vmul.f32 %v73, %v76
  %v79 = vmul.f32 %v77, 0.044715
  %v80 = vmul.f32 %v78, 0.044715
  %v81 = vadd.f32 %v71, %v79
  %v82 = vadd.f32 %v73, %v80
  %v83 = vmul.f32 %v81, 0.7978846
  %v84 = vmul.f32 %v82, 0.7978846
  %v85 = vtanh.pop %v83
  %v86 = vtanh.pop %v84
  %v87 = vadd.f32 %v85, 1.0
  %v88 = vadd.f32 %v86, 1.0
  %v89 = vmul.f32 %v87, 0.5
  %v90 = vmul.f32 %v88, 0.5
  %v91 = vmul.f32 %v71, %v89
  %v92 = vmul.f32 %v73, %v90
  %v93 = vld [vmem:[#allocation2] sm:$0xff]
  %v94 = vld [vmem:[#allocation2 + $0x8] sm:$0xff]
  %v95 = vpack.c.bf16 %v92, %v91
  %v96 = vld [vmem:[%s3] sm:$0xf]
  %v97 = vld [vmem:[%s3 + $0x4] sm:$0xf]
  %v98 = vld [vmem:[%s3 + $0x8] sm:$0xf]
  %v99 = vld [vmem:[%s3 + $0xc] sm:$0xf]
  %v100 = vld [vmem:[%s3 + $0x10] sm:$0xf]
  %v101 = vld [vmem:[%s3 + $0x14] sm:$0xf]
  %v102 = vld [vmem:[%s3 + $0x18] sm:$0xf]
  %v103 = vld [vmem:[%s3 + $0x1c] sm:$0xf]
  %v112 = vunpack.c.l.b16 %v96
  %v113 = vunpack.c.l.b16 %v97
  %v114 = vunpack.c.l.b16 %v98
  %v115 = vunpack.c.l.b16 %v99
  %v116 = vunpack.c.l.b16 %v100
  %v117 = vunpack.c.l.b16 %v101
  %v118 = vunpack.c.l.b16 %v102
  %v119 = vunpack.c.l.b16 %v103
  %v120 = vpack.c.b16 %v113, %v112
  %v121 = vpack.c.b16 %v115, %v114
  %v122 = vpack.c.b16 %v117, %v116
  %v123 = vpack.c.b16 %v119, %v118
  %vm128 = vcmask 523264
  %v130 = vsel %vm128, %v95, 0
  %132 = vmatpush.bf16.msra.mxu0 0
  %133 = vmatpush.bf16.msra.mxu0 0
  %134 = vmatpush.bf16.msra.mxu0 0
  %135 = vmatpush.bf16.msra.mxu0 0
  %136 = vmatpush.bf16.msra.mxu0 %v123
  %137 = vmatpush.bf16.msra.mxu0 %v122
  %138 = vmatpush.bf16.msra.mxu0 %v121
  %139 = vmatpush.bf16.msra.mxu0 %v120
  %140 = vmatmul.bf16.gmra.mxu0 %v130
  %v141 = vpop.f32.mrf.mxu0
  %v142 = vadd.f32 0.0, %v141
  %v143 = vpop.f32.mrf.mxu0
  %v144 = vadd.f32 0.0, %v143
  %145 = vdwg.mxu0
  %v146 = vadd.f32 %v93, %v142
  %v147 = vadd.f32 %v94, %v144
  %148 = vst.msk [vmem:[#allocation2] sm:$0xff] %vm57, %v146
  %149 = vst.msk [vmem:[#allocation2 + $0x8] sm:$0xff] %vm57, %v147
  // Predicated region
  $region34: #{fwd.18} parent=0 // pred_check
    %p150 = pneg %p27
  $region35: #{fwd.18} parent=0 // pred_check_branch
    %152 = sbr.rel (%p150) target = $region37
  $region36: #{fwd.18} parent=0 // pred_region
    %v153 = vld [vmem:[#allocation2] sm:$0xff]
    %v154 = vld [vmem:[#allocation2 + $0x8] sm:$0xff]
    %v155 = vld [vmem:[%s4] sm:$0x1]
    %v157 = vperm.slane %v155, 0
    %v159 = vadd.f32 %v153, %v157
    %v160 = vadd.f32 %v154, %v157
    %v161 = vadd.f32 %v159, %v34
    %v162 = vadd.f32 %v160, %v35
    %v163 = vsel %vm57, %v161, 0.0
    %164 = vadd.xlane.f32.xlu0 %v163
    %v165 = vpop.xlane.xlu0 %164
    %v166 = vsel %vm57, %v162, 0.0
    %167 = vadd.xlane.f32.xlu0 %v166
    %v168 = vpop.xlane.xlu0 %167
    %v169 = vrcp.pop 32.0
    %v170 = vmul.f32 32.0, %v169
    %v171 = vsub.f32 1.0, %v170
    %v172 = vmul.f32 %v169, %v171
    %v173 = vadd.f32 %v169, %v172
    %vm174 = vweird.f32 %v169
    %v175 = vsel %vm174, %v169, %v173
    %v176 = vmul.f32 %v165, %v175
    %v177 = vmul.f32 %v168, %v175
    %v178 = vsub.f32 %v161, %v176
    %v179 = vsub.f32 %v162, %v177
    %v180 = vmul.f32 %v178, %v178
    %v181 = vmul.f32 %v179, %v179
    %v182 = vsel %vm57, %v180, 0.0
    %183 = vadd.xlane.f32.xlu0 %v182
    %v184 = vpop.xlane.xlu0 %183
    %v185 = vsel %vm57, %v181, 0.0
    %186 = vadd.xlane.f32.xlu0 %v185
    %v187 = vpop.xlane.xlu0 %186
    %v188 = vmul.f32 %v184, %v175
    %v189 = vmul.f32 %v187, %v175
    %v190 = vadd.f32 %v188, 1e-12
    %v191 = vadd.f32 %v189, 1e-12
    %v192 = vrsqrt.pop %v190
    %v193 = vmul.f32 %v192, %v190
    %v194 = vmul.f32 %v193, %v192
    %v195 = vmul.f32 0.5, %v194
    %v196 = vsub.f32 1.5, %v195
    %v197 = vmul.f32 %v192, %v196
    %vm198 = vweird.f32 %v190
    %vm199 = vweird.f32 %v192
    %vm200 = vmor %vm198, %vm199
    %v201 = vsel %vm200, %v192, %v197
    %v202 = vrsqrt.pop %v191
    %v203 = vmul.f32 %v202, %v191
    %v204 = vmul.f32 %v203, %v202
    %v205 = vmul.f32 0.5, %v204
    %v206 = vsub.f32 1.5, %v205
    %v207 = vmul.f32 %v202, %v206
    %vm208 = vweird.f32 %v191
    %vm209 = vweird.f32 %v202
    %vm210 = vmor %vm208, %vm209
    %v211 = vsel %vm210, %v202, %v207
    %v212 = vmul.f32 %v178, %v201
    %v213 = vmul.f32 %v179, %v211
    %v214 = vld [vmem:[%s5] sm:$0x1]
    %v216 = vperm.slane %v214, 0
    %v218 = vmul.f32 %v212, %v216
    %v219 = vmul.f32 %v213, %v216
    %v220 = vld [vmem:[%s6] sm:$0x1]
    %v222 = vperm.slane %v220, 0
    %v224 = vadd.f32 %v218, %v222
    %v225 = vadd.f32 %v219, %v222
    %226 = vst.msk [vmem:[%s7] sm:$0xff] %vm57, %v224
    %227 = vst.msk [vmem:[%s7 + $0x8] sm:$0xff] %vm57, %v225
  $region37: #{fwd.18} parent=0 // pred_fallthru
    _
  // Predicated region
  $region38: #{fwd.18} parent=0 // pred_check
    _
  $region39: #{fwd.18} parent=0 // pred_check_branch
    %229 = sbr.rel (0) target = $region41
  $region40: #{fwd.18} parent=0 // pred_region
    _
  $region41: #{fwd.18} parent=0 // pred_fallthru
    _
  // Predicated region
  $region42: #{fwd.18} parent=0 // pred_check
    _
  $region43: #{fwd.18} parent=0 // pred_check_branch
    %231 = sbr.rel (0) target = $region45
  $region44: #{fwd.18} parent=0 // pred_region
    _
  $region45: #{fwd.18} parent=0 // pred_fallthru
    _

// kernel: fwd.17
$region0: #{fwd.17}
  #allocation0 [shape = 'u32[]', space=smem, size = 0x4, offset = 0x4, fixed_abs, tag = 'smem constant byte address 0x4 - core index']
  #allocation1 [shape = 'u32[72,128]{1,0:T(1,128)}', space=vmem, size = 0x9000, scoped, tag = 'internal scratch']
  #allocation2 [shape = 'f32[16,32]{1,0:T(8,128)}', space=vmem, size = 0x2000, scoped, tag = 'scratch operand']
  %s0 = inlined_call_operand.vmem [shape: bf16[4,16,8], index: 0, kind: input, shape index: {}]
  %s1 = inlined_call_operand.vmem [shape: f32[16,32], index: 1, kind: input, shape index: {}]
  %s2 = inlined_call_operand.vmem [shape: bf16[4,8,32], index: 2, kind: input, shape index: {}]
  %s3 = inlined_call_operand.vmem [shape: f32[1,32], index: 3, kind: input, shape index: {}, may-alias: {3,5}]
  %s4 = inlined_call_operand.vmem [shape: f32[1,32], index: 4, kind: input, shape index: {}]
  %s5 = inlined_call_operand.vmem [shape: f32[1,32], index: 5, kind: input, shape index: {}, may-alias: {3,5}]
  %s6 = inlined_call_operand.vmem [shape: f32[16,32], index: 6, kind: output, shape index: {}]
  %s7 = sld [smem:[#allocation0]]
  $region65: #{fwd.17} parent=0
    _
  %s9 = ssub.s32 1, %s7
  %s10 = scalar_select 0, %s9, %s7
  loop: start=0, step=1, limit=6
  $region2: #{fwd.17} parent=0 // loop_pre_header
    _
  $region3: #{fwd.17} parent=0 // loop_header
    %s12 = sphi 0, %s16
    %p13 = scmp.ge.s32.totalorder %s12, 6
    %s19 = sphi 0, %s31
    %s20 = sphi 0, %s27
    %s21 = sphi 0, %s19
    %s22 = sphi 0, %s20
    %s23 = sphi 0, %s21
    %s24 = sphi 0, %s22
    %s36 = sphi 0, %s38
    %s39 = sphi 0, %s36
    %s40 = sphi 0, %s39
    %s56 = sphi 0, %s40
    %s62 = sphi 0, %s64
    %s65 = sphi 0, %s62
    %s66 = sphi 0, %s65
    %s82 = sphi 0, %s66
    %s88 = sphi 0, %s90
    %s91 = sphi 0, %s88
    %s92 = sphi 0, %s91
    %s108 = sphi 0, %s92
    %s112 = sphi 0, %s112
    %s114 = sphi 0, %s112
    %s115 = sphi 0, %s114
    %s129 = sphi 0, %s115
    %s133 = sphi 0, %s133
    %s135 = sphi 0, %s133
    %s136 = sphi 0, %s135
    %s150 = sphi 0, %s136
    %s154 = sphi 0, %s154
    %s156 = sphi 0, %s154
    %s157 = sphi 0, %s156
    %s171 = sphi 0, %s157
    %s177 = sphi 0, %s179
    %s180 = sphi 0, %s177
    %s181 = sphi 0, %s180
    %s197 = sphi 0, %s181
  $region4: #{fwd.17} parent=0 // loop_header_branch
    %15 = sbr.rel (%p13) target = $region8
  $region5: #{fwd.17} parent=0 // loop_body
    %s17 = ssub.s32 %s12, 1
    %s18 = ssub.s32 %s12, 2
    %s25 = sadd.s32 1, %s20
    %p26 = scmp.ge.s32.totalorder %s25, 4
    %s27 = scalar_select %p26, 0, %s25
    %s28 = sadd.s32 1, %s19
    %s29 = scalar_select %p26, %s28, %s19
    %p30 = scmp.ge.s32.totalorder %s29, 1
    %s31 = scalar_select %p30, 0, %s29
    %s32 = ssub.s32 %s20, %s27
    %s33 = ssub.s32 %s19, %s31
    %s34 = sor.u32 %s32, %s33
    %p35 = scmp.eq.s32.totalorder %s34, 0
    %s37 = sadd.s32 %s36, 1
    %s38 = scalar_select %p35, %s36, %s37
    %p41 = pneg %p35
    %p42 = scmp.eq.s32.totalorder %s12, 3
    %p43 = por %p41, %p42
    %p44 = scmp.ne.s32.totalorder %s36, %s39
    %p45 = scmp.eq.s32.totalorder %s12, 0
    %p46 = por %p44, %p45
    %p47 = scmp.ne.s32.totalorder %s36, %s39
    %p48 = scmp.eq.s32.totalorder %s17, 3
    %p49 = por %p47, %p48
    %p50 = scmp.ne.s32.totalorder %s39, %s40
    %p51 = scmp.eq.s32.totalorder %s17, 0
    %p52 = por %p50, %p51
    %p53 = scmp.ne.s32.totalorder %s39, %s40
    %p54 = scmp.eq.s32.totalorder %s18, 3
    %p55 = por %p53, %p54
    %p57 = scmp.ne.s32.totalorder %s40, %s56
    %p58 = scmp.eq.s32.totalorder %s18, 0
    %p59 = por %p57, %p58
    %s60 = ssub.s32 %s19, %s31
    %p61 = scmp.eq.s32.totalorder %s60, 0
    %s63 = sadd.s32 %s62, 1
    %s64 = scalar_select %p61, %s62, %s63
    %p67 = pneg %p61
    %p68 = scmp.eq.s32.totalorder %s12, 3
    %p69 = por %p67, %p68
    %p70 = scmp.ne.s32.totalorder %s62, %s65
    %p71 = scmp.eq.s32.totalorder %s12, 0
    %p72 = por %p70, %p71
    %p73 = scmp.ne.s32.totalorder %s62, %s65
    %p74 = scmp.eq.s32.totalorder %s17, 3
    %p75 = por %p73, %p74
    %p76 = scmp.ne.s32.totalorder %s65, %s66
    %p77 = scmp.eq.s32.totalorder %s17, 0
    %p78 = por %p76, %p77
    %p79 = scmp.ne.s32.totalorder %s65, %s66
    %p80 = scmp.eq.s32.totalorder %s18, 3
    %p81 = por %p79, %p80
    %p83 = scmp.ne.s32.totalorder %s66, %s82
    %p84 = scmp.eq.s32.totalorder %s18, 0
    %p85 = por %p83, %p84
    %s86 = ssub.s32 %s20, %s27
    %p87 = scmp.eq.s32.totalorder %s86, 0
    %s89 = sadd.s32 %s88, 1
    %s90 = scalar_select %p87, %s88, %s89
    %p93 = pneg %p87
    %p94 = scmp.eq.s32.totalorder %s12, 3
    %p95 = por %p93, %p94
    %p96 = scmp.ne.s32.totalorder %s88, %s91
    %p97 = scmp.eq.s32.totalorder %s12, 0
    %p98 = por %p96, %p97
    %p99 = scmp.ne.s32.totalorder %s88, %s91
    %p100 = scmp.eq.s32.totalorder %s17, 3
    %p101 = por %p99, %p100
    %p102 = scmp.ne.s32.totalorder %s91, %s92
    %p103 = scmp.eq.s32.totalorder %s17, 0
    %p104 = por %p102, %p103
    %p105 = scmp.ne.s32.totalorder %s91, %s92
    %p106 = scmp.eq.s32.totalorder %s18, 3
    %p107 = por %p105, %p106
    %p109 = scmp.ne.s32.totalorder %s92, %s108
    %p110 = scmp.eq.s32.totalorder %s18, 0
    %p111 = por %p109, %p110
    %s113 = sadd.s32 %s112, 1
    %p116 = scmp.eq.s32.totalorder %s12, 3
    %p117 = scmp.ne.s32.totalorder %s112, %s114
    %p118 = scmp.eq.s32.totalorder %s12, 0
    %p119 = por %p117, %p118
    %p120 = scmp.ne.s32.totalorder %s112, %s114
    %p121 = scmp.eq.s32.totalorder %s17, 3
    %p122 = por %p120, %p121
    %p123 = scmp.ne.s32.totalorder %s114, %s115
    %p124 = scmp.eq.s32.totalorder %s17, 0
    %p125 = por %p123, %p124
    %p126 = scmp.ne.s32.totalorder %s114, %s115
    %p127 = scmp.eq.s32.totalorder %s18, 3
    %p128 = por %p126, %p127
    %p130 = scmp.ne.s32.totalorder %s115, %s129
    %p131 = scmp.eq.s32.totalorder %s18, 0
    %p132 = por %p130, %p131
    %s134 = sadd.s32 %s133, 1
    %p137 = scmp.eq.s32.totalorder %s12, 3
    %p138 = scmp.ne.s32.totalorder %s133, %s135
    %p139 = scmp.eq.s32.totalorder %s12, 0
    %p140 = por %p138, %p139
    %p141 = scmp.ne.s32.totalorder %s133, %s135
    %p142 = scmp.eq.s32.totalorder %s17, 3
    %p143 = por %p141, %p142
    %p144 = scmp.ne.s32.totalorder %s135, %s136
    %p145 = scmp.eq.s32.totalorder %s17, 0
    %p146 = por %p144, %p145
    %p147 = scmp.ne.s32.totalorder %s135, %s136
    %p148 = scmp.eq.s32.totalorder %s18, 3
    %p149 = por %p147, %p148
    %p151 = scmp.ne.s32.totalorder %s136, %s150
    %p152 = scmp.eq.s32.totalorder %s18, 0
    %p153 = por %p151, %p152
    %s155 = sadd.s32 %s154, 1
    %p158 = scmp.eq.s32.totalorder %s12, 3
    %p159 = scmp.ne.s32.totalorder %s154, %s156
    %p160 = scmp.eq.s32.totalorder %s12, 0
    %p161 = por %p159, %p160
    %p162 = scmp.ne.s32.totalorder %s154, %s156
    %p163 = scmp.eq.s32.totalorder %s17, 3
    %p164 = por %p162, %p163
    %p165 = scmp.ne.s32.totalorder %s156, %s157
    %p166 = scmp.eq.s32.totalorder %s17, 0
    %p167 = por %p165, %p166
    %p168 = scmp.ne.s32.totalorder %s156, %s157
    %p169 = scmp.eq.s32.totalorder %s18, 3
    %p170 = por %p168, %p169
    %p172 = scmp.ne.s32.totalorder %s157, %s171
    %p173 = scmp.eq.s32.totalorder %s18, 0
    %p174 = por %p172, %p173
    %s175 = ssub.s32 %s19, %s31
    %p176 = scmp.eq.s32.totalorder %s175, 0
    %s178 = sadd.s32 %s177, 1
    %s179 = scalar_select %p176, %s177, %s178
    %p182 = pneg %p176
    %p183 = scmp.eq.s32.totalorder %s12, 3
    %p184 = por %p182, %p183
    %p185 = scmp.ne.s32.totalorder %s177, %s180
    %p186 = scmp.eq.s32.totalorder %s12, 0
    %p187 = por %p185, %p186
    %p188 = scmp.ne.s32.totalorder %s177, %s180
    %p189 = scmp.eq.s32.totalorder %s17, 3
    %p190 = por %p188, %p189
    %p191 = scmp.ne.s32.totalorder %s180, %s181
    %p192 = scmp.eq.s32.totalorder %s17, 0
    %p193 = por %p191, %p192
    %p194 = scmp.ne.s32.totalorder %s180, %s181
    %p195 = scmp.eq.s32.totalorder %s18, 3
    %p196 = por %p194, %p195
    %p198 = scmp.ne.s32.totalorder %s181, %s197
    %p199 = scmp.eq.s32.totalorder %s18, 0
    %p200 = por %p198, %p199
    %p201 = scmp.le.s32.totalorder 1, %s12
    %p202 = scmp.lt.s32.totalorder %s12, 5
    %p203 = pnand %p201, %p202
    %p204 = pneg %p203
    // Predicated region
    $region9: #{fwd.17} parent=5 // pred_check
      _
    $region10: #{fwd.17} parent=5 // pred_check_branch
      %206 = sbr.rel (%p203) target = $region12
    $region11: #{fwd.17} parent=5 // pred_region
      %s207 = ssub.s32 %s12, 1
      // Predicated region
      $region13: #{fwd.17} parent=11 // pred_check
        %p208 = pneg %p78
      $region14: #{fwd.17} parent=11 // pred_check_branch
        %210 = sbr.rel (%p208) target = $region16
      $region15: #{fwd.17} parent=11 // pred_region
        %s211 = smul.u32 2, %s21
        %p212 = scmp.lt.s32.totalorder %s211, 1
        %s213 = scalar_select %p212, %s211, 1
        %s214 = smul.addr %s213, 8
        %s215 = scalar_lea.vmem %s1, %s214
        %s216 = smul.u32 2, %s21
      $region16: #{fwd.17} parent=11 // pred_fallthru
        _
      // Predicated region
      $region17: #{fwd.17} parent=11 // pred_check
        %p217 = pneg %p125
      $region18: #{fwd.17} parent=11 // pred_check_branch
        %219 = sbr.rel (%p217) target = $region20
      $region19: #{fwd.17} parent=11 // pred_region
        _
      $region20: #{fwd.17} parent=11 // pred_fallthru
        _
      // Predicated region
      $region21: #{fwd.17} parent=11 // pred_check
        %p220 = pneg %p146
      $region22: #{fwd.17} parent=11 // pred_check_branch
        %222 = sbr.rel (%p220) target = $region24
      $region23: #{fwd.17} parent=11 // pred_region
        _
      $region24: #{fwd.17} parent=11 // pred_fallthru
        _
      // Predicated region
      $region25: #{fwd.17} parent=11 // pred_check
        %p223 = pneg %p167
      $region26: #{fwd.17} parent=11 // pred_check_branch
        %225 = sbr.rel (%p223) target = $region28
      $region27: #{fwd.17} parent=11 // pred_region
        _
      $region28: #{fwd.17} parent=11 // pred_fallthru
        _
    $region12: #{fwd.17} parent=5 // pred_fallthru
      _
    %p226 = scmp.lt.s32.totalorder %s12, 4
    // Predicated region
    $region29: #{fwd.17} parent=5 // pred_check
      %p227 = pneg %p226
    $region30: #{fwd.17} parent=5 // pred_check_branch
      %229 = sbr.rel (%p227) target = $region32
    $region31: #{fwd.17} parent=5 // pred_region
      // Predicated region
      $region33: #{fwd.17} parent=31 // pred_check
        %p230 = pneg %p46
      $region34: #{fwd.17} parent=31 // pred_check_branch
        %232 = sbr.rel (%p230) target = $region36
      $region35: #{fwd.17} parent=31 // pred_region
        %s233 = smul.u32 2, %s19
        %p234 = scmp.lt.s32.totalorder %s20, 3
        %s235 = scalar_select %p234, %s20, 3
        %p236 = scmp.lt.s32.totalorder %s233, 1
        %s237 = scalar_select %p236, %s233, 1
        %s238 = smul.addr %s235, 2
        %s239 = sadd.s32 %s237, %s238
        %s240 = smul.addr %s239, 4
        %s241 = scalar_lea.vmem %s0, %s240
        %s242 = smul.u32 2, %s19
      $region36: #{fwd.17} parent=31 // pred_fallthru
        _
      // Predicated region
      $region37: #{fwd.17} parent=31 // pred_check
        %p243 = pneg %p98
      $region38: #{fwd.17} parent=31 // pred_check_branch
        %245 = sbr.rel (%p243) target = $region40
      $region39: #{fwd.17} parent=31 // pred_region
        %p246 = scmp.lt.s32.totalorder %s20, 3
        %s247 = scalar_select %p246, %s20, 3
        %s248 = smul.addr %s247, 4
        %s249 = scalar_lea.vmem %s2, %s248
      $region40: #{fwd.17} parent=31 // pred_fallthru
        _
    $region32: #{fwd.17} parent=5 // pred_fallthru
      _
    %p250 = scmp.le.s32.totalorder 1, %s12
    %p251 = scmp.lt.s32.totalorder %s12, 5
    %p252 = pnand %p250, %p251
    %p253 = pneg %p252
    // Predicated region
    $region41: #{fwd.17} parent=5 // pred_check
      _
    $region42: #{fwd.17} parent=5 // pred_check_branch
      %255 = sbr.rel (%p252) target = $region44
    $region43: #{fwd.17} parent=5 // pred_region
      %s256 = ssub.s32 %s12, 1
      %s257 = smul.u32 2, %s21
      %p258 = scmp.lt.s32.totalorder %s22, 3
      %s259 = scalar_select %p258, %s22, 3
      %p260 = scmp.lt.s32.totalorder %s257, 1
      %s261 = scalar_select %p260, %s257, 1
      %s262 = smul.addr %s259, 2
      %s263 = sadd.s32 %s261, %s262
      %s264 = smul.addr %s263, 4
      %s265 = scalar_lea.vmem %s0, %s264
      %p266 = pneg %p52
      %p267 = pneg %p49
      %s268 = smul.u32 2, %s21
      %p269 = scmp.lt.s32.totalorder %s268, 1
      %s270 = scalar_select %p269, %s268, 1
      %s271 = smul.addr %s270, 8
      %s272 = scalar_lea.vmem %s1, %s271
      %p273 = pneg %p78
      %p274 = pneg %p75
      %p275 = scmp.lt.s32.totalorder %s22, 3
      %s276 = scalar_select %p275, %s22, 3
      %s277 = smul.addr %s276, 4
      %s278 = scalar_lea.vmem %s2, %s277
      %p279 = pneg %p104
      %p280 = pneg %p101
      %p281 = pneg %p125
      %p282 = pneg %p122
      %p283 = pneg %p146
      %p284 = pneg %p143
      %p285 = pneg %p167
      %p286 = pneg %p164
      %p287 = pneg %p193
      %p288 = pneg %p190
      %s289 = smul.u32 2, %s21
      %p290 = scmp.lt.s32.totalorder %s289, 1
      %s291 = scalar_select %p290, %s289, 1
      %s292 = smul.addr %s291, 8
      %s293 = scalar_lea.vmem %s6, %s292
      %s294 = smul.u32 2, %s21
      %p295 = scmp.lt.s32.totalorder %s22, 3
      %s296 = scalar_select %p295, %s22, 3
      %p297 = scmp.lt.s32.totalorder %s294, 1
      %s298 = scalar_select %p297, %s294, 1
      %s299 = smul.addr %s296, 2
      %s300 = sadd.s32 %s298, %s299
      %s301 = smul.addr %s300, 4
      %s302 = scalar_lea.vmem %s0, %s301
      %s303 = smul.u32 2, %s21
      %s304 = smul.u32 2, %s21
      %p305 = scmp.lt.s32.totalorder %s304, 1
      %s306 = scalar_select %p305, %s304, 1
      %s307 = smul.addr %s306, 8
      %s308 = scalar_lea.vmem %s1, %s307
      %s309 = smul.u32 2, %s21
      %p310 = scmp.lt.s32.totalorder %s22, 3
      %s311 = scalar_select %p310, %s22, 3
      %s312 = smul.addr %s311, 4
      %s313 = scalar_lea.vmem %s2, %s312
      %s314 = smul.u32 2, %s21
      %p315 = scmp.lt.s32.totalorder %s314, 1
      %s316 = scalar_select %p315, %s314, 1
      %s317 = smul.addr %s316, 8
      %s318 = scalar_lea.vmem %s6, %s317
      %s319 = smul.u32 2, %s21
      %p321 = scmp.eq.s32.totalorder %s22, 0
      // Predicated region
      $region45: #{fwd.17} parent=43 // pred_check
        %p322 = pneg %p321
      $region46: #{fwd.17} parent=43 // pred_check_branch
        %324 = sbr.rel (%p322) target = $region48
      $region47: #{fwd.17} parent=43 // pred_region
        %vm325 = vcmask 261120
        %326 = vst.msk [vmem:[#allocation2] sm:$0xff] %vm325, 0.0
        %327 = vst.msk [vmem:[#allocation2 + $0x8] sm:$0xff] %vm325, 0.0
      $region48: #{fwd.17} parent=43 // pred_fallthru
        _
      %v328 = vld [vmem:[#allocation2] sm:$0xff]
      %v329 = vld [vmem:[#allocation2 + $0x8] sm:$0xff]
      %v330 = vld [vmem:[%s302] sm:$0xf]
      %v331 = vld [vmem:[%s302 + $0x4] sm:$0xf]
      %v332 = vld [vmem:[%s313] sm:$0xf]
      %v335 = vunpack.c.l.b16 %v330
      %v336 = vunpack.c.l.b16 %v331
      %v337 = vpack.c.b16 %v336, %v335
      %vm338 = vcmask 64512
      %v340 = vsel %vm338, %v337, 0
      %vm342 = vcmask 1043456
      %v344 = vsel %vm342, %v332, 0
      %346 = vmatpush.bf16.msra.mxu0 0
      %347 = vmatpush.bf16.msra.mxu0 0
      %348 = vmatpush.bf16.msra.mxu0 0
      %349 = vmatpush.bf16.msra.mxu0 0
      %350 = vmatpush.bf16.msra.mxu0 0
      %351 = vmatpush.bf16.msra.mxu0 0
      %352 = vmatpush.bf16.msra.mxu0 0
      %353 = vmatpush.bf16.msra.mxu0 %v344
      %354 = vmatmul.bf16.gmra.mxu0 %v340
      %v355 = vpop.f32.mrf.mxu0
      %v356 = vadd.f32 0.0, %v355
      %v357 = vpop.f32.mrf.mxu0
      %v358 = vadd.f32 0.0, %v357
      %359 = vdwg.mxu0
      %v360 = vadd.f32 %v328, %v356
      %v361 = vadd.f32 %v329, %v358
      %vm362 = vcmask 261120
      %363 = vst.msk [vmem:[#allocation2] sm:$0xff] %vm362, %v360
      %364 = vst.msk [vmem:[#allocation2 + $0x8] sm:$0xff] %vm362, %v361
      %p365 = scmp.eq.s32.totalorder %s22, 3
      // Predicated region
      $region49: #{fwd.17} parent=43 // pred_check
        %p366 = pneg %p365
      $region50: #{fwd.17} parent=43 // pred_check_branch
        %368 = sbr.rel (%p366) target = $region52
      $region51: #{fwd.17} parent=43 // pred_region
        %v369 = vld [vmem:[#allocation2] sm:$0xff]
        %v370 = vld [vmem:[#allocation2 + $0x8] sm:$0xff]
        %v371 = vld [vmem:[%s3] sm:$0x1]
        %v373 = vperm.slane %v371, 0
        %v375 = vadd.f32 %v369, %v373
        %v376 = vadd.f32 %v370, %v373
        %v377 = vld [vmem:[%s308] sm:$0xff]
        %v378 = vld [vmem:[%s308 + $0x8] sm:$0xff]
        %v379 = vadd.f32 %v375, %v377
        %v380 = vadd.f32 %v376, %v378
        %v381 = vsel %vm362, %v379, 0.0
        %382 = vadd.xlane.f32.xlu0 %v381
        %v383 = vpop.xlane.xlu0 %382
        %v384 = vsel %vm362, %v380, 0.0
        %385 = vadd.xlane.f32.xlu0 %v384
        %v386 = vpop.xlane.xlu0 %385
        %v387 = vrcp.pop 32.0
        %v388 = vmul.f32 32.0, %v387
        %v389 = vsub.f32 1.0, %v388
        %v390 = vmul.f32 %v387, %v389
        %v391 = vadd.f32 %v387, %v390
        %vm392 = vweird.f32 %v387
        %v393 = vsel %vm392, %v387, %v391
        %v394 = vmul.f32 %v383, %v393
        %v395 = vmul.f32 %v386, %v393
        %v396 = vsub.f32 %v379, %v394
        %v397 = vsub.f32 %v380, %v395
        %v398 = vmul.f32 %v396, %v396
        %v399 = vmul.f32 %v397, %v397
        %v400 = vsel %vm362, %v398, 0.0
        %401 = vadd.xlane.f32.xlu0 %v400
        %v402 = vpop.xlane.xlu0 %401
        %v403 = vsel %vm362, %v399, 0.0
        %404 = vadd.xlane.f32.xlu0 %v403
        %v405 = vpop.xlane.xlu0 %404
        %v406 = vmul.f32 %v402, %v393
        %v407 = vmul.f32 %v405, %v393
        %v408 = vadd.f32 %v406, 1e-12
        %v409 = vadd.f32 %v407, 1e-12
        %v410 = vrsqrt.pop %v408
        %v411 = vmul.f32 %v410, %v408
        %v412 = vmul.f32 %v411, %v410
        %v413 = vmul.f32 0.5, %v412
        %v414 = vsub.f32 1.5, %v413
        %v415 = vmul.f32 %v410, %v414
        %vm416 = vweird.f32 %v408
        %vm417 = vweird.f32 %v410
        %vm418 = vmor %vm416, %vm417
        %v419 = vsel %vm418, %v410, %v415
        %v420 = vrsqrt.pop %v409
        %v421 = vmul.f32 %v420, %v409
        %v422 = vmul.f32 %v421, %v420
        %v423 = vmul.f32 0.5, %v422
        %v424 = vsub.f32 1.5, %v423
        %v425 = vmul.f32 %v420, %v424
        %vm426 = vweird.f32 %v409
        %vm427 = vweird.f32 %v420
        %vm428 = vmor %vm426, %vm427
        %v429 = vsel %vm428, %v420, %v425
        %v430 = vmul.f32 %v396, %v419
        %v431 = vmul.f32 %v397, %v429
        %v432 = vld [vmem:[%s4] sm:$0x1]
        %v434 = vperm.slane %v432, 0
        %v436 = vmul.f32 %v430, %v434
        %v437 = vmul.f32 %v431, %v434
        %v438 = vld [vmem:[%s5] sm:$0x1]
        %v440 = vperm.slane %v438, 0
        %v442 = vadd.f32 %v436, %v440
        %v443 = vadd.f32 %v437, %v440
        %444 = vst.msk [vmem:[%s318] sm:$0xff] %vm362, %v442
        %445 = vst.msk [vmem:[%s318 + $0x8] sm:$0xff] %vm362, %v443
      $region52: #{fwd.17} parent=43 // pred_fallthru
        _
      %s446 = smul.u32 2, %s21
      %p447 = scmp.lt.s32.totalorder %s446, 1
      %s448 = scalar_select %p447, %s446, 1
      %s449 = smul.addr %s448, 8
      %s450 = scalar_lea.vmem %s6, %s449
      // Predicated region
      $region53: #{fwd.17} parent=43 // pred_check
        %p451 = pneg %p190
      $region54: #{fwd.17} parent=43 // pred_check_branch
        %453 = sbr.rel (%p451) target = $region56
      $region55: #{fwd.17} parent=43 // pred_region
        %s454 = smul.u32 2, %s21
      $region56: #{fwd.17} parent=43 // pred_fallthru
        _
      // Predicated region
      $region57: #{fwd.17} parent=43 // pred_check
        %p455 = pneg %p190
      $region58: #{fwd.17} parent=43 // pred_check_branch
        %457 = sbr.rel (%p455) target = $region60
      $region59: #{fwd.17} parent=43 // pred_region
        %s458 = smul.u32 2, %s21
        %p459 = scmp.lt.s32.totalorder %s458, 1
        %s460 = scalar_select %p459, %s458, 1
        %s461 = smul.addr %s460, 8
        %s462 = scalar_lea.vmem %s6, %s461
      $region60: #{fwd.17} parent=43 // pred_fallthru
        _
    $region44: #{fwd.17} parent=5 // pred_fallthru
      _
    %p463 = scmp.le.s32.totalorder 2, %s12
    // Predicated region
    $region61: #{fwd.17} parent=5 // pred_check
      %p464 = pneg %p463
    $region62: #{fwd.17} parent=5 // pred_check_branch
      %466 = sbr.rel (%p464) target = $region64
    $region63: #{fwd.17} parent=5 // pred_region
      %s467 = ssub.s32 %s12, 2
    $region64: #{fwd.17} parent=5 // pred_fallthru
      _
  $region6: #{fwd.17} parent=0 // loop_footer
    %s16 = sadd.s32 1, %s12
  $region7: #{fwd.17} parent=0 // loop_footer_branch
    %11 = sbr.rel target = $region3
  $region8: #{fwd.17} parent=0 // loop_exit
    _

</llo_original>
